<compile_context>
chip_gen: v7x
topology: tpu7x:2x2x1
jax: 0.10.0
libtpu: 0.0.40
codegen_flags: <defaults>
</compile_context>

<pallas_src>
import functools

import jax
import jax.numpy as jnp
from jax import lax
from jax.experimental import pallas as pl
from jax.experimental.pallas import tpu as pltpu

STATE_DIM = 256          # GCN state dim (module default)
FEAT_CH = 128            # feature_channel_num (module default)
OUT_DIM = 2              # out_dim (module default)
LAYER_NUM = 8            # layer_num (module default) -> 1 + 2*6 + 1 GraphConvolutions
TILE_P = 128             # point-row tile (MXU/lane friendly)
LANE = 128


def _round_up(x, m):
    return (x + m - 1) // m * m


# ------------------------------ Pallas kernels ------------------------------

def _graph_conv_kernel(x_ref, adj_ref, w1_ref, w2_ref, b_ref, *rest,
                       relu, has_res, tile_p):
    """Fused GraphConvolution:  out = x@W1 + (adj@x)@W2 + b [+res] [ReLU]."""
    if has_res:
        r_ref, o_ref = rest
    else:
        (o_ref,) = rest

    x_full = x_ref[0]                       # (Pp, Kp)  full point set (for adj @ x)
    adj_rows = adj_ref[0]                   # (tile_p, Pp) adjacency rows of this tile

    if x_ref.shape[1] == tile_p:            # single point tile: rows == full x
        x_rows = x_full
    else:
        row0 = pl.multiple_of(pl.program_id(1) * tile_p, tile_p)
        x_rows = x_ref[0, pl.ds(row0, tile_p), :]

    agg = jnp.dot(adj_rows, x_full, preferred_element_type=jnp.float32)      # (tile_p, Kp)
    out = jnp.dot(x_rows, w1_ref[...], preferred_element_type=jnp.float32)   # fc1(x)
    out = out + jnp.dot(agg, w2_ref[...], preferred_element_type=jnp.float32)  # fc2(adj@x)
    out = out + b_ref[...]
    if has_res:
        out = out + r_ref[0]
    if relu:
        out = jnp.maximum(out, 0.0)
    o_ref[0] = out


def _interp_kernel(ids_ref, w_ref, f_ref, o_ref):
    """Bilinear sampling as one-hot(P,HW) @ feats(HW,C) on the MXU."""
    ids = ids_ref[0]                        # (tile_p, 4) int32 pixel ids
    w = w_ref[0]                            # (tile_p, 4) f32 bilinear weights
    feats = f_ref[0]                        # (HW, C)
    tile_p = ids.shape[0]
    hw = feats.shape[0]
    hw_iota = lax.broadcasted_iota(jnp.int32, (tile_p, hw), 1)
    s = jnp.zeros((tile_p, hw), jnp.float32)
    for k in range(4):                      # 4 bilinear neighbours (unrolled)
        onehot = (hw_iota == ids[:, k:k + 1]).astype(jnp.float32)
        s = s + onehot * w[:, k:k + 1]
    o_ref[0] = jnp.dot(s, feats, preferred_element_type=jnp.float32)


# ----------------------------- Pallas wrappers ------------------------------

def graph_conv(x, adj, gc, relu, residual=None):
    """x: (B, Pp, Kp), adj: (B, Pp, Pp), gc: dict(w1 (Kp,N), w2 (Kp,N), b (N,))."""
    B, Pp, Kp = x.shape
    N = gc['w1'].shape[1]
    grid = (B, Pp // TILE_P)

    args = [x, adj, gc['w1'], gc['w2'], gc['b'].reshape(1, N)]
    in_specs = [
        pl.BlockSpec((1, Pp, Kp), lambda b, j: (b, 0, 0)),        # full x (for adj@x)
        pl.BlockSpec((1, TILE_P, Pp), lambda b, j: (b, j, 0)),    # adjacency row tile
        pl.BlockSpec((Kp, N), lambda b, j: (0, 0)),               # W1 (resident)
        pl.BlockSpec((Kp, N), lambda b, j: (0, 0)),               # W2 (resident)
        pl.BlockSpec((1, N), lambda b, j: (0, 0)),                # bias
    ]
    if residual is not None:
        args.append(residual)
        in_specs.append(pl.BlockSpec((1, TILE_P, N), lambda b, j: (b, j, 0)))

    kernel = functools.partial(_graph_conv_kernel, relu=relu,
                               has_res=residual is not None, tile_p=TILE_P)
    return pl.pallas_call(
        kernel,
        out_shape=jax.ShapeDtypeStruct((B, Pp, N), jnp.float32),
        grid=grid,
        in_specs=in_specs,
        out_specs=pl.BlockSpec((1, TILE_P, N), lambda b, j: (b, j, 0)),
        compiler_params=pltpu.CompilerParams(
            dimension_semantics=("parallel", "parallel")),
    )(*args)


def interp_features(ids, wts, feats):
    """ids/wts: (B, Pp, 4), feats: (B, HW, C) -> (B, Pp, C)."""
    B, Pp, _ = ids.shape
    _, HW, C = feats.shape
    grid = (B, Pp // TILE_P)
    return pl.pallas_call(
        _interp_kernel,
        out_shape=jax.ShapeDtypeStruct((B, Pp, C), jnp.float32),
        grid=grid,
        in_specs=[
            pl.BlockSpec((1, TILE_P, 4), lambda b, j: (b, j, 0)),
            pl.BlockSpec((1, TILE_P, 4), lambda b, j: (b, j, 0)),
            pl.BlockSpec((1, HW, C), lambda b, j: (b, 0, 0)),
        ],
        out_specs=pl.BlockSpec((1, TILE_P, C), lambda b, j: (b, j, 0)),
        compiler_params=pltpu.CompilerParams(
            dimension_semantics=("parallel", "parallel")),
    )(ids, wts, feats)


# ------------------------------ JAX glue ops --------------------------------

def _bilinear_ids_weights(coords, H, W):
    """PyTorch interpolated_sum index/weight math (elementwise, tiny)."""
    X = coords[..., 0]
    Y = coords[..., 1]
    Xs = X * W                     # grid[1] == W
    Ys = Y * H                     # grid[0] == H
    X0 = jnp.floor(Xs)
    X1 = X0 + 1.0
    Y0 = jnp.floor(Ys)
    Y1 = Y0 + 1.0
    w00 = (X1 - Xs) * (Y1 - Ys)
    w01 = (X1 - Xs) * (Ys - Y0)
    w10 = (Xs - X0) * (Y1 - Ys)
    w11 = (Xs - X0) * (Ys - Y0)
    X0c = jnp.clip(X0, 0.0, W - 1)
    X1c = jnp.clip(X1, 0.0, W - 1)
    Y0c = jnp.clip(Y0, 0.0, H - 1)
    Y1c = jnp.clip(Y1, 0.0, H - 1)
    ids = jnp.stack([X0c + Y0c * W, X0c + Y1c * W,
                     X1c + Y0c * W, X1c + Y1c * W], axis=-1).astype(jnp.int32)
    wts = jnp.stack([w00, w01, w10, w11], axis=-1).astype(jnp.float32)
    return ids, wts


# ------------------------------- parameters ---------------------------------

def make_params(key, feat_dim=FEAT_CH + 2, state_dim=STATE_DIM,
                out_dim=OUT_DIM, layer_num=LAYER_NUM):
    """Synthetic params mirroring the module init: Linear W ~ N(0, 0.01), bias = 0.
    Weights are stored (in, out) and pre-padded along K to a lane multiple."""
    keys = iter(jax.random.split(key, 64))
    kp0 = _round_up(feat_dim, LANE)
    kp = _round_up(state_dim, LANE)

    def gc(in_dim, in_pad, n):
        w1 = jnp.zeros((in_pad, n), jnp.float32).at[:in_dim].set(
            0.01 * jax.random.normal(next(keys), (in_dim, n), jnp.float32))
        w2 = jnp.zeros((in_pad, n), jnp.float32).at[:in_dim].set(
            0.01 * jax.random.normal(next(keys), (in_dim, n), jnp.float32))
        b = jnp.zeros((n,), jnp.float32)      # fc1.bias + fc2.bias (both init 0)
        return dict(w1=w1, w2=w2, b=b)

    return dict(
        first=gc(feat_dim, kp0, state_dim),
        middle=[dict(a=gc(state_dim, kp, state_dim),
                     b=gc(state_dim, kp, state_dim))
                for _ in range(layer_num - 2)],
        last=gc(state_dim, kp, state_dim),
        fc_w=0.01 * jax.random.normal(next(keys), (state_dim, out_dim), jnp.float32),
        fc_b=jnp.zeros((out_dim,), jnp.float32),
    )


# -------------------------------- forward -----------------------------------

def deform_gnn_forward(params, features, base_point, adj, point_mask):
    """features: (B,C,H,W); base_point: (B,P,2) in [0,1];
    adj: (B,P,P); point_mask: (B,1,P,1)."""
    B, C, H, W = features.shape
    P = base_point.shape[1]
    HW = H * W
    Pp = _round_up(P, TILE_P)
    Kp0 = params['first']['w1'].shape[0]

    # (B, HW, C) feature table, HW index = x + y*W (matches the reference).
    feats = jnp.transpose(features.reshape(B, C, HW), (0, 2, 1)).astype(jnp.float32)

    # Pad points / adjacency once; stays padded through the whole GCN.
    # (Padded adjacency columns are zero, so padded rows never leak into real rows.)
    coords_p = jnp.zeros((B, Pp, 2), jnp.float32).at[:, :P].set(base_point)
    adj_p = jnp.zeros((B, Pp, Pp), jnp.float32).at[:, :P, :P].set(adj)

    # interpolated_sum: bilinear sampling of CNN features at the points (Pallas).
    ids, wts = _bilinear_ids_weights(coords_p, H, W)
    cnn_feature = interp_features(ids, wts, feats)               # (B, Pp, C)

    # input_feature = cat(cnn_feature, base_point), zero-padded to Kp0 lanes.
    x0 = (jnp.zeros((B, Pp, Kp0), jnp.float32)
          .at[:, :, :C].set(cnn_feature)
          .at[:, :, C:C + 2].set(coords_p))

    # GCN: first_gcn -> 6x GraphResConvolution -> last_gcn -> fc.
    h = graph_conv(x0, adj_p, params['first'], relu=True)
    for blk in params['middle']:
        y = graph_conv(h, adj_p, blk['a'], relu=True)
        h = graph_conv(y, adj_p, blk['b'], relu=True, residual=h)
    h = graph_conv(h, adj_p, params['last'], relu=True)

    gcn_pred = jnp.einsum('bpk,ko->bpo', h[:, :P], params['fc_w']) + params['fc_b']

    mask = jnp.squeeze(point_mask, axis=1)                       # (B, P, 1)
    pred_poly = base_point + gcn_pred[:, :, :2] * mask

    lap1 = base_point - jnp.einsum('bij,bjc->bic', adj, base_point)
    lap2 = pred_poly - jnp.einsum('bij,bjc->bic', adj, pred_poly)
    lap_energy = jnp.sqrt(((lap2 - lap1) ** 2 + 1e-10).sum(-1)).mean(-1)

    return {'laplacian_energy': lap_energy,
            'pred_points': pred_poly,
            'gcn_pred_points': gcn_pred}


# ---------------------------------- main -------------------------------------

def make_ring_adj(B, P):
    """Row-normalized ring adjacency (each point connected to its 2 neighbours)."""
    idx = jnp.arange(P)
    a = jnp.zeros((P, P), jnp.float32)
    a = a.at[idx, (idx + 1) % P].set(0.5)
    a = a.at[idx, (idx - 1) % P].set(0.5)
    return jnp.broadcast_to(a, (B, P, P))


if __name__ == "__main__":
    key = jax.random.PRNGKey(0)
    k_param, k_feat, k_pts, k_mask = jax.random.split(key, 4)

    B, C, H, W, P = 2, FEAT_CH, 16, 16, 96   # small, module-consistent shapes

    params = make_params(k_param)
    features = jax.random.normal(k_feat, (B, C, H, W), jnp.float32)
    base_point = jax.random.uniform(k_pts, (B, P, 2), jnp.float32, 0.05, 0.95)
    adj = make_ring_adj(B, P)
    point_mask = (jax.random.uniform(k_mask, (B, 1, P, 1)) > 0.1).astype(jnp.float32)

    fwd = jax.jit(deform_gnn_forward)
    out = fwd(params, features, base_point, adj, point_mask)
    jax.block_until_ready(out)

    assert out['pred_points'].shape == (B, P, 2)
    assert out['gcn_pred_points'].shape == (B, P, 2)
    assert out['laplacian_energy'].shape == (B,)
    assert bool(jnp.all(jnp.isfinite(out['pred_points'])))
    assert bool(jnp.all(jnp.isfinite(out['laplacian_energy'])))
    print("KERNEL_OK")
</pallas_src>

<mosaic_0001>
module attributes {stable_mosaic.version = 11 : i64} {
  func.func @_interp_kernel(%arg0: i32, %arg1: i32, %arg2: memref<1x128x4xi32, #tpu.memory_space<vmem>>, %arg3: memref<1x128x4xf32, #tpu.memory_space<vmem>>, %arg4: memref<1x256x128xf32, #tpu.memory_space<vmem>>, %arg5: memref<1x128x128xf32, #tpu.memory_space<vmem>>) attributes {dimension_semantics = [#tpu.dimension_semantics<parallel>, #tpu.dimension_semantics<parallel>], iteration_bounds = array<i64: 2, 1>, scalar_prefetch = 0 : i64, scratch_operands = 0 : i64, tpu.core_type = #tpu.core_type<tc>, window_params = [{transform_indices = @transform_0, window_bounds = array<i64: 1, 128, 4>}, {transform_indices = @transform_1, window_bounds = array<i64: 1, 128, 4>}, {transform_indices = @transform_2, window_bounds = array<i64: 1, 256, 128>}, {transform_indices = @transform_3, window_bounds = array<i64: 1, 128, 128>}]} {
    %c0 = arith.constant 0 : index
    %c0_0 = arith.constant 0 : index
    %c0_1 = arith.constant 0 : index
    %0 = vector.load %arg2[%c0, %c0_0, %c0_1] : memref<1x128x4xi32, #tpu.memory_space<vmem>>, vector<1x128x4xi32>
    %1 = vector.shape_cast %0 : vector<1x128x4xi32> to vector<128x4xi32>
    %c0_2 = arith.constant 0 : index
    %c0_3 = arith.constant 0 : index
    %c0_4 = arith.constant 0 : index
    %2 = vector.load %arg3[%c0_2, %c0_3, %c0_4] : memref<1x128x4xf32, #tpu.memory_space<vmem>>, vector<1x128x4xf32>
    %3 = vector.shape_cast %2 : vector<1x128x4xf32> to vector<128x4xf32>
    %c0_5 = arith.constant 0 : index
    %c0_6 = arith.constant 0 : index
    %c0_7 = arith.constant 0 : index
    %4 = vector.load %arg4[%c0_5, %c0_6, %c0_7] : memref<1x256x128xf32, #tpu.memory_space<vmem>>, vector<1x256x128xf32>
    %5 = vector.shape_cast %4 : vector<1x256x128xf32> to vector<256x128xf32>
    %6 = tpu.iota {dimensions = array<i32: 1>} : vector<128x256xi32>
    %cst = arith.constant 0.000000e+00 : f32
    %7 = vector.broadcast %cst : f32 to vector<128x256xf32>
    %8 = vector.extract_strided_slice %1 {offsets = [0, 0], sizes = [128, 1], strides = [1, 1]} : vector<128x4xi32> to vector<128x1xi32>
    %9 = vector.broadcast %8 : vector<128x1xi32> to vector<128x256xi32>
    %10 = arith.cmpi eq, %6, %9 : vector<128x256xi32>
    %11 = arith.extui %10 : vector<128x256xi1> to vector<128x256xi32>
    %12 = arith.sitofp %11 : vector<128x256xi32> to vector<128x256xf32>
    %13 = vector.extract_strided_slice %3 {offsets = [0, 0], sizes = [128, 1], strides = [1, 1]} : vector<128x4xf32> to vector<128x1xf32>
    %14 = vector.broadcast %13 : vector<128x1xf32> to vector<128x256xf32>
    %15 = arith.mulf %12, %14 : vector<128x256xf32>
    %16 = arith.addf %7, %15 : vector<128x256xf32>
    %17 = vector.extract_strided_slice %1 {offsets = [0, 1], sizes = [128, 1], strides = [1, 1]} : vector<128x4xi32> to vector<128x1xi32>
    %18 = vector.broadcast %17 : vector<128x1xi32> to vector<128x256xi32>
    %19 = arith.cmpi eq, %6, %18 : vector<128x256xi32>
    %20 = arith.extui %19 : vector<128x256xi1> to vector<128x256xi32>
    %21 = arith.sitofp %20 : vector<128x256xi32> to vector<128x256xf32>
    %22 = vector.extract_strided_slice %3 {offsets = [0, 1], sizes = [128, 1], strides = [1, 1]} : vector<128x4xf32> to vector<128x1xf32>
    %23 = vector.broadcast %22 : vector<128x1xf32> to vector<128x256xf32>
    %24 = arith.mulf %21, %23 : vector<128x256xf32>
    %25 = arith.addf %16, %24 : vector<128x256xf32>
    %26 = vector.extract_strided_slice %1 {offsets = [0, 2], sizes = [128, 1], strides = [1, 1]} : vector<128x4xi32> to vector<128x1xi32>
    %27 = vector.broadcast %26 : vector<128x1xi32> to vector<128x256xi32>
    %28 = arith.cmpi eq, %6, %27 : vector<128x256xi32>
    %29 = arith.extui %28 : vector<128x256xi1> to vector<128x256xi32>
    %30 = arith.sitofp %29 : vector<128x256xi32> to vector<128x256xf32>
    %31 = vector.extract_strided_slice %3 {offsets = [0, 2], sizes = [128, 1], strides = [1, 1]} : vector<128x4xf32> to vector<128x1xf32>
    %32 = vector.broadcast %31 : vector<128x1xf32> to vector<128x256xf32>
    %33 = arith.mulf %30, %32 : vector<128x256xf32>
    %34 = arith.addf %25, %33 : vector<128x256xf32>
    %35 = vector.extract_strided_slice %1 {offsets = [0, 3], sizes = [128, 1], strides = [1, 1]} : vector<128x4xi32> to vector<128x1xi32>
    %36 = vector.broadcast %35 : vector<128x1xi32> to vector<128x256xi32>
    %37 = arith.cmpi eq, %6, %36 : vector<128x256xi32>
    %38 = arith.extui %37 : vector<128x256xi1> to vector<128x256xi32>
    %39 = arith.sitofp %38 : vector<128x256xi32> to vector<128x256xf32>
    %40 = vector.extract_strided_slice %3 {offsets = [0, 3], sizes = [128, 1], strides = [1, 1]} : vector<128x4xf32> to vector<128x1xf32>
    %41 = vector.broadcast %40 : vector<128x1xf32> to vector<128x256xf32>
    %42 = arith.mulf %39, %41 : vector<128x256xf32>
    %43 = arith.addf %34, %42 : vector<128x256xf32>
    %cst_8 = arith.constant dense<0.000000e+00> : vector<128x128xf32>
    %44 = tpu.matmul %43, %5, %cst_8 {dimension_numbers = #tpu.dot_dimension_numbers<[1], [0], [0], [1], [0, 0, 1, 1], [], []>} : vector<128x256xf32>, vector<256x128xf32>, vector<128x128xf32> -> vector<128x128xf32>
    %c0_9 = arith.constant 0 : index
    %c0_10 = arith.constant 0 : index
    %c0_11 = arith.constant 0 : index
    %45 = vector.load %arg5[%c0_9, %c0_10, %c0_11] : memref<1x128x128xf32, #tpu.memory_space<vmem>>, vector<1x128x128xf32>
    %46 = vector.shape_cast %45 : vector<1x128x128xf32> to vector<128x128xf32>
    %47 = vector.shape_cast %44 : vector<128x128xf32> to vector<1x128x128xf32>
    tpu.vector_store %arg5[%c0_9, %c0_10, %c0_11], %47 {strides = array<i32>} : memref<1x128x128xf32, #tpu.memory_space<vmem>>, vector<1x128x128xf32>,
    return
  }
  func.func @transform_0(%arg0: i32, %arg1: i32) -> (i32, i32, i32) {
    %c0_i32 = arith.constant 0 : i32
    %c0_i32_0 = arith.constant 0 : i32
    return %arg0, %arg1, %c0_i32 : i32, i32, i32
  }
  func.func @transform_1(%arg0: i32, %arg1: i32) -> (i32, i32, i32) {
    %c0_i32 = arith.constant 0 : i32
    %c0_i32_0 = arith.constant 0 : i32
    return %arg0, %arg1, %c0_i32 : i32, i32, i32
  }
  func.func @transform_2(%arg0: i32, %arg1: i32) -> (i32, i32, i32) {
    %c0_i32 = arith.constant 0 : i32
    %c0_i32_0 = arith.constant 0 : i32
    %c0_i32_1 = arith.constant 0 : i32
    return %arg0, %c0_i32, %c0_i32_0 : i32, i32, i32
  }
  func.func @transform_3(%arg0: i32, %arg1: i32) -> (i32, i32, i32) {
    %c0_i32 = arith.constant 0 : i32
    %c0_i32_0 = arith.constant 0 : i32
    return %arg0, %arg1, %c0_i32 : i32, i32, i32
  }
}

module attributes {stable_mosaic.version = 11 : i64} {
  func.func @_graph_conv_kernel(%arg0: i32, %arg1: i32, %arg2: memref<1x128x256xf32, #tpu.memory_space<vmem>>, %arg3: memref<1x128x128xf32, #tpu.memory_space<vmem>>, %arg4: memref<256x256xf32, #tpu.memory_space<vmem>>, %arg5: memref<256x256xf32, #tpu.memory_space<vmem>>, %arg6: memref<1x256xf32, #tpu.memory_space<vmem>>, %arg7: memref<1x128x256xf32, #tpu.memory_space<vmem>>) attributes {dimension_semantics = [#tpu.dimension_semantics<parallel>, #tpu.dimension_semantics<parallel>], iteration_bounds = array<i64: 2, 1>, scalar_prefetch = 0 : i64, scratch_operands = 0 : i64, tpu.core_type = #tpu.core_type<tc>, window_params = [{transform_indices = @transform_0, window_bounds = array<i64: 1, 128, 256>}, {transform_indices = @transform_1, window_bounds = array<i64: 1, 128, 128>}, {pipeline_mode = #tpu.pipeline_mode<synchronous>, transform_indices = @transform_2, window_bounds = array<i64: 256, 256>}, {pipeline_mode = #tpu.pipeline_mode<synchronous>, transform_indices = @transform_3, window_bounds = array<i64: 256, 256>}, {pipeline_mode = #tpu.pipeline_mode<synchronous>, transform_indices = @transform_4, window_bounds = array<i64: 1, 256>}, {transform_indices = @transform_5, window_bounds = array<i64: 1, 128, 256>}]} {
    %c0 = arith.constant 0 : index
    %c0_0 = arith.constant 0 : index
    %c0_1 = arith.constant 0 : index
    %0 = vector.load %arg2[%c0, %c0_0, %c0_1] : memref<1x128x256xf32, #tpu.memory_space<vmem>>, vector<1x128x256xf32>
    %1 = vector.shape_cast %0 : vector<1x128x256xf32> to vector<128x256xf32>
    %c0_2 = arith.constant 0 : index
    %c0_3 = arith.constant 0 : index
    %c0_4 = arith.constant 0 : index
    %2 = vector.load %arg3[%c0_2, %c0_3, %c0_4] : memref<1x128x128xf32, #tpu.memory_space<vmem>>, vector<1x128x128xf32>
    %3 = vector.shape_cast %2 : vector<1x128x128xf32> to vector<128x128xf32>
    %cst = arith.constant dense<0.000000e+00> : vector<128x256xf32>
    %4 = tpu.matmul %3, %1, %cst {dimension_numbers = #tpu.dot_dimension_numbers<[1], [0], [0], [1], [0, 0, 1, 1], [], []>} : vector<128x128xf32>, vector<128x256xf32>, vector<128x256xf32> -> vector<128x256xf32>
    %c0_5 = arith.constant 0 : index
    %c0_6 = arith.constant 0 : index
    %5 = vector.load %arg4[%c0_5, %c0_6] : memref<256x256xf32, #tpu.memory_space<vmem>>, vector<256x256xf32>
    %cst_7 = arith.constant dense<0.000000e+00> : vector<128x256xf32>
    %6 = tpu.matmul %1, %5, %cst_7 {dimension_numbers = #tpu.dot_dimension_numbers<[1], [0], [0], [1], [0, 0, 1, 1], [], []>} : vector<128x256xf32>, vector<256x256xf32>, vector<128x256xf32> -> vector<128x256xf32>
    %c0_8 = arith.constant 0 : index
    %c0_9 = arith.constant 0 : index
    %7 = vector.load %arg5[%c0_8, %c0_9] : memref<256x256xf32, #tpu.memory_space<vmem>>, vector<256x256xf32>
    %cst_10 = arith.constant dense<0.000000e+00> : vector<128x256xf32>
    %8 = tpu.matmul %4, %7, %cst_10 {dimension_numbers = #tpu.dot_dimension_numbers<[1], [0], [0], [1], [0, 0, 1, 1], [], []>} : vector<128x256xf32>, vector<256x256xf32>, vector<128x256xf32> -> vector<128x256xf32>
    %9 = arith.addf %6, %8 : vector<128x256xf32>
    %c0_11 = arith.constant 0 : index
    %c0_12 = arith.constant 0 : index
    %10 = vector.load %arg6[%c0_11, %c0_12] : memref<1x256xf32, #tpu.memory_space<vmem>>, vector<1x256xf32>
    %11 = vector.broadcast %10 : vector<1x256xf32> to vector<128x256xf32>
    %12 = arith.addf %9, %11 : vector<128x256xf32>
    %cst_13 = arith.constant 0.000000e+00 : f32
    %13 = vector.broadcast %cst_13 : f32 to vector<128x256xf32>
    %14 = arith.maximumf %12, %13 : vector<128x256xf32>
    %c0_14 = arith.constant 0 : index
    %c0_15 = arith.constant 0 : index
    %c0_16 = arith.constant 0 : index
    %15 = vector.load %arg7[%c0_14, %c0_15, %c0_16] : memref<1x128x256xf32, #tpu.memory_space<vmem>>, vector<1x128x256xf32>
    %16 = vector.shape_cast %15 : vector<1x128x256xf32> to vector<128x256xf32>
    %17 = vector.shape_cast %14 : vector<128x256xf32> to vector<1x128x256xf32>
    tpu.vector_store %arg7[%c0_14, %c0_15, %c0_16], %17 {strides = array<i32>} : memref<1x128x256xf32, #tpu.memory_space<vmem>>, vector<1x128x256xf32>,
    return
  }
  func.func @transform_0(%arg0: i32, %arg1: i32) -> (i32, i32, i32) {
    %c0_i32 = arith.constant 0 : i32
    %c0_i32_0 = arith.constant 0 : i32
    %c0_i32_1 = arith.constant 0 : i32
    return %arg0, %c0_i32, %c0_i32_0 : i32, i32, i32
  }
  func.func @transform_1(%arg0: i32, %arg1: i32) -> (i32, i32, i32) {
    %c0_i32 = arith.constant 0 : i32
    %c0_i32_0 = arith.constant 0 : i32
    return %arg0, %arg1, %c0_i32 : i32, i32, i32
  }
  func.func @transform_2(%arg0: i32, %arg1: i32) -> (i32, i32) {
    %c0_i32 = arith.constant 0 : i32
    %c0_i32_0 = arith.constant 0 : i32
    %c0_i32_1 = arith.constant 0 : i32
    return %c0_i32, %c0_i32_0 : i32, i32
  }
  func.func @transform_3(%arg0: i32, %arg1: i32) -> (i32, i32) {
    %c0_i32 = arith.constant 0 : i32
    %c0_i32_0 = arith.constant 0 : i32
    %c0_i32_1 = arith.constant 0 : i32
    return %c0_i32, %c0_i32_0 : i32, i32
  }
  func.func @transform_4(%arg0: i32, %arg1: i32) -> (i32, i32) {
    %c0_i32 = arith.constant 0 : i32
    %c0_i32_0 = arith.constant 0 : i32
    %c0_i32_1 = arith.constant 0 : i32
    return %c0_i32, %c0_i32_0 : i32, i32
  }
  func.func @transform_5(%arg0: i32, %arg1: i32) -> (i32, i32, i32) {
    %c0_i32 = arith.constant 0 : i32
    %c0_i32_0 = arith.constant 0 : i32
    return %arg0, %arg1, %c0_i32 : i32, i32, i32
  }
}

module attributes {stable_mosaic.version = 11 : i64} {
  func.func @_graph_conv_kernel(%arg0: i32, %arg1: i32, %arg2: memref<1x128x256xf32, #tpu.memory_space<vmem>>, %arg3: memref<1x128x128xf32, #tpu.memory_space<vmem>>, %arg4: memref<256x256xf32, #tpu.memory_space<vmem>>, %arg5: memref<256x256xf32, #tpu.memory_space<vmem>>, %arg6: memref<1x256xf32, #tpu.memory_space<vmem>>, %arg7: memref<1x128x256xf32, #tpu.memory_space<vmem>>, %arg8: memref<1x128x256xf32, #tpu.memory_space<vmem>>) attributes {dimension_semantics = [#tpu.dimension_semantics<parallel>, #tpu.dimension_semantics<parallel>], iteration_bounds = array<i64: 2, 1>, scalar_prefetch = 0 : i64, scratch_operands = 0 : i64, tpu.core_type = #tpu.core_type<tc>, window_params = [{transform_indices = @transform_0, window_bounds = array<i64: 1, 128, 256>}, {transform_indices = @transform_1, window_bounds = array<i64: 1, 128, 128>}, {pipeline_mode = #tpu.pipeline_mode<synchronous>, transform_indices = @transform_2, window_bounds = array<i64: 256, 256>}, {pipeline_mode = #tpu.pipeline_mode<synchronous>, transform_indices = @transform_3, window_bounds = array<i64: 256, 256>}, {pipeline_mode = #tpu.pipeline_mode<synchronous>, transform_indices = @transform_4, window_bounds = array<i64: 1, 256>}, {transform_indices = @transform_5, window_bounds = array<i64: 1, 128, 256>}, {transform_indices = @transform_6, window_bounds = array<i64: 1, 128, 256>}]} {
    %c0 = arith.constant 0 : index
    %c0_0 = arith.constant 0 : index
    %c0_1 = arith.constant 0 : index
    %0 = vector.load %arg2[%c0, %c0_0, %c0_1] : memref<1x128x256xf32, #tpu.memory_space<vmem>>, vector<1x128x256xf32>
    %1 = vector.shape_cast %0 : vector<1x128x256xf32> to vector<128x256xf32>
    %c0_2 = arith.constant 0 : index
    %c0_3 = arith.constant 0 : index
    %c0_4 = arith.constant 0 : index
    %2 = vector.load %arg3[%c0_2, %c0_3, %c0_4] : memref<1x128x128xf32, #tpu.memory_space<vmem>>, vector<1x128x128xf32>
    %3 = vector.shape_cast %2 : vector<1x128x128xf32> to vector<128x128xf32>
    %cst = arith.constant dense<0.000000e+00> : vector<128x256xf32>
    %4 = tpu.matmul %3, %1, %cst {dimension_numbers = #tpu.dot_dimension_numbers<[1], [0], [0], [1], [0, 0, 1, 1], [], []>} : vector<128x128xf32>, vector<128x256xf32>, vector<128x256xf32> -> vector<128x256xf32>
    %c0_5 = arith.constant 0 : index
    %c0_6 = arith.constant 0 : index
    %5 = vector.load %arg4[%c0_5, %c0_6] : memref<256x256xf32, #tpu.memory_space<vmem>>, vector<256x256xf32>
    %cst_7 = arith.constant dense<0.000000e+00> : vector<128x256xf32>
    %6 = tpu.matmul %1, %5, %cst_7 {dimension_numbers = #tpu.dot_dimension_numbers<[1], [0], [0], [1], [0, 0, 1, 1], [], []>} : vector<128x256xf32>, vector<256x256xf32>, vector<128x256xf32> -> vector<128x256xf32>
    %c0_8 = arith.constant 0 : index
    %c0_9 = arith.constant 0 : index
    %7 = vector.load %arg5[%c0_8, %c0_9] : memref<256x256xf32, #tpu.memory_space<vmem>>, vector<256x256xf32>
    %cst_10 = arith.constant dense<0.000000e+00> : vector<128x256xf32>
    %8 = tpu.matmul %4, %7, %cst_10 {dimension_numbers = #tpu.dot_dimension_numbers<[1], [0], [0], [1], [0, 0, 1, 1], [], []>} : vector<128x256xf32>, vector<256x256xf32>, vector<128x256xf32> -> vector<128x256xf32>
    %9 = arith.addf %6, %8 : vector<128x256xf32>
    %c0_11 = arith.constant 0 : index
    %c0_12 = arith.constant 0 : index
    %10 = vector.load %arg6[%c0_11, %c0_12] : memref<1x256xf32, #tpu.memory_space<vmem>>, vector<1x256xf32>
    %11 = vector.broadcast %10 : vector<1x256xf32> to vector<128x256xf32>
    %12 = arith.addf %9, %11 : vector<128x256xf32>
    %c0_13 = arith.constant 0 : index
    %c0_14 = arith.constant 0 : index
    %c0_15 = arith.constant 0 : index
    %13 = vector.load %arg7[%c0_13, %c0_14, %c0_15] : memref<1x128x256xf32, #tpu.memory_space<vmem>>, vector<1x128x256xf32>
    %14 = vector.shape_cast %13 : vector<1x128x256xf32> to vector<128x256xf32>
    %15 = arith.addf %12, %14 : vector<128x256xf32>
    %cst_16 = arith.constant 0.000000e+00 : f32
    %16 = vector.broadcast %cst_16 : f32 to vector<128x256xf32>
    %17 = arith.maximumf %15, %16 : vector<128x256xf32>
    %c0_17 = arith.constant 0 : index
    %c0_18 = arith.constant 0 : index
    %c0_19 = arith.constant 0 : index
    %18 = vector.load %arg8[%c0_17, %c0_18, %c0_19] : memref<1x128x256xf32, #tpu.memory_space<vmem>>, vector<1x128x256xf32>
    %19 = vector.shape_cast %18 : vector<1x128x256xf32> to vector<128x256xf32>
    %20 = vector.shape_cast %17 : vector<128x256xf32> to vector<1x128x256xf32>
    tpu.vector_store %arg8[%c0_17, %c0_18, %c0_19], %20 {strides = array<i32>} : memref<1x128x256xf32, #tpu.memory_space<vmem>>, vector<1x128x256xf32>,
    return
  }
  func.func @transform_0(%arg0: i32, %arg1: i32) -> (i32, i32, i32) {
    %c0_i32 = arith.constant 0 : i32
    %c0_i32_0 = arith.constant 0 : i32
    %c0_i32_1 = arith.constant 0 : i32
    return %arg0, %c0_i32, %c0_i32_0 : i32, i32, i32
  }
  func.func @transform_1(%arg0: i32, %arg1: i32) -> (i32, i32, i32) {
    %c0_i32 = arith.constant 0 : i32
    %c0_i32_0 = arith.constant 0 : i32
    return %arg0, %arg1, %c0_i32 : i32, i32, i32
  }
  func.func @transform_2(%arg0: i32, %arg1: i32) -> (i32, i32) {
    %c0_i32 = arith.constant 0 : i32
    %c0_i32_0 = arith.constant 0 : i32
    %c0_i32_1 = arith.constant 0 : i32
    return %c0_i32, %c0_i32_0 : i32, i32
  }
  func.func @transform_3(%arg0: i32, %arg1: i32) -> (i32, i32) {
    %c0_i32 = arith.constant 0 : i32
    %c0_i32_0 = arith.constant 0 : i32
    %c0_i32_1 = arith.constant 0 : i32
    return %c0_i32, %c0_i32_0 : i32, i32
  }
  func.func @transform_4(%arg0: i32, %arg1: i32) -> (i32, i32) {
    %c0_i32 = arith.constant 0 : i32
    %c0_i32_0 = arith.constant 0 : i32
    %c0_i32_1 = arith.constant 0 : i32
    return %c0_i32, %c0_i32_0 : i32, i32
  }
  func.func @transform_5(%arg0: i32, %arg1: i32) -> (i32, i32, i32) {
    %c0_i32 = arith.constant 0 : i32
    %c0_i32_0 = arith.constant 0 : i32
    return %arg0, %arg1, %c0_i32 : i32, i32, i32
  }
  func.func @transform_6(%arg0: i32, %arg1: i32) -> (i32, i32, i32) {
    %c0_i32 = arith.constant 0 : i32
    %c0_i32_0 = arith.constant 0 : i32
    return %arg0, %arg1, %c0_i32 : i32, i32, i32
  }
}

</mosaic_0001>

<llo_original>
// kernel: deform_gnn_forward.15
$region0: #{deform_gnn_forward.15}
  #allocation0 [shape = 'u32[]', space=smem, size = 0x4, offset = 0x4, fixed_abs, tag = 'smem constant byte address 0x4 - core index']
  #allocation1 [shape = 'u32[144,128]{1,0:T(1,128)}', space=vmem, size = 0x12000, scoped, tag = 'internal scratch']
  %s0 = inlined_call_operand.vmem [shape: s32[2,128,4], index: 0, kind: input, shape index: {}]
  %s1 = inlined_call_operand.vmem [shape: f32[2,128,4], index: 1, kind: input, shape index: {}]
  %s2 = inlined_call_operand.vmem [shape: f32[2,256,128], index: 2, kind: input, shape index: {}]
  %s3 = inlined_call_operand.vmem [shape: f32[2,128,128], index: 3, kind: output, shape index: {}]
  %s4 = sld [smem:[#allocation0]]
  $region45: #{deform_gnn_forward.15} parent=0
    _
  %s6 = ssub.s32 1, %s4
  %s7 = scalar_select 0, %s6, %s4
  loop: start=0, step=1, limit=4
  $region2: #{deform_gnn_forward.15} parent=0 // loop_pre_header
    _
  $region3: #{deform_gnn_forward.15} parent=0 // loop_header
    %s9 = sphi 0, %s13
    %p10 = scmp.ge.s32.totalorder %s9, 4
    %s16 = sphi 0, %s28
    %s17 = sphi 0, %s24
    %s18 = sphi 0, %s16
    %s19 = sphi 0, %s17
    %s20 = sphi 0, %s18
    %s21 = sphi 0, %s19
    %s33 = sphi 0, %s35
    %s36 = sphi 0, %s33
    %s37 = sphi 0, %s36
    %s53 = sphi 0, %s37
    %s61 = sphi 0, %s63
    %s64 = sphi 0, %s61
    %s65 = sphi 0, %s64
    %s81 = sphi 0, %s65
    %s87 = sphi 0, %s89
    %s90 = sphi 0, %s87
    %s91 = sphi 0, %s90
    %s107 = sphi 0, %s91
    %s115 = sphi 0, %s117
    %s118 = sphi 0, %s115
    %s119 = sphi 0, %s118
    %s135 = sphi 0, %s119
  $region4: #{deform_gnn_forward.15} parent=0 // loop_header_branch
    %12 = sbr.rel (%p10) target = $region8
  $region5: #{deform_gnn_forward.15} parent=0 // loop_body
    %s14 = ssub.s32 %s9, 1
    %s15 = ssub.s32 %s9, 2
    %s22 = sadd.s32 1, %s17
    %p23 = scmp.ge.s32.totalorder %s22, 1
    %s24 = scalar_select %p23, 0, %s22
    %s25 = sadd.s32 1, %s16
    %s26 = scalar_select %p23, %s25, %s16
    %p27 = scmp.ge.s32.totalorder %s26, 2
    %s28 = scalar_select %p27, 0, %s26
    %s29 = ssub.s32 %s16, %s28
    %s30 = ssub.s32 %s17, %s24
    %s31 = sor.u32 %s29, %s30
    %p32 = scmp.eq.s32.totalorder %s31, 0
    %s34 = sadd.s32 %s33, 1
    %s35 = scalar_select %p32, %s33, %s34
    %p38 = pneg %p32
    %p39 = scmp.eq.s32.totalorder %s9, 1
    %p40 = por %p38, %p39
    %p41 = scmp.ne.s32.totalorder %s33, %s36
    %p42 = scmp.eq.s32.totalorder %s9, 0
    %p43 = por %p41, %p42
    %p44 = scmp.ne.s32.totalorder %s33, %s36
    %p45 = scmp.eq.s32.totalorder %s14, 1
    %p46 = por %p44, %p45
    %p47 = scmp.ne.s32.totalorder %s36, %s37
    %p48 = scmp.eq.s32.totalorder %s14, 0
    %p49 = por %p47, %p48
    %p50 = scmp.ne.s32.totalorder %s36, %s37
    %p51 = scmp.eq.s32.totalorder %s15, 1
    %p52 = por %p50, %p51
    %p54 = scmp.ne.s32.totalorder %s37, %s53
    %p55 = scmp.eq.s32.totalorder %s15, 0
    %p56 = por %p54, %p55
    %s57 = ssub.s32 %s16, %s28
    %s58 = ssub.s32 %s17, %s24
    %s59 = sor.u32 %s57, %s58
    %p60 = scmp.eq.s32.totalorder %s59, 0
    %s62 = sadd.s32 %s61, 1
    %s63 = scalar_select %p60, %s61, %s62
    %p66 = pneg %p60
    %p67 = scmp.eq.s32.totalorder %s9, 1
    %p68 = por %p66, %p67
    %p69 = scmp.ne.s32.totalorder %s61, %s64
    %p70 = scmp.eq.s32.totalorder %s9, 0
    %p71 = por %p69, %p70
    %p72 = scmp.ne.s32.totalorder %s61, %s64
    %p73 = scmp.eq.s32.totalorder %s14, 1
    %p74 = por %p72, %p73
    %p75 = scmp.ne.s32.totalorder %s64, %s65
    %p76 = scmp.eq.s32.totalorder %s14, 0
    %p77 = por %p75, %p76
    %p78 = scmp.ne.s32.totalorder %s64, %s65
    %p79 = scmp.eq.s32.totalorder %s15, 1
    %p80 = por %p78, %p79
    %p82 = scmp.ne.s32.totalorder %s65, %s81
    %p83 = scmp.eq.s32.totalorder %s15, 0
    %p84 = por %p82, %p83
    %s85 = ssub.s32 %s16, %s28
    %p86 = scmp.eq.s32.totalorder %s85, 0
    %s88 = sadd.s32 %s87, 1
    %s89 = scalar_select %p86, %s87, %s88
    %p92 = pneg %p86
    %p93 = scmp.eq.s32.totalorder %s9, 1
    %p94 = por %p92, %p93
    %p95 = scmp.ne.s32.totalorder %s87, %s90
    %p96 = scmp.eq.s32.totalorder %s9, 0
    %p97 = por %p95, %p96
    %p98 = scmp.ne.s32.totalorder %s87, %s90
    %p99 = scmp.eq.s32.totalorder %s14, 1
    %p100 = por %p98, %p99
    %p101 = scmp.ne.s32.totalorder %s90, %s91
    %p102 = scmp.eq.s32.totalorder %s14, 0
    %p103 = por %p101, %p102
    %p104 = scmp.ne.s32.totalorder %s90, %s91
    %p105 = scmp.eq.s32.totalorder %s15, 1
    %p106 = por %p104, %p105
    %p108 = scmp.ne.s32.totalorder %s91, %s107
    %p109 = scmp.eq.s32.totalorder %s15, 0
    %p110 = por %p108, %p109
    %s111 = ssub.s32 %s16, %s28
    %s112 = ssub.s32 %s17, %s24
    %s113 = sor.u32 %s111, %s112
    %p114 = scmp.eq.s32.totalorder %s113, 0
    %s116 = sadd.s32 %s115, 1
    %s117 = scalar_select %p114, %s115, %s116
    %p120 = pneg %p114
    %p121 = scmp.eq.s32.totalorder %s9, 1
    %p122 = por %p120, %p121
    %p123 = scmp.ne.s32.totalorder %s115, %s118
    %p124 = scmp.eq.s32.totalorder %s9, 0
    %p125 = por %p123, %p124
    %p126 = scmp.ne.s32.totalorder %s115, %s118
    %p127 = scmp.eq.s32.totalorder %s14, 1
    %p128 = por %p126, %p127
    %p129 = scmp.ne.s32.totalorder %s118, %s119
    %p130 = scmp.eq.s32.totalorder %s14, 0
    %p131 = por %p129, %p130
    %p132 = scmp.ne.s32.totalorder %s118, %s119
    %p133 = scmp.eq.s32.totalorder %s15, 1
    %p134 = por %p132, %p133
    %p136 = scmp.ne.s32.totalorder %s119, %s135
    %p137 = scmp.eq.s32.totalorder %s15, 0
    %p138 = por %p136, %p137
    %p139 = scmp.le.s32.totalorder 1, %s9
    %p140 = scmp.lt.s32.totalorder %s9, 3
    %p141 = pnand %p139, %p140
    %p142 = pneg %p141
    // Predicated region
    $region9: #{deform_gnn_forward.15} parent=5 // pred_check
      _
    $region10: #{deform_gnn_forward.15} parent=5 // pred_check_branch
      %144 = sbr.rel (%p141) target = $region12
    $region11: #{deform_gnn_forward.15} parent=5 // pred_region
      %s145 = ssub.s32 %s9, 1
    $region12: #{deform_gnn_forward.15} parent=5 // pred_fallthru
      _
    %p146 = scmp.lt.s32.totalorder %s9, 2
    // Predicated region
    $region13: #{deform_gnn_forward.15} parent=5 // pred_check
      %p147 = pneg %p146
    $region14: #{deform_gnn_forward.15} parent=5 // pred_check_branch
      %149 = sbr.rel (%p147) target = $region16
    $region15: #{deform_gnn_forward.15} parent=5 // pred_region
      // Predicated region
      $region17: #{deform_gnn_forward.15} parent=15 // pred_check
        %p150 = pneg %p43
      $region18: #{deform_gnn_forward.15} parent=15 // pred_check_branch
        %152 = sbr.rel (%p150) target = $region20
      $region19: #{deform_gnn_forward.15} parent=15 // pred_region
        %s153 = smul.u32 16, %s17
        %p154 = scmp.lt.s32.totalorder %s16, 1
        %s155 = scalar_select %p154, %s16, 1
        %p156 = scmp.lt.s32.totalorder %s153, 15
        %s157 = scalar_select %p156, %s153, 15
        %s158 = smul.addr %s155, 16
        %s159 = sadd.s32 %s157, %s158
        %s160 = smul.addr %s159, 8
        %s161 = scalar_lea.vmem %s0, %s160
        %s162 = smul.u32 16, %s17
      $region20: #{deform_gnn_forward.15} parent=15 // pred_fallthru
        _
      // Predicated region
      $region21: #{deform_gnn_forward.15} parent=15 // pred_check
        %p163 = pneg %p71
      $region22: #{deform_gnn_forward.15} parent=15 // pred_check_branch
        %165 = sbr.rel (%p163) target = $region24
      $region23: #{deform_gnn_forward.15} parent=15 // pred_region
        %s166 = smul.u32 16, %s17
        %p167 = scmp.lt.s32.totalorder %s16, 1
        %s168 = scalar_select %p167, %s16, 1
        %p169 = scmp.lt.s32.totalorder %s166, 15
        %s170 = scalar_select %p169, %s166, 15
        %s171 = smul.addr %s168, 16
        %s172 = sadd.s32 %s170, %s171
        %s173 = smul.addr %s172, 8
        %s174 = scalar_lea.vmem %s1, %s173
        %s175 = smul.u32 16, %s17
      $region24: #{deform_gnn_forward.15} parent=15 // pred_fallthru
        _
      // Predicated region
      $region25: #{deform_gnn_forward.15} parent=15 // pred_check
        %p176 = pneg %p97
      $region26: #{deform_gnn_forward.15} parent=15 // pred_check_branch
        %178 = sbr.rel (%p176) target = $region28
      $region27: #{deform_gnn_forward.15} parent=15 // pred_region
        %p179 = scmp.lt.s32.totalorder %s16, 1
        %s180 = scalar_select %p179, %s16, 1
        %s181 = smul.addr %s180, 32
        %s182 = smul.addr %s181, 8
        %s183 = scalar_lea.vmem %s2, %s182
      $region28: #{deform_gnn_forward.15} parent=15 // pred_fallthru
        _
    $region16: #{deform_gnn_forward.15} parent=5 // pred_fallthru
      _
    %p184 = scmp.le.s32.totalorder 1, %s9
    %p185 = scmp.lt.s32.totalorder %s9, 3
    %p186 = pnand %p184, %p185
    %p187 = pneg %p186
    // Predicated region
    $region29: #{deform_gnn_forward.15} parent=5 // pred_check
      _
    $region30: #{deform_gnn_forward.15} parent=5 // pred_check_branch
      %189 = sbr.rel (%p186) target = $region32
    $region31: #{deform_gnn_forward.15} parent=5 // pred_region
      %s190 = ssub.s32 %s9, 1
      %s191 = smul.u32 16, %s19
      %p192 = scmp.lt.s32.totalorder %s18, 1
      %s193 = scalar_select %p192, %s18, 1
      %p194 = scmp.lt.s32.totalorder %s191, 15
      %s195 = scalar_select %p194, %s191, 15
      %s196 = smul.addr %s193, 16
      %s197 = sadd.s32 %s195, %s196
      %s198 = smul.addr %s197, 8
      %s199 = scalar_lea.vmem %s0, %s198
      %p200 = pneg %p49
      %p201 = pneg %p46
      %s202 = smul.u32 16, %s19
      %p203 = scmp.lt.s32.totalorder %s18, 1
      %s204 = scalar_select %p203, %s18, 1
      %p205 = scmp.lt.s32.totalorder %s202, 15
      %s206 = scalar_select %p205, %s202, 15
      %s207 = smul.addr %s204, 16
      %s208 = sadd.s32 %s206, %s207
      %s209 = smul.addr %s208, 8
      %s210 = scalar_lea.vmem %s1, %s209
      %p211 = pneg %p77
      %p212 = pneg %p74
      %p213 = scmp.lt.s32.totalorder %s18, 1
      %s214 = scalar_select %p213, %s18, 1
      %s215 = smul.addr %s214, 32
      %s216 = smul.addr %s215, 8
      %s217 = scalar_lea.vmem %s2, %s216
      %p218 = pneg %p103
      %p219 = pneg %p100
      %p220 = pneg %p131
      %p221 = pneg %p128
      %s222 = smul.u32 16, %s19
      %p223 = scmp.lt.s32.totalorder %s18, 1
      %s224 = scalar_select %p223, %s18, 1
      %p225 = scmp.lt.s32.totalorder %s222, 15
      %s226 = scalar_select %p225, %s222, 15
      %s227 = smul.addr %s224, 16
      %s228 = sadd.s32 %s226, %s227
      %s229 = smul.addr %s228, 8
      %s230 = scalar_lea.vmem %s3, %s229
      %s231 = smul.u32 16, %s19
      %p232 = scmp.lt.s32.totalorder %s18, 1
      %s233 = scalar_select %p232, %s18, 1
      %p234 = scmp.lt.s32.totalorder %s231, 15
      %s235 = scalar_select %p234, %s231, 15
      %s236 = smul.addr %s233, 16
      %s237 = sadd.s32 %s235, %s236
      %s238 = smul.addr %s237, 8
      %s239 = scalar_lea.vmem %s0, %s238
      %s240 = smul.u32 16, %s19
      %s241 = smul.u32 16, %s19
      %p242 = scmp.lt.s32.totalorder %s18, 1
      %s243 = scalar_select %p242, %s18, 1
      %p244 = scmp.lt.s32.totalorder %s241, 15
      %s245 = scalar_select %p244, %s241, 15
      %s246 = smul.addr %s243, 16
      %s247 = sadd.s32 %s245, %s246
      %s248 = smul.addr %s247, 8
      %s249 = scalar_lea.vmem %s1, %s248
      %s250 = smul.u32 16, %s19
      %p251 = scmp.lt.s32.totalorder %s18, 1
      %s252 = scalar_select %p251, %s18, 1
      %s253 = smul.addr %s252, 32
      %s254 = smul.addr %s253, 8
      %s255 = scalar_lea.vmem %s2, %s254
      %s256 = smul.u32 16, %s19
      %p257 = scmp.lt.s32.totalorder %s18, 1
      %s258 = scalar_select %p257, %s18, 1
      %p259 = scmp.lt.s32.totalorder %s256, 15
      %s260 = scalar_select %p259, %s256, 15
      %s261 = smul.addr %s258, 16
      %s262 = sadd.s32 %s260, %s261
      %s263 = smul.addr %s262, 8
      %s264 = scalar_lea.vmem %s3, %s263
      %s265 = smul.u32 16, %s19
      %v266 = vld [vmem:[%s239] sm:$0xff]
      %v267 = vld [vmem:[%s239 + $0x8] sm:$0xff]
      %v268 = vld [vmem:[%s239 + $0x10] sm:$0xff]
      %v269 = vld [vmem:[%s239 + $0x18] sm:$0xff]
      %v270 = vld [vmem:[%s239 + $0x20] sm:$0xff]
      %v271 = vld [vmem:[%s239 + $0x28] sm:$0xff]
      %v272 = vld [vmem:[%s239 + $0x30] sm:$0xff]
      %v273 = vld [vmem:[%s239 + $0x38] sm:$0xff]
      %v274 = vld [vmem:[%s239 + $0x40] sm:$0xff]
      %v275 = vld [vmem:[%s239 + $0x48] sm:$0xff]
      %v276 = vld [vmem:[%s239 + $0x50] sm:$0xff]
      %v277 = vld [vmem:[%s239 + $0x58] sm:$0xff]
      %v278 = vld [vmem:[%s239 + $0x60] sm:$0xff]
      %v279 = vld [vmem:[%s239 + $0x68] sm:$0xff]
      %v280 = vld [vmem:[%s239 + $0x70] sm:$0xff]
      %v281 = vld [vmem:[%s239 + $0x78] sm:$0xff]
      %v282 = vld [vmem:[%s249] sm:$0xff]
      %v283 = vld [vmem:[%s249 + $0x8] sm:$0xff]
      %v284 = vld [vmem:[%s249 + $0x10] sm:$0xff]
      %v285 = vld [vmem:[%s249 + $0x18] sm:$0xff]
      %v286 = vld [vmem:[%s249 + $0x20] sm:$0xff]
      %v287 = vld [vmem:[%s249 + $0x28] sm:$0xff]
      %v288 = vld [vmem:[%s249 + $0x30] sm:$0xff]
      %v289 = vld [vmem:[%s249 + $0x38] sm:$0xff]
      %v290 = vld [vmem:[%s249 + $0x40] sm:$0xff]
      %v291 = vld [vmem:[%s249 + $0x48] sm:$0xff]
      %v292 = vld [vmem:[%s249 + $0x50] sm:$0xff]
      %v293 = vld [vmem:[%s249 + $0x58] sm:$0xff]
      %v294 = vld [vmem:[%s249 + $0x60] sm:$0xff]
      %v295 = vld [vmem:[%s249 + $0x68] sm:$0xff]
      %v296 = vld [vmem:[%s249 + $0x70] sm:$0xff]
      %v297 = vld [vmem:[%s249 + $0x78] sm:$0xff]
      %v298 = vld [vmem:[%s255] sm:$0xff]
      %v299 = vld [vmem:[%s255 + $0x8] sm:$0xff]
      %v300 = vld [vmem:[%s255 + $0x10] sm:$0xff]
      %v301 = vld [vmem:[%s255 + $0x18] sm:$0xff]
      %v302 = vld [vmem:[%s255 + $0x20] sm:$0xff]
      %v303 = vld [vmem:[%s255 + $0x28] sm:$0xff]
      %v304 = vld [vmem:[%s255 + $0x30] sm:$0xff]
      %v305 = vld [vmem:[%s255 + $0x38] sm:$0xff]
      %v306 = vld [vmem:[%s255 + $0x40] sm:$0xff]
      %v307 = vld [vmem:[%s255 + $0x48] sm:$0xff]
      %v308 = vld [vmem:[%s255 + $0x50] sm:$0xff]
      %v309 = vld [vmem:[%s255 + $0x58] sm:$0xff]
      %v310 = vld [vmem:[%s255 + $0x60] sm:$0xff]
      %v311 = vld [vmem:[%s255 + $0x68] sm:$0xff]
      %v312 = vld [vmem:[%s255 + $0x70] sm:$0xff]
      %v313 = vld [vmem:[%s255 + $0x78] sm:$0xff]
      %v314 = vld [vmem:[%s255 + $0x80] sm:$0xff]
      %v315 = vld [vmem:[%s255 + $0x88] sm:$0xff]
      %v316 = vld [vmem:[%s255 + $0x90] sm:$0xff]
      %v317 = vld [vmem:[%s255 + $0x98] sm:$0xff]
      %v318 = vld [vmem:[%s255 + $0xa0] sm:$0xff]
      %v319 = vld [vmem:[%s255 + $0xa8] sm:$0xff]
      %v320 = vld [vmem:[%s255 + $0xb0] sm:$0xff]
      %v321 = vld [vmem:[%s255 + $0xb8] sm:$0xff]
      %v322 = vld [vmem:[%s255 + $0xc0] sm:$0xff]
      %v323 = vld [vmem:[%s255 + $0xc8] sm:$0xff]
      %v324 = vld [vmem:[%s255 + $0xd0] sm:$0xff]
      %v325 = vld [vmem:[%s255 + $0xd8] sm:$0xff]
      %v326 = vld [vmem:[%s255 + $0xe0] sm:$0xff]
      %v327 = vld [vmem:[%s255 + $0xe8] sm:$0xff]
      %v328 = vld [vmem:[%s255 + $0xf0] sm:$0xff]
      %v329 = vld [vmem:[%s255 + $0xf8] sm:$0xff]
      %v330 = vlaneseq
      %v331 = vand.u32 %v330, 127
      %v332 = vadd.s32 %v331, 128
      %333 = vset.pattern.permute.xlu0 0
      %334 = vperm.xlu0 %333, %v266
      %v335 = vpop.permute.xlu0 %334
      %336 = vset.pattern.permute.xlu0 0
      %337 = vperm.xlu0 %336, %v267
      %v338 = vpop.permute.xlu0 %337
      %339 = vset.pattern.permute.xlu0 0
      %340 = vperm.xlu0 %339, %v268
      %v341 = vpop.permute.xlu0 %340
      %342 = vset.pattern.permute.xlu0 0
      %343 = vperm.xlu0 %342, %v269
      %v344 = vpop.permute.xlu0 %343
      %345 = vset.pattern.permute.xlu0 0
      %346 = vperm.xlu0 %345, %v270
      %v347 = vpop.permute.xlu0 %346
      %348 = vset.pattern.permute.xlu0 0
      %349 = vperm.xlu0 %348, %v271
      %v350 = vpop.permute.xlu0 %349
      %351 = vset.pattern.permute.xlu0 0
      %352 = vperm.xlu0 %351, %v272
      %v353 = vpop.permute.xlu0 %352
      %354 = vset.pattern.permute.xlu0 0
      %355 = vperm.xlu0 %354, %v273
      %v356 = vpop.permute.xlu0 %355
      %357 = vset.pattern.permute.xlu0 0
      %358 = vperm.xlu0 %357, %v274
      %v359 = vpop.permute.xlu0 %358
      %360 = vset.pattern.permute.xlu0 0
      %361 = vperm.xlu0 %360, %v275
      %v362 = vpop.permute.xlu0 %361
      %363 = vset.pattern.permute.xlu0 0
      %364 = vperm.xlu0 %363, %v276
      %v365 = vpop.permute.xlu0 %364
      %366 = vset.pattern.permute.xlu0 0
      %367 = vperm.xlu0 %366, %v277
      %v368 = vpop.permute.xlu0 %367
      %369 = vset.pattern.permute.xlu0 0
      %370 = vperm.xlu0 %369, %v278
      %v371 = vpop.permute.xlu0 %370
      %372 = vset.pattern.permute.xlu0 0
      %373 = vperm.xlu0 %372, %v279
      %v374 = vpop.permute.xlu0 %373
      %375 = vset.pattern.permute.xlu0 0
      %376 = vperm.xlu0 %375, %v280
      %v377 = vpop.permute.xlu0 %376
      %378 = vset.pattern.permute.xlu0 0
      %379 = vperm.xlu0 %378, %v281
      %v380 = vpop.permute.xlu0 %379
      %vm381 = vcmp.eq.s32.totalorder %v331, %v335
      %vm382 = vcmp.eq.s32.totalorder %v332, %v335
      %vm383 = vcmp.eq.s32.totalorder %v331, %v338
      %vm384 = vcmp.eq.s32.totalorder %v332, %v338
      %vm385 = vcmp.eq.s32.totalorder %v331, %v341
      %vm386 = vcmp.eq.s32.totalorder %v332, %v341
      %vm387 = vcmp.eq.s32.totalorder %v331, %v344
      %vm388 = vcmp.eq.s32.totalorder %v332, %v344
      %vm389 = vcmp.eq.s32.totalorder %v331, %v347
      %vm390 = vcmp.eq.s32.totalorder %v332, %v347
      %vm391 = vcmp.eq.s32.totalorder %v331, %v350
      %vm392 = vcmp.eq.s32.totalorder %v332, %v350
      %vm393 = vcmp.eq.s32.totalorder %v331, %v353
      %vm394 = vcmp.eq.s32.totalorder %v332, %v353
      %vm395 = vcmp.eq.s32.totalorder %v331, %v356
      %vm396 = vcmp.eq.s32.totalorder %v332, %v356
      %vm397 = vcmp.eq.s32.totalorder %v331, %v359
      %vm398 = vcmp.eq.s32.totalorder %v332, %v359
      %vm399 = vcmp.eq.s32.totalorder %v331, %v362
      %vm400 = vcmp.eq.s32.totalorder %v332, %v362
      %vm401 = vcmp.eq.s32.totalorder %v331, %v365
      %vm402 = vcmp.eq.s32.totalorder %v332, %v365
      %vm403 = vcmp.eq.s32.totalorder %v331, %v368
      %vm404 = vcmp.eq.s32.totalorder %v332, %v368
      %vm405 = vcmp.eq.s32.totalorder %v331, %v371
      %vm406 = vcmp.eq.s32.totalorder %v332, %v371
      %vm407 = vcmp.eq.s32.totalorder %v331, %v374
      %vm408 = vcmp.eq.s32.totalorder %v332, %v374
      %vm409 = vcmp.eq.s32.totalorder %v331, %v377
      %vm410 = vcmp.eq.s32.totalorder %v332, %v377
      %vm411 = vcmp.eq.s32.totalorder %v331, %v380
      %vm412 = vcmp.eq.s32.totalorder %v332, %v380
      %v413 = vsel %vm381, 1, 0
      %v414 = vsel %vm382, 1, 0
      %v415 = vsel %vm383, 1, 0
      %v416 = vsel %vm384, 1, 0
      %v417 = vsel %vm385, 1, 0
      %v418 = vsel %vm386, 1, 0
      %v419 = vsel %vm387, 1, 0
      %v420 = vsel %vm388, 1, 0
      %v421 = vsel %vm389, 1, 0
      %v422 = vsel %vm390, 1, 0
      %v423 = vsel %vm391, 1, 0
      %v424 = vsel %vm392, 1, 0
      %v425 = vsel %vm393, 1, 0
      %v426 = vsel %vm394, 1, 0
      %v427 = vsel %vm395, 1, 0
      %v428 = vsel %vm396, 1, 0
      %v429 = vsel %vm397, 1, 0
      %v430 = vsel %vm398, 1, 0
      %v431 = vsel %vm399, 1, 0
      %v432 = vsel %vm400, 1, 0
      %v433 = vsel %vm401, 1, 0
      %v434 = vsel %vm402, 1, 0
      %v435 = vsel %vm403, 1, 0
      %v436 = vsel %vm404, 1, 0
      %v437 = vsel %vm405, 1, 0
      %v438 = vsel %vm406, 1, 0
      %v439 = vsel %vm407, 1, 0
      %v440 = vsel %vm408, 1, 0
      %v441 = vsel %vm409, 1, 0
      %v442 = vsel %vm410, 1, 0
      %v443 = vsel %vm411, 1, 0
      %v444 = vsel %vm412, 1, 0
      %v445 = vcvt.s32.f32 %v413
      %v446 = vcvt.s32.f32 %v414
      %v447 = vcvt.s32.f32 %v415
      %v448 = vcvt.s32.f32 %v416
      %v449 = vcvt.s32.f32 %v417
      %v450 = vcvt.s32.f32 %v418
      %v451 = vcvt.s32.f32 %v419
      %v452 = vcvt.s32.f32 %v420
      %v453 = vcvt.s32.f32 %v421
      %v454 = vcvt.s32.f32 %v422
      %v455 = vcvt.s32.f32 %v423
      %v456 = vcvt.s32.f32 %v424
      %v457 = vcvt.s32.f32 %v425
      %v458 = vcvt.s32.f32 %v426
      %v459 = vcvt.s32.f32 %v427
      %v460 = vcvt.s32.f32 %v428
      %v461 = vcvt.s32.f32 %v429
      %v462 = vcvt.s32.f32 %v430
      %v463 = vcvt.s32.f32 %v431
      %v464 = vcvt.s32.f32 %v432
      %v465 = vcvt.s32.f32 %v433
      %v466 = vcvt.s32.f32 %v434
      %v467 = vcvt.s32.f32 %v435
      %v468 = vcvt.s32.f32 %v436
      %v469 = vcvt.s32.f32 %v437
      %v470 = vcvt.s32.f32 %v438
      %v471 = vcvt.s32.f32 %v439
      %v472 = vcvt.s32.f32 %v440
      %v473 = vcvt.s32.f32 %v441
      %v474 = vcvt.s32.f32 %v442
      %v475 = vcvt.s32.f32 %v443
      %v476 = vcvt.s32.f32 %v444
      %478 = vset.pattern.permute.xlu0 0
      %479 = vperm.xlu0 %478, %v282
      %v480 = vpop.permute.xlu0 %479
      %483 = vset.pattern.permute.xlu0 0
      %484 = vperm.xlu0 %483, %v283
      %v485 = vpop.permute.xlu0 %484
      %488 = vset.pattern.permute.xlu0 0
      %489 = vperm.xlu0 %488, %v284
      %v490 = vpop.permute.xlu0 %489
      %493 = vset.pattern.permute.xlu0 0
      %494 = vperm.xlu0 %493, %v285
      %v495 = vpop.permute.xlu0 %494
      %498 = vset.pattern.permute.xlu0 0
      %499 = vperm.xlu0 %498, %v286
      %v500 = vpop.permute.xlu0 %499
      %503 = vset.pattern.permute.xlu0 0
      %504 = vperm.xlu0 %503, %v287
      %v505 = vpop.permute.xlu0 %504
      %508 = vset.pattern.permute.xlu0 0
      %509 = vperm.xlu0 %508, %v288
      %v510 = vpop.permute.xlu0 %509
      %513 = vset.pattern.permute.xlu0 0
      %514 = vperm.xlu0 %513, %v289
      %v515 = vpop.permute.xlu0 %514
      %518 = vset.pattern.permute.xlu0 0
      %519 = vperm.xlu0 %518, %v290
      %v520 = vpop.permute.xlu0 %519
      %523 = vset.pattern.permute.xlu0 0
      %524 = vperm.xlu0 %523, %v291
      %v525 = vpop.permute.xlu0 %524
      %528 = vset.pattern.permute.xlu0 0
      %529 = vperm.xlu0 %528, %v292
      %v530 = vpop.permute.xlu0 %529
      %533 = vset.pattern.permute.xlu0 0
      %534 = vperm.xlu0 %533, %v293
      %v535 = vpop.permute.xlu0 %534
      %538 = vset.pattern.permute.xlu0 0
      %539 = vperm.xlu0 %538, %v294
      %v540 = vpop.permute.xlu0 %539
      %543 = vset.pattern.permute.xlu0 0
      %544 = vperm.xlu0 %543, %v295
      %v545 = vpop.permute.xlu0 %544
      %548 = vset.pattern.permute.xlu0 0
      %549 = vperm.xlu0 %548, %v296
      %v550 = vpop.permute.xlu0 %549
      %553 = vset.pattern.permute.xlu0 0
      %554 = vperm.xlu0 %553, %v297
      %v555 = vpop.permute.xlu0 %554
      %v557 = vmul.f32 %v445, %v480
      %v558 = vmul.f32 %v446, %v480
      %v559 = vmul.f32 %v447, %v485
      %v560 = vmul.f32 %v448, %v485
      %v561 = vmul.f32 %v449, %v490
      %v562 = vmul.f32 %v450, %v490
      %v563 = vmul.f32 %v451, %v495
      %v564 = vmul.f32 %v452, %v495
      %v565 = vmul.f32 %v453, %v500
      %v566 = vmul.f32 %v454, %v500
      %v567 = vmul.f32 %v455, %v505
      %v568 = vmul.f32 %v456, %v505
      %v569 = vmul.f32 %v457, %v510
      %v570 = vmul.f32 %v458, %v510
      %v571 = vmul.f32 %v459, %v515
      %v572 = vmul.f32 %v460, %v515
      %v573 = vmul.f32 %v461, %v520
      %v574 = vmul.f32 %v462, %v520
      %v575 = vmul.f32 %v463, %v525
      %v576 = vmul.f32 %v464, %v525
      %v577 = vmul.f32 %v465, %v530
      %v578 = vmul.f32 %v466, %v530
      %v579 = vmul.f32 %v467, %v535
      %v580 = vmul.f32 %v468, %v535
      %v581 = vmul.f32 %v469, %v540
      %v582 = vmul.f32 %v470, %v540
      %v583 = vmul.f32 %v471, %v545
      %v584 = vmul.f32 %v472, %v545
      %v585 = vmul.f32 %v473, %v550
      %v586 = vmul.f32 %v474, %v550
      %v587 = vmul.f32 %v475, %v555
      %v588 = vmul.f32 %v476, %v555
      %v589 = vadd.f32 %v557, 0.0
      %v590 = vadd.f32 %v558, 0.0
      %v591 = vadd.f32 %v559, 0.0
      %v592 = vadd.f32 %v560, 0.0
      %v593 = vadd.f32 %v561, 0.0
      %v594 = vadd.f32 %v562, 0.0
      %v595 = vadd.f32 %v563, 0.0
      %v596 = vadd.f32 %v564, 0.0
      %v597 = vadd.f32 %v565, 0.0
      %v598 = vadd.f32 %v566, 0.0
      %v599 = vadd.f32 %v567, 0.0
      %v600 = vadd.f32 %v568, 0.0
      %v601 = vadd.f32 %v569, 0.0
      %v602 = vadd.f32 %v570, 0.0
      %v603 = vadd.f32 %v571, 0.0
      %v604 = vadd.f32 %v572, 0.0
      %v605 = vadd.f32 %v573, 0.0
      %v606 = vadd.f32 %v574, 0.0
      %v607 = vadd.f32 %v575, 0.0
      %v608 = vadd.f32 %v576, 0.0
      %v609 = vadd.f32 %v577, 0.0
      %v610 = vadd.f32 %v578, 0.0
      %v611 = vadd.f32 %v579, 0.0
      %v612 = vadd.f32 %v580, 0.0
      %v613 = vadd.f32 %v581, 0.0
      %v614 = vadd.f32 %v582, 0.0
      %v615 = vadd.f32 %v583, 0.0
      %v616 = vadd.f32 %v584, 0.0
      %v617 = vadd.f32 %v585, 0.0
      %v618 = vadd.f32 %v586, 0.0
      %v619 = vadd.f32 %v587, 0.0
      %v620 = vadd.f32 %v588, 0.0
      %621 = vset.pattern.permute.xlu0 1
      %622 = vperm.xlu0 %621, %v266
      %v623 = vpop.permute.xlu0 %622
      %624 = vset.pattern.permute.xlu0 1
      %625 = vperm.xlu0 %624, %v267
      %v626 = vpop.permute.xlu0 %625
      %627 = vset.pattern.permute.xlu0 1
      %628 = vperm.xlu0 %627, %v268
      %v629 = vpop.permute.xlu0 %628
      %630 = vset.pattern.permute.xlu0 1
      %631 = vperm.xlu0 %630, %v269
      %v632 = vpop.permute.xlu0 %631
      %633 = vset.pattern.permute.xlu0 1
      %634 = vperm.xlu0 %633, %v270
      %v635 = vpop.permute.xlu0 %634
      %636 = vset.pattern.permute.xlu0 1
      %637 = vperm.xlu0 %636, %v271
      %v638 = vpop.permute.xlu0 %637
      %639 = vset.pattern.permute.xlu0 1
      %640 = vperm.xlu0 %639, %v272
      %v641 = vpop.permute.xlu0 %640
      %642 = vset.pattern.permute.xlu0 1
      %643 = vperm.xlu0 %642, %v273
      %v644 = vpop.permute.xlu0 %643
      %645 = vset.pattern.permute.xlu0 1
      %646 = vperm.xlu0 %645, %v274
      %v647 = vpop.permute.xlu0 %646
      %648 = vset.pattern.permute.xlu0 1
      %649 = vperm.xlu0 %648, %v275
      %v650 = vpop.permute.xlu0 %649
      %651 = vset.pattern.permute.xlu0 1
      %652 = vperm.xlu0 %651, %v276
      %v653 = vpop.permute.xlu0 %652
      %654 = vset.pattern.permute.xlu0 1
      %655 = vperm.xlu0 %654, %v277
      %v656 = vpop.permute.xlu0 %655
      %657 = vset.pattern.permute.xlu0 1
      %658 = vperm.xlu0 %657, %v278
      %v659 = vpop.permute.xlu0 %658
      %660 = vset.pattern.permute.xlu0 1
      %661 = vperm.xlu0 %660, %v279
      %v662 = vpop.permute.xlu0 %661
      %663 = vset.pattern.permute.xlu0 1
      %664 = vperm.xlu0 %663, %v280
      %v665 = vpop.permute.xlu0 %664
      %666 = vset.pattern.permute.xlu0 1
      %667 = vperm.xlu0 %666, %v281
      %v668 = vpop.permute.xlu0 %667
      %vm669 = vcmp.eq.s32.totalorder %v331, %v623
      %vm670 = vcmp.eq.s32.totalorder %v332, %v623
      %vm671 = vcmp.eq.s32.totalorder %v331, %v626
      %vm672 = vcmp.eq.s32.totalorder %v332, %v626
      %vm673 = vcmp.eq.s32.totalorder %v331, %v629
      %vm674 = vcmp.eq.s32.totalorder %v332, %v629
      %vm675 = vcmp.eq.s32.totalorder %v331, %v632
      %vm676 = vcmp.eq.s32.totalorder %v332, %v632
      %vm677 = vcmp.eq.s32.totalorder %v331, %v635
      %vm678 = vcmp.eq.s32.totalorder %v332, %v635
      %vm679 = vcmp.eq.s32.totalorder %v331, %v638
      %vm680 = vcmp.eq.s32.totalorder %v332, %v638
      %vm681 = vcmp.eq.s32.totalorder %v331, %v641
      %vm682 = vcmp.eq.s32.totalorder %v332, %v641
      %vm683 = vcmp.eq.s32.totalorder %v331, %v644
      %vm684 = vcmp.eq.s32.totalorder %v332, %v644
      %vm685 = vcmp.eq.s32.totalorder %v331, %v647
      %vm686 = vcmp.eq.s32.totalorder %v332, %v647
      %vm687 = vcmp.eq.s32.totalorder %v331, %v650
      %vm688 = vcmp.eq.s32.totalorder %v332, %v650
      %vm689 = vcmp.eq.s32.totalorder %v331, %v653
      %vm690 = vcmp.eq.s32.totalorder %v332, %v653
      %vm691 = vcmp.eq.s32.totalorder %v331, %v656
      %vm692 = vcmp.eq.s32.totalorder %v332, %v656
      %vm693 = vcmp.eq.s32.totalorder %v331, %v659
      %vm694 = vcmp.eq.s32.totalorder %v332, %v659
      %vm695 = vcmp.eq.s32.totalorder %v331, %v662
      %vm696 = vcmp.eq.s32.totalorder %v332, %v662
      %vm697 = vcmp.eq.s32.totalorder %v331, %v665
      %vm698 = vcmp.eq.s32.totalorder %v332, %v665
      %vm699 = vcmp.eq.s32.totalorder %v331, %v668
      %vm700 = vcmp.eq.s32.totalorder %v332, %v668
      %v701 = vsel %vm669, 1, 0
      %v702 = vsel %vm670, 1, 0
      %v703 = vsel %vm671, 1, 0
      %v704 = vsel %vm672, 1, 0
      %v705 = vsel %vm673, 1, 0
      %v706 = vsel %vm674, 1, 0
      %v707 = vsel %vm675, 1, 0
      %v708 = vsel %vm676, 1, 0
      %v709 = vsel %vm677, 1, 0
      %v710 = vsel %vm678, 1, 0
      %v711 = vsel %vm679, 1, 0
      %v712 = vsel %vm680, 1, 0
      %v713 = vsel %vm681, 1, 0
      %v714 = vsel %vm682, 1, 0
      %v715 = vsel %vm683, 1, 0
      %v716 = vsel %vm684, 1, 0
      %v717 = vsel %vm685, 1, 0
      %v718 = vsel %vm686, 1, 0
      %v719 = vsel %vm687, 1, 0
      %v720 = vsel %vm688, 1, 0
      %v721 = vsel %vm689, 1, 0
      %v722 = vsel %vm690, 1, 0
      %v723 = vsel %vm691, 1, 0
      %v724 = vsel %vm692, 1, 0
      %v725 = vsel %vm693, 1, 0
      %v726 = vsel %vm694, 1, 0
      %v727 = vsel %vm695, 1, 0
      %v728 = vsel %vm696, 1, 0
      %v729 = vsel %vm697, 1, 0
      %v730 = vsel %vm698, 1, 0
      %v731 = vsel %vm699, 1, 0
      %v732 = vsel %vm700, 1, 0
      %v733 = vcvt.s32.f32 %v701
      %v734 = vcvt.s32.f32 %v702
      %v735 = vcvt.s32.f32 %v703
      %v736 = vcvt.s32.f32 %v704
      %v737 = vcvt.s32.f32 %v705
      %v738 = vcvt.s32.f32 %v706
      %v739 = vcvt.s32.f32 %v707
      %v740 = vcvt.s32.f32 %v708
      %v741 = vcvt.s32.f32 %v709
      %v742 = vcvt.s32.f32 %v710
      %v743 = vcvt.s32.f32 %v711
      %v744 = vcvt.s32.f32 %v712
      %v745 = vcvt.s32.f32 %v713
      %v746 = vcvt.s32.f32 %v714
      %v747 = vcvt.s32.f32 %v715
      %v748 = vcvt.s32.f32 %v716
      %v749 = vcvt.s32.f32 %v717
      %v750 = vcvt.s32.f32 %v718
      %v751 = vcvt.s32.f32 %v719
      %v752 = vcvt.s32.f32 %v720
      %v753 = vcvt.s32.f32 %v721
      %v754 = vcvt.s32.f32 %v722
      %v755 = vcvt.s32.f32 %v723
      %v756 = vcvt.s32.f32 %v724
      %v757 = vcvt.s32.f32 %v725
      %v758 = vcvt.s32.f32 %v726
      %v759 = vcvt.s32.f32 %v727
      %v760 = vcvt.s32.f32 %v728
      %v761 = vcvt.s32.f32 %v729
      %v762 = vcvt.s32.f32 %v730
      %v763 = vcvt.s32.f32 %v731
      %v764 = vcvt.s32.f32 %v732
      %765 = vset.pattern.permute.xlu0 1
      %766 = vperm.xlu0 %765, %v282
      %v767 = vpop.permute.xlu0 %766
      %769 = vset.pattern.permute.xlu0 1
      %770 = vperm.xlu0 %769, %v283
      %v771 = vpop.permute.xlu0 %770
      %773 = vset.pattern.permute.xlu0 1
      %774 = vperm.xlu0 %773, %v284
      %v775 = vpop.permute.xlu0 %774
      %777 = vset.pattern.permute.xlu0 1
      %778 = vperm.xlu0 %777, %v285
      %v779 = vpop.permute.xlu0 %778
      %781 = vset.pattern.permute.xlu0 1
      %782 = vperm.xlu0 %781, %v286
      %v783 = vpop.permute.xlu0 %782
      %785 = vset.pattern.permute.xlu0 1
      %786 = vperm.xlu0 %785, %v287
      %v787 = vpop.permute.xlu0 %786
      %789 = vset.pattern.permute.xlu0 1
      %790 = vperm.xlu0 %789, %v288
      %v791 = vpop.permute.xlu0 %790
      %793 = vset.pattern.permute.xlu0 1
      %794 = vperm.xlu0 %793, %v289
      %v795 = vpop.permute.xlu0 %794
      %797 = vset.pattern.permute.xlu0 1
      %798 = vperm.xlu0 %797, %v290
      %v799 = vpop.permute.xlu0 %798
      %801 = vset.pattern.permute.xlu0 1
      %802 = vperm.xlu0 %801, %v291
      %v803 = vpop.permute.xlu0 %802
      %805 = vset.pattern.permute.xlu0 1
      %806 = vperm.xlu0 %805, %v292
      %v807 = vpop.permute.xlu0 %806
      %809 = vset.pattern.permute.xlu0 1
      %810 = vperm.xlu0 %809, %v293
      %v811 = vpop.permute.xlu0 %810
      %813 = vset.pattern.permute.xlu0 1
      %814 = vperm.xlu0 %813, %v294
      %v815 = vpop.permute.xlu0 %814
      %817 = vset.pattern.permute.xlu0 1
      %818 = vperm.xlu0 %817, %v295
      %v819 = vpop.permute.xlu0 %818
      %821 = vset.pattern.permute.xlu0 1
      %822 = vperm.xlu0 %821, %v296
      %v823 = vpop.permute.xlu0 %822
      %825 = vset.pattern.permute.xlu0 1
      %826 = vperm.xlu0 %825, %v297
      %v827 = vpop.permute.xlu0 %826
      %v829 = vmul.f32 %v733, %v767
      %v830 = vmul.f32 %v734, %v767
      %v831 = vmul.f32 %v735, %v771
      %v832 = vmul.f32 %v736, %v771
      %v833 = vmul.f32 %v737, %v775
      %v834 = vmul.f32 %v738, %v775
      %v835 = vmul.f32 %v739, %v779
      %v836 = vmul.f32 %v740, %v779
      %v837 = vmul.f32 %v741, %v783
      %v838 = vmul.f32 %v742, %v783
      %v839 = vmul.f32 %v743, %v787
      %v840 = vmul.f32 %v744, %v787
      %v841 = vmul.f32 %v745, %v791
      %v842 = vmul.f32 %v746, %v791
      %v843 = vmul.f32 %v747, %v795
      %v844 = vmul.f32 %v748, %v795
      %v845 = vmul.f32 %v749, %v799
      %v846 = vmul.f32 %v750, %v799
      %v847 = vmul.f32 %v751, %v803
      %v848 = vmul.f32 %v752, %v803
      %v849 = vmul.f32 %v753, %v807
      %v850 = vmul.f32 %v754, %v807
      %v851 = vmul.f32 %v755, %v811
      %v852 = vmul.f32 %v756, %v811
      %v853 = vmul.f32 %v757, %v815
      %v854 = vmul.f32 %v758, %v815
      %v855 = vmul.f32 %v759, %v819
      %v856 = vmul.f32 %v760, %v819
      %v857 = vmul.f32 %v761, %v823
      %v858 = vmul.f32 %v762, %v823
      %v859 = vmul.f32 %v763, %v827
      %v860 = vmul.f32 %v764, %v827
      %v861 = vadd.f32 %v589, %v829
      %v862 = vadd.f32 %v590, %v830
      %v863 = vadd.f32 %v591, %v831
      %v864 = vadd.f32 %v592, %v832
      %v865 = vadd.f32 %v593, %v833
      %v866 = vadd.f32 %v594, %v834
      %v867 = vadd.f32 %v595, %v835
      %v868 = vadd.f32 %v596, %v836
      %v869 = vadd.f32 %v597, %v837
      %v870 = vadd.f32 %v598, %v838
      %v871 = vadd.f32 %v599, %v839
      %v872 = vadd.f32 %v600, %v840
      %v873 = vadd.f32 %v601, %v841
      %v874 = vadd.f32 %v602, %v842
      %v875 = vadd.f32 %v603, %v843
      %v876 = vadd.f32 %v604, %v844
      %v877 = vadd.f32 %v605, %v845
      %v878 = vadd.f32 %v606, %v846
      %v879 = vadd.f32 %v607, %v847
      %v880 = vadd.f32 %v608, %v848
      %v881 = vadd.f32 %v609, %v849
      %v882 = vadd.f32 %v610, %v850
      %v883 = vadd.f32 %v611, %v851
      %v884 = vadd.f32 %v612, %v852
      %v885 = vadd.f32 %v613, %v853
      %v886 = vadd.f32 %v614, %v854
      %v887 = vadd.f32 %v615, %v855
      %v888 = vadd.f32 %v616, %v856
      %v889 = vadd.f32 %v617, %v857
      %v890 = vadd.f32 %v618, %v858
      %v891 = vadd.f32 %v619, %v859
      %v892 = vadd.f32 %v620, %v860
      %893 = vset.pattern.permute.xlu0 2
      %894 = vperm.xlu0 %893, %v266
      %v895 = vpop.permute.xlu0 %894
      %896 = vset.pattern.permute.xlu0 2
      %897 = vperm.xlu0 %896, %v267
      %v898 = vpop.permute.xlu0 %897
      %899 = vset.pattern.permute.xlu0 2
      %900 = vperm.xlu0 %899, %v268
      %v901 = vpop.permute.xlu0 %900
      %902 = vset.pattern.permute.xlu0 2
      %903 = vperm.xlu0 %902, %v269
      %v904 = vpop.permute.xlu0 %903
      %905 = vset.pattern.permute.xlu0 2
      %906 = vperm.xlu0 %905, %v270
      %v907 = vpop.permute.xlu0 %906
      %908 = vset.pattern.permute.xlu0 2
      %909 = vperm.xlu0 %908, %v271
      %v910 = vpop.permute.xlu0 %909
      %911 = vset.pattern.permute.xlu0 2
      %912 = vperm.xlu0 %911, %v272
      %v913 = vpop.permute.xlu0 %912
      %914 = vset.pattern.permute.xlu0 2
      %915 = vperm.xlu0 %914, %v273
      %v916 = vpop.permute.xlu0 %915
      %917 = vset.pattern.permute.xlu0 2
      %918 = vperm.xlu0 %917, %v274
      %v919 = vpop.permute.xlu0 %918
      %920 = vset.pattern.permute.xlu0 2
      %921 = vperm.xlu0 %920, %v275
      %v922 = vpop.permute.xlu0 %921
      %923 = vset.pattern.permute.xlu0 2
      %924 = vperm.xlu0 %923, %v276
      %v925 = vpop.permute.xlu0 %924
      %926 = vset.pattern.permute.xlu0 2
      %927 = vperm.xlu0 %926, %v277
      %v928 = vpop.permute.xlu0 %927
      %929 = vset.pattern.permute.xlu0 2
      %930 = vperm.xlu0 %929, %v278
      %v931 = vpop.permute.xlu0 %930
      %932 = vset.pattern.permute.xlu0 2
      %933 = vperm.xlu0 %932, %v279
      %v934 = vpop.permute.xlu0 %933
      %935 = vset.pattern.permute.xlu0 2
      %936 = vperm.xlu0 %935, %v280
      %v937 = vpop.permute.xlu0 %936
      %938 = vset.pattern.permute.xlu0 2
      %939 = vperm.xlu0 %938, %v281
      %v940 = vpop.permute.xlu0 %939
      %vm941 = vcmp.eq.s32.totalorder %v331, %v895
      %vm942 = vcmp.eq.s32.totalorder %v332, %v895
      %vm943 = vcmp.eq.s32.totalorder %v331, %v898
      %vm944 = vcmp.eq.s32.totalorder %v332, %v898
      %vm945 = vcmp.eq.s32.totalorder %v331, %v901
      %vm946 = vcmp.eq.s32.totalorder %v332, %v901
      %vm947 = vcmp.eq.s32.totalorder %v331, %v904
      %vm948 = vcmp.eq.s32.totalorder %v332, %v904
      %vm949 = vcmp.eq.s32.totalorder %v331, %v907
      %vm950 = vcmp.eq.s32.totalorder %v332, %v907
      %vm951 = vcmp.eq.s32.totalorder %v331, %v910
      %vm952 = vcmp.eq.s32.totalorder %v332, %v910
      %vm953 = vcmp.eq.s32.totalorder %v331, %v913
      %vm954 = vcmp.eq.s32.totalorder %v332, %v913
      %vm955 = vcmp.eq.s32.totalorder %v331, %v916
      %vm956 = vcmp.eq.s32.totalorder %v332, %v916
      %vm957 = vcmp.eq.s32.totalorder %v331, %v919
      %vm958 = vcmp.eq.s32.totalorder %v332, %v919
      %vm959 = vcmp.eq.s32.totalorder %v331, %v922
      %vm960 = vcmp.eq.s32.totalorder %v332, %v922
      %vm961 = vcmp.eq.s32.totalorder %v331, %v925
      %vm962 = vcmp.eq.s32.totalorder %v332, %v925
      %vm963 = vcmp.eq.s32.totalorder %v331, %v928
      %vm964 = vcmp.eq.s32.totalorder %v332, %v928
      %vm965 = vcmp.eq.s32.totalorder %v331, %v931
      %vm966 = vcmp.eq.s32.totalorder %v332, %v931
      %vm967 = vcmp.eq.s32.totalorder %v331, %v934
      %vm968 = vcmp.eq.s32.totalorder %v332, %v934
      %vm969 = vcmp.eq.s32.totalorder %v331, %v937
      %vm970 = vcmp.eq.s32.totalorder %v332, %v937
      %vm971 = vcmp.eq.s32.totalorder %v331, %v940
      %vm972 = vcmp.eq.s32.totalorder %v332, %v940
      %v973 = vsel %vm941, 1, 0
      %v974 = vsel %vm942, 1, 0
      %v975 = vsel %vm943, 1, 0
      %v976 = vsel %vm944, 1, 0
      %v977 = vsel %vm945, 1, 0
      %v978 = vsel %vm946, 1, 0
      %v979 = vsel %vm947, 1, 0
      %v980 = vsel %vm948, 1, 0
      %v981 = vsel %vm949, 1, 0
      %v982 = vsel %vm950, 1, 0
      %v983 = vsel %vm951, 1, 0
      %v984 = vsel %vm952, 1, 0
      %v985 = vsel %vm953, 1, 0
      %v986 = vsel %vm954, 1, 0
      %v987 = vsel %vm955, 1, 0
      %v988 = vsel %vm956, 1, 0
      %v989 = vsel %vm957, 1, 0
      %v990 = vsel %vm958, 1, 0
      %v991 = vsel %vm959, 1, 0
      %v992 = vsel %vm960, 1, 0
      %v993 = vsel %vm961, 1, 0
      %v994 = vsel %vm962, 1, 0
      %v995 = vsel %vm963, 1, 0
      %v996 = vsel %vm964, 1, 0
      %v997 = vsel %vm965, 1, 0
      %v998 = vsel %vm966, 1, 0
      %v999 = vsel %vm967, 1, 0
      %v1000 = vsel %vm968, 1, 0
      %v1001 = vsel %vm969, 1, 0
      %v1002 = vsel %vm970, 1, 0
      %v1003 = vsel %vm971, 1, 0
      %v1004 = vsel %vm972, 1, 0
      %v1005 = vcvt.s32.f32 %v973
      %v1006 = vcvt.s32.f32 %v974
      %v1007 = vcvt.s32.f32 %v975
      %v1008 = vcvt.s32.f32 %v976
      %v1009 = vcvt.s32.f32 %v977
      %v1010 = vcvt.s32.f32 %v978
      %v1011 = vcvt.s32.f32 %v979
      %v1012 = vcvt.s32.f32 %v980
      %v1013 = vcvt.s32.f32 %v981
      %v1014 = vcvt.s32.f32 %v982
      %v1015 = vcvt.s32.f32 %v983
      %v1016 = vcvt.s32.f32 %v984
      %v1017 = vcvt.s32.f32 %v985
      %v1018 = vcvt.s32.f32 %v986
      %v1019 = vcvt.s32.f32 %v987
      %v1020 = vcvt.s32.f32 %v988
      %v1021 = vcvt.s32.f32 %v989
      %v1022 = vcvt.s32.f32 %v990
      %v1023 = vcvt.s32.f32 %v991
      %v1024 = vcvt.s32.f32 %v992
      %v1025 = vcvt.s32.f32 %v993
      %v1026 = vcvt.s32.f32 %v994
      %v1027 = vcvt.s32.f32 %v995
      %v1028 = vcvt.s32.f32 %v996
      %v1029 = vcvt.s32.f32 %v997
      %v1030 = vcvt.s32.f32 %v998
      %v1031 = vcvt.s32.f32 %v999
      %v1032 = vcvt.s32.f32 %v1000
      %v1033 = vcvt.s32.f32 %v1001
      %v1034 = vcvt.s32.f32 %v1002
      %v1035 = vcvt.s32.f32 %v1003
      %v1036 = vcvt.s32.f32 %v1004
      %1037 = vset.pattern.permute.xlu0 2
      %1038 = vperm.xlu0 %1037, %v282
      %v1039 = vpop.permute.xlu0 %1038
      %1041 = vset.pattern.permute.xlu0 2
      %1042 = vperm.xlu0 %1041, %v283
      %v1043 = vpop.permute.xlu0 %1042
      %1045 = vset.pattern.permute.xlu0 2
      %1046 = vperm.xlu0 %1045, %v284
      %v1047 = vpop.permute.xlu0 %1046
      %1049 = vset.pattern.permute.xlu0 2
      %1050 = vperm.xlu0 %1049, %v285
      %v1051 = vpop.permute.xlu0 %1050
      %1053 = vset.pattern.permute.xlu0 2
      %1054 = vperm.xlu0 %1053, %v286
      %v1055 = vpop.permute.xlu0 %1054
      %1057 = vset.pattern.permute.xlu0 2
      %1058 = vperm.xlu0 %1057, %v287
      %v1059 = vpop.permute.xlu0 %1058
      %1061 = vset.pattern.permute.xlu0 2
      %1062 = vperm.xlu0 %1061, %v288
      %v1063 = vpop.permute.xlu0 %1062
      %1065 = vset.pattern.permute.xlu0 2
      %1066 = vperm.xlu0 %1065, %v289
      %v1067 = vpop.permute.xlu0 %1066
      %1069 = vset.pattern.permute.xlu0 2
      %1070 = vperm.xlu0 %1069, %v290
      %v1071 = vpop.permute.xlu0 %1070
      %1073 = vset.pattern.permute.xlu0 2
      %1074 = vperm.xlu0 %1073, %v291
      %v1075 = vpop.permute.xlu0 %1074
      %1077 = vset.pattern.permute.xlu0 2
      %1078 = vperm.xlu0 %1077, %v292
      %v1079 = vpop.permute.xlu0 %1078
      %1081 = vset.pattern.permute.xlu0 2
      %1082 = vperm.xlu0 %1081, %v293
      %v1083 = vpop.permute.xlu0 %1082
      %1085 = vset.pattern.permute.xlu0 2
      %1086 = vperm.xlu0 %1085, %v294
      %v1087 = vpop.permute.xlu0 %1086
      %1089 = vset.pattern.permute.xlu0 2
      %1090 = vperm.xlu0 %1089, %v295
      %v1091 = vpop.permute.xlu0 %1090
      %1093 = vset.pattern.permute.xlu0 2
      %1094 = vperm.xlu0 %1093, %v296
      %v1095 = vpop.permute.xlu0 %1094
      %1097 = vset.pattern.permute.xlu0 2
      %1098 = vperm.xlu0 %1097, %v297
      %v1099 = vpop.permute.xlu0 %1098
      %v1101 = vmul.f32 %v1005, %v1039
      %v1102 = vmul.f32 %v1006, %v1039
      %v1103 = vmul.f32 %v1007, %v1043
      %v1104 = vmul.f32 %v1008, %v1043
      %v1105 = vmul.f32 %v1009, %v1047
      %v1106 = vmul.f32 %v1010, %v1047
      %v1107 = vmul.f32 %v1011, %v1051
      %v1108 = vmul.f32 %v1012, %v1051
      %v1109 = vmul.f32 %v1013, %v1055
      %v1110 = vmul.f32 %v1014, %v1055
      %v1111 = vmul.f32 %v1015, %v1059
      %v1112 = vmul.f32 %v1016, %v1059
      %v1113 = vmul.f32 %v1017, %v1063
      %v1114 = vmul.f32 %v1018, %v1063
      %v1115 = vmul.f32 %v1019, %v1067
      %v1116 = vmul.f32 %v1020, %v1067
      %v1117 = vmul.f32 %v1021, %v1071
      %v1118 = vmul.f32 %v1022, %v1071
      %v1119 = vmul.f32 %v1023, %v1075
      %v1120 = vmul.f32 %v1024, %v1075
      %v1121 = vmul.f32 %v1025, %v1079
      %v1122 = vmul.f32 %v1026, %v1079
      %v1123 = vmul.f32 %v1027, %v1083
      %v1124 = vmul.f32 %v1028, %v1083
      %v1125 = vmul.f32 %v1029, %v1087
      %v1126 = vmul.f32 %v1030, %v1087
      %v1127 = vmul.f32 %v1031, %v1091
      %v1128 = vmul.f32 %v1032, %v1091
      %v1129 = vmul.f32 %v1033, %v1095
      %v1130 = vmul.f32 %v1034, %v1095
      %v1131 = vmul.f32 %v1035, %v1099
      %v1132 = vmul.f32 %v1036, %v1099
      %v1133 = vadd.f32 %v861, %v1101
      %v1134 = vadd.f32 %v862, %v1102
      %v1135 = vadd.f32 %v863, %v1103
      %v1136 = vadd.f32 %v864, %v1104
      %v1137 = vadd.f32 %v865, %v1105
      %v1138 = vadd.f32 %v866, %v1106
      %v1139 = vadd.f32 %v867, %v1107
      %v1140 = vadd.f32 %v868, %v1108
      %v1141 = vadd.f32 %v869, %v1109
      %v1142 = vadd.f32 %v870, %v1110
      %v1143 = vadd.f32 %v871, %v1111
      %v1144 = vadd.f32 %v872, %v1112
      %v1145 = vadd.f32 %v873, %v1113
      %v1146 = vadd.f32 %v874, %v1114
      %v1147 = vadd.f32 %v875, %v1115
      %v1148 = vadd.f32 %v876, %v1116
      %v1149 = vadd.f32 %v877, %v1117
      %v1150 = vadd.f32 %v878, %v1118
      %v1151 = vadd.f32 %v879, %v1119
      %v1152 = vadd.f32 %v880, %v1120
      %v1153 = vadd.f32 %v881, %v1121
      %v1154 = vadd.f32 %v882, %v1122
      %v1155 = vadd.f32 %v883, %v1123
      %v1156 = vadd.f32 %v884, %v1124
      %v1157 = vadd.f32 %v885, %v1125
      %v1158 = vadd.f32 %v886, %v1126
      %v1159 = vadd.f32 %v887, %v1127
      %v1160 = vadd.f32 %v888, %v1128
      %v1161 = vadd.f32 %v889, %v1129
      %v1162 = vadd.f32 %v890, %v1130
      %v1163 = vadd.f32 %v891, %v1131
      %v1164 = vadd.f32 %v892, %v1132
      %1165 = vset.pattern.permute.xlu0 3
      %1166 = vperm.xlu0 %1165, %v266
      %v1167 = vpop.permute.xlu0 %1166
      %1168 = vset.pattern.permute.xlu0 3
      %1169 = vperm.xlu0 %1168, %v267
      %v1170 = vpop.permute.xlu0 %1169
      %1171 = vset.pattern.permute.xlu0 3
      %1172 = vperm.xlu0 %1171, %v268
      %v1173 = vpop.permute.xlu0 %1172
      %1174 = vset.pattern.permute.xlu0 3
      %1175 = vperm.xlu0 %1174, %v269
      %v1176 = vpop.permute.xlu0 %1175
      %1177 = vset.pattern.permute.xlu0 3
      %1178 = vperm.xlu0 %1177, %v270
      %v1179 = vpop.permute.xlu0 %1178
      %1180 = vset.pattern.permute.xlu0 3
      %1181 = vperm.xlu0 %1180, %v271
      %v1182 = vpop.permute.xlu0 %1181
      %1183 = vset.pattern.permute.xlu0 3
      %1184 = vperm.xlu0 %1183, %v272
      %v1185 = vpop.permute.xlu0 %1184
      %1186 = vset.pattern.permute.xlu0 3
      %1187 = vperm.xlu0 %1186, %v273
      %v1188 = vpop.permute.xlu0 %1187
      %1189 = vset.pattern.permute.xlu0 3
      %1190 = vperm.xlu0 %1189, %v274
      %v1191 = vpop.permute.xlu0 %1190
      %1192 = vset.pattern.permute.xlu0 3
      %1193 = vperm.xlu0 %1192, %v275
      %v1194 = vpop.permute.xlu0 %1193
      %1195 = vset.pattern.permute.xlu0 3
      %1196 = vperm.xlu0 %1195, %v276
      %v1197 = vpop.permute.xlu0 %1196
      %1198 = vset.pattern.permute.xlu0 3
      %1199 = vperm.xlu0 %1198, %v277
      %v1200 = vpop.permute.xlu0 %1199
      %1201 = vset.pattern.permute.xlu0 3
      %1202 = vperm.xlu0 %1201, %v278
      %v1203 = vpop.permute.xlu0 %1202
      %1204 = vset.pattern.permute.xlu0 3
      %1205 = vperm.xlu0 %1204, %v279
      %v1206 = vpop.permute.xlu0 %1205
      %1207 = vset.pattern.permute.xlu0 3
      %1208 = vperm.xlu0 %1207, %v280
      %v1209 = vpop.permute.xlu0 %1208
      %1210 = vset.pattern.permute.xlu0 3
      %1211 = vperm.xlu0 %1210, %v281
      %v1212 = vpop.permute.xlu0 %1211
      %vm1213 = vcmp.eq.s32.totalorder %v331, %v1167
      %vm1214 = vcmp.eq.s32.totalorder %v332, %v1167
      %vm1215 = vcmp.eq.s32.totalorder %v331, %v1170
      %vm1216 = vcmp.eq.s32.totalorder %v332, %v1170
      %vm1217 = vcmp.eq.s32.totalorder %v331, %v1173
      %vm1218 = vcmp.eq.s32.totalorder %v332, %v1173
      %vm1219 = vcmp.eq.s32.totalorder %v331, %v1176
      %vm1220 = vcmp.eq.s32.totalorder %v332, %v1176
      %vm1221 = vcmp.eq.s32.totalorder %v331, %v1179
      %vm1222 = vcmp.eq.s32.totalorder %v332, %v1179
      %vm1223 = vcmp.eq.s32.totalorder %v331, %v1182
      %vm1224 = vcmp.eq.s32.totalorder %v332, %v1182
      %vm1225 = vcmp.eq.s32.totalorder %v331, %v1185
      %vm1226 = vcmp.eq.s32.totalorder %v332, %v1185
      %vm1227 = vcmp.eq.s32.totalorder %v331, %v1188
      %vm1228 = vcmp.eq.s32.totalorder %v332, %v1188
      %vm1229 = vcmp.eq.s32.totalorder %v331, %v1191
      %vm1230 = vcmp.eq.s32.totalorder %v332, %v1191
      %vm1231 = vcmp.eq.s32.totalorder %v331, %v1194
      %vm1232 = vcmp.eq.s32.totalorder %v332, %v1194
      %vm1233 = vcmp.eq.s32.totalorder %v331, %v1197
      %vm1234 = vcmp.eq.s32.totalorder %v332, %v1197
      %vm1235 = vcmp.eq.s32.totalorder %v331, %v1200
      %vm1236 = vcmp.eq.s32.totalorder %v332, %v1200
      %vm1237 = vcmp.eq.s32.totalorder %v331, %v1203
      %vm1238 = vcmp.eq.s32.totalorder %v332, %v1203
      %vm1239 = vcmp.eq.s32.totalorder %v331, %v1206
      %vm1240 = vcmp.eq.s32.totalorder %v332, %v1206
      %vm1241 = vcmp.eq.s32.totalorder %v331, %v1209
      %vm1242 = vcmp.eq.s32.totalorder %v332, %v1209
      %vm1243 = vcmp.eq.s32.totalorder %v331, %v1212
      %vm1244 = vcmp.eq.s32.totalorder %v332, %v1212
      %v1245 = vsel %vm1213, 1, 0
      %v1246 = vsel %vm1214, 1, 0
      %v1247 = vsel %vm1215, 1, 0
      %v1248 = vsel %vm1216, 1, 0
      %v1249 = vsel %vm1217, 1, 0
      %v1250 = vsel %vm1218, 1, 0
      %v1251 = vsel %vm1219, 1, 0
      %v1252 = vsel %vm1220, 1, 0
      %v1253 = vsel %vm1221, 1, 0
      %v1254 = vsel %vm1222, 1, 0
      %v1255 = vsel %vm1223, 1, 0
      %v1256 = vsel %vm1224, 1, 0
      %v1257 = vsel %vm1225, 1, 0
      %v1258 = vsel %vm1226, 1, 0
      %v1259 = vsel %vm1227, 1, 0
      %v1260 = vsel %vm1228, 1, 0
      %v1261 = vsel %vm1229, 1, 0
      %v1262 = vsel %vm1230, 1, 0
      %v1263 = vsel %vm1231, 1, 0
      %v1264 = vsel %vm1232, 1, 0
      %v1265 = vsel %vm1233, 1, 0
      %v1266 = vsel %vm1234, 1, 0
      %v1267 = vsel %vm1235, 1, 0
      %v1268 = vsel %vm1236, 1, 0
      %v1269 = vsel %vm1237, 1, 0
      %v1270 = vsel %vm1238, 1, 0
      %v1271 = vsel %vm1239, 1, 0
      %v1272 = vsel %vm1240, 1, 0
      %v1273 = vsel %vm1241, 1, 0
      %v1274 = vsel %vm1242, 1, 0
      %v1275 = vsel %vm1243, 1, 0
      %v1276 = vsel %vm1244, 1, 0
      %v1277 = vcvt.s32.f32 %v1245
      %v1278 = vcvt.s32.f32 %v1246
      %v1279 = vcvt.s32.f32 %v1247
      %v1280 = vcvt.s32.f32 %v1248
      %v1281 = vcvt.s32.f32 %v1249
      %v1282 = vcvt.s32.f32 %v1250
      %v1283 = vcvt.s32.f32 %v1251
      %v1284 = vcvt.s32.f32 %v1252
      %v1285 = vcvt.s32.f32 %v1253
      %v1286 = vcvt.s32.f32 %v1254
      %v1287 = vcvt.s32.f32 %v1255
      %v1288 = vcvt.s32.f32 %v1256
      %v1289 = vcvt.s32.f32 %v1257
      %v1290 = vcvt.s32.f32 %v1258
      %v1291 = vcvt.s32.f32 %v1259
      %v1292 = vcvt.s32.f32 %v1260
      %v1293 = vcvt.s32.f32 %v1261
      %v1294 = vcvt.s32.f32 %v1262
      %v1295 = vcvt.s32.f32 %v1263
      %v1296 = vcvt.s32.f32 %v1264
      %v1297 = vcvt.s32.f32 %v1265
      %v1298 = vcvt.s32.f32 %v1266
      %v1299 = vcvt.s32.f32 %v1267
      %v1300 = vcvt.s32.f32 %v1268
      %v1301 = vcvt.s32.f32 %v1269
      %v1302 = vcvt.s32.f32 %v1270
      %v1303 = vcvt.s32.f32 %v1271
      %v1304 = vcvt.s32.f32 %v1272
      %v1305 = vcvt.s32.f32 %v1273
      %v1306 = vcvt.s32.f32 %v1274
      %v1307 = vcvt.s32.f32 %v1275
      %v1308 = vcvt.s32.f32 %v1276
      %1309 = vset.pattern.permute.xlu0 3
      %1310 = vperm.xlu0 %1309, %v282
      %v1311 = vpop.permute.xlu0 %1310
      %1313 = vset.pattern.permute.xlu0 3
      %1314 = vperm.xlu0 %1313, %v283
      %v1315 = vpop.permute.xlu0 %1314
      %1317 = vset.pattern.permute.xlu0 3
      %1318 = vperm.xlu0 %1317, %v284
      %v1319 = vpop.permute.xlu0 %1318
      %1321 = vset.pattern.permute.xlu0 3
      %1322 = vperm.xlu0 %1321, %v285
      %v1323 = vpop.permute.xlu0 %1322
      %1325 = vset.pattern.permute.xlu0 3
      %1326 = vperm.xlu0 %1325, %v286
      %v1327 = vpop.permute.xlu0 %1326
      %1329 = vset.pattern.permute.xlu0 3
      %1330 = vperm.xlu0 %1329, %v287
      %v1331 = vpop.permute.xlu0 %1330
      %1333 = vset.pattern.permute.xlu0 3
      %1334 = vperm.xlu0 %1333, %v288
      %v1335 = vpop.permute.xlu0 %1334
      %1337 = vset.pattern.permute.xlu0 3
      %1338 = vperm.xlu0 %1337, %v289
      %v1339 = vpop.permute.xlu0 %1338
      %1341 = vset.pattern.permute.xlu0 3
      %1342 = vperm.xlu0 %1341, %v290
      %v1343 = vpop.permute.xlu0 %1342
      %1345 = vset.pattern.permute.xlu0 3
      %1346 = vperm.xlu0 %1345, %v291
      %v1347 = vpop.permute.xlu0 %1346
      %1349 = vset.pattern.permute.xlu0 3
      %1350 = vperm.xlu0 %1349, %v292
      %v1351 = vpop.permute.xlu0 %1350
      %1353 = vset.pattern.permute.xlu0 3
      %1354 = vperm.xlu0 %1353, %v293
      %v1355 = vpop.permute.xlu0 %1354
      %1357 = vset.pattern.permute.xlu0 3
      %1358 = vperm.xlu0 %1357, %v294
      %v1359 = vpop.permute.xlu0 %1358
      %1361 = vset.pattern.permute.xlu0 3
      %1362 = vperm.xlu0 %1361, %v295
      %v1363 = vpop.permute.xlu0 %1362
      %1365 = vset.pattern.permute.xlu0 3
      %1366 = vperm.xlu0 %1365, %v296
      %v1367 = vpop.permute.xlu0 %1366
      %1369 = vset.pattern.permute.xlu0 3
      %1370 = vperm.xlu0 %1369, %v297
      %v1371 = vpop.permute.xlu0 %1370
      %v1373 = vmul.f32 %v1277, %v1311
      %v1374 = vmul.f32 %v1278, %v1311
      %v1375 = vmul.f32 %v1279, %v1315
      %v1376 = vmul.f32 %v1280, %v1315
      %v1377 = vmul.f32 %v1281, %v1319
      %v1378 = vmul.f32 %v1282, %v1319
      %v1379 = vmul.f32 %v1283, %v1323
      %v1380 = vmul.f32 %v1284, %v1323
      %v1381 = vmul.f32 %v1285, %v1327
      %v1382 = vmul.f32 %v1286, %v1327
      %v1383 = vmul.f32 %v1287, %v1331
      %v1384 = vmul.f32 %v1288, %v1331
      %v1385 = vmul.f32 %v1289, %v1335
      %v1386 = vmul.f32 %v1290, %v1335
      %v1387 = vmul.f32 %v1291, %v1339
      %v1388 = vmul.f32 %v1292, %v1339
      %v1389 = vmul.f32 %v1293, %v1343
      %v1390 = vmul.f32 %v1294, %v1343
      %v1391 = vmul.f32 %v1295, %v1347
      %v1392 = vmul.f32 %v1296, %v1347
      %v1393 = vmul.f32 %v1297, %v1351
      %v1394 = vmul.f32 %v1298, %v1351
      %v1395 = vmul.f32 %v1299, %v1355
      %v1396 = vmul.f32 %v1300, %v1355
      %v1397 = vmul.f32 %v1301, %v1359
      %v1398 = vmul.f32 %v1302, %v1359
      %v1399 = vmul.f32 %v1303, %v1363
      %v1400 = vmul.f32 %v1304, %v1363
      %v1401 = vmul.f32 %v1305, %v1367
      %v1402 = vmul.f32 %v1306, %v1367
      %v1403 = vmul.f32 %v1307, %v1371
      %v1404 = vmul.f32 %v1308, %v1371
      %v1405 = vadd.f32 %v1133, %v1373
      %v1406 = vadd.f32 %v1134, %v1374
      %v1407 = vadd.f32 %v1135, %v1375
      %v1408 = vadd.f32 %v1136, %v1376
      %v1409 = vadd.f32 %v1137, %v1377
      %v1410 = vadd.f32 %v1138, %v1378
      %v1411 = vadd.f32 %v1139, %v1379
      %v1412 = vadd.f32 %v1140, %v1380
      %v1413 = vadd.f32 %v1141, %v1381
      %v1414 = vadd.f32 %v1142, %v1382
      %v1415 = vadd.f32 %v1143, %v1383
      %v1416 = vadd.f32 %v1144, %v1384
      %v1417 = vadd.f32 %v1145, %v1385
      %v1418 = vadd.f32 %v1146, %v1386
      %v1419 = vadd.f32 %v1147, %v1387
      %v1420 = vadd.f32 %v1148, %v1388
      %v1421 = vadd.f32 %v1149, %v1389
      %v1422 = vadd.f32 %v1150, %v1390
      %v1423 = vadd.f32 %v1151, %v1391
      %v1424 = vadd.f32 %v1152, %v1392
      %v1425 = vadd.f32 %v1153, %v1393
      %v1426 = vadd.f32 %v1154, %v1394
      %v1427 = vadd.f32 %v1155, %v1395
      %v1428 = vadd.f32 %v1156, %v1396
      %v1429 = vadd.f32 %v1157, %v1397
      %v1430 = vadd.f32 %v1158, %v1398
      %v1431 = vadd.f32 %v1159, %v1399
      %v1432 = vadd.f32 %v1160, %v1400
      %v1433 = vadd.f32 %v1161, %v1401
      %v1434 = vadd.f32 %v1162, %v1402
      %v1435 = vadd.f32 %v1163, %v1403
      %v1436 = vadd.f32 %v1164, %v1404
      %1437 = vmatprep.subr.mxu0 0.0
      %1438 = vmatpush1.msra.mxu0 %v298
      %1439 = vmatprep.subr.mxu0 0.0
      %1440 = vmatpush1.msra.mxu0 %v299
      %1441 = vmatprep.subr.mxu0 0.0
      %1442 = vmatpush1.msra.mxu0 %v300
      %1443 = vmatprep.subr.mxu0 0.0
      %1444 = vmatpush1.msra.mxu0 %v301
      %1445 = vmatprep.subr.mxu0 0.0
      %1446 = vmatpush1.msra.mxu0 %v302
      %1447 = vmatprep.subr.mxu0 0.0
      %1448 = vmatpush1.msra.mxu0 %v303
      %1449 = vmatprep.subr.mxu0 0.0
      %1450 = vmatpush1.msra.mxu0 %v304
      %1451 = vmatprep.subr.mxu0 0.0
      %1452 = vmatpush1.msra.mxu0 %v305
      %1453 = vmatprep.subr.mxu0 0.0
      %1454 = vmatpush1.msra.mxu0 %v306
      %1455 = vmatprep.subr.mxu0 0.0
      %1456 = vmatpush1.msra.mxu0 %v307
      %1457 = vmatprep.subr.mxu0 0.0
      %1458 = vmatpush1.msra.mxu0 %v308
      %1459 = vmatprep.subr.mxu0 0.0
      %1460 = vmatpush1.msra.mxu0 %v309
      %1461 = vmatprep.subr.mxu0 0.0
      %1462 = vmatpush1.msra.mxu0 %v310
      %1463 = vmatprep.subr.mxu0 0.0
      %1464 = vmatpush1.msra.mxu0 %v311
      %1465 = vmatprep.subr.mxu0 0.0
      %1466 = vmatpush1.msra.mxu0 %v312
      %1467 = vmatprep.subr.mxu0 0.0
      %1468 = vmatpush1.msra.mxu0 %v313
      %1469 = vmatprep.subr.mxu0 0.0
      %1470 = vmatpush1.msra.mxu0 %v314
      %1471 = vmatprep.subr.mxu0 0.0
      %1472 = vmatpush1.msra.mxu0 %v315
      %1473 = vmatprep.subr.mxu0 0.0
      %1474 = vmatpush1.msra.mxu0 %v316
      %1475 = vmatprep.subr.mxu0 0.0
      %1476 = vmatpush1.msra.mxu0 %v317
      %1477 = vmatprep.subr.mxu0 0.0
      %1478 = vmatpush1.msra.mxu0 %v318
      %1479 = vmatprep.subr.mxu0 0.0
      %1480 = vmatpush1.msra.mxu0 %v319
      %1481 = vmatprep.subr.mxu0 0.0
      %1482 = vmatpush1.msra.mxu0 %v320
      %1483 = vmatprep.subr.mxu0 0.0
      %1484 = vmatpush1.msra.mxu0 %v321
      %1485 = vmatprep.subr.mxu0 0.0
      %1486 = vmatpush1.msra.mxu0 %v322
      %1487 = vmatprep.subr.mxu0 0.0
      %1488 = vmatpush1.msra.mxu0 %v323
      %1489 = vmatprep.subr.mxu0 0.0
      %1490 = vmatpush1.msra.mxu0 %v324
      %1491 = vmatprep.subr.mxu0 0.0
      %1492 = vmatpush1.msra.mxu0 %v325
      %1493 = vmatprep.subr.mxu0 0.0
      %1494 = vmatpush1.msra.mxu0 %v326
      %1495 = vmatprep.subr.mxu0 0.0
      %1496 = vmatpush1.msra.mxu0 %v327
      %1497 = vmatprep.subr.mxu0 0.0
      %1498 = vmatpush1.msra.mxu0 %v328
      %1499 = vmatprep.subr.mxu0 0.0
      %1500 = vmatpush1.msra.mxu0 %v329
      %1501 = vmatprep.mubr.f32.mxu0 %v1406
      %1502 = vmatmul.mubr.f32.gmra.mrb[0].mxu0 %v1405
      %v1503 = vpop.f32.mrb[0].mxu0
      %v1504 = vadd.f32 0.0, %v1503
      %v1505 = vpop.f32.mrb[0].mxu0
      %1506 = vmatprep.mubr.f32.mxu0 %v1408
      %1507 = vmatmul.mubr.f32.gmra.mrb[0].mxu0 %v1407
      %v1508 = vpop.f32.mrb[0].mxu0
      %v1509 = vadd.f32 0.0, %v1508
      %v1510 = vpop.f32.mrb[0].mxu0
      %1511 = vmatprep.mubr.f32.mxu0 %v1410
      %1512 = vmatmul.mubr.f32.gmra.mrb[0].mxu0 %v1409
      %v1513 = vpop.f32.mrb[0].mxu0
      %v1514 = vadd.f32 0.0, %v1513
      %v1515 = vpop.f32.mrb[0].mxu0
      %1516 = vmatprep.mubr.f32.mxu0 %v1412
      %1517 = vmatmul.mubr.f32.gmra.mrb[0].mxu0 %v1411
      %v1518 = vpop.f32.mrb[0].mxu0
      %v1519 = vadd.f32 0.0, %v1518
      %v1520 = vpop.f32.mrb[0].mxu0
      %1521 = vmatprep.mubr.f32.mxu0 %v1414
      %1522 = vmatmul.mubr.f32.gmra.mrb[0].mxu0 %v1413
      %v1523 = vpop.f32.mrb[0].mxu0
      %v1524 = vadd.f32 0.0, %v1523
      %v1525 = vpop.f32.mrb[0].mxu0
      %1526 = vmatprep.mubr.f32.mxu0 %v1416
      %1527 = vmatmul.mubr.f32.gmra.mrb[0].mxu0 %v1415
      %v1528 = vpop.f32.mrb[0].mxu0
      %v1529 = vadd.f32 0.0, %v1528
      %v1530 = vpop.f32.mrb[0].mxu0
      %1531 = vmatprep.mubr.f32.mxu0 %v1418
      %1532 = vmatmul.mubr.f32.gmra.mrb[0].mxu0 %v1417
      %v1533 = vpop.f32.mrb[0].mxu0
      %v1534 = vadd.f32 0.0, %v1533
      %v1535 = vpop.f32.mrb[0].mxu0
      %1536 = vmatprep.mubr.f32.mxu0 %v1420
      %1537 = vmatmul.mubr.f32.gmra.mrb[0].mxu0 %v1419
      %v1538 = vpop.f32.mrb[0].mxu0
      %v1539 = vadd.f32 0.0, %v1538
      %v1540 = vpop.f32.mrb[0].mxu0
      %1541 = vmatprep.mubr.f32.mxu0 %v1422
      %1542 = vmatmul.mubr.f32.gmra.mrb[0].mxu0 %v1421
      %v1543 = vpop.f32.mrb[0].mxu0
      %v1544 = vadd.f32 0.0, %v1543
      %v1545 = vpop.f32.mrb[0].mxu0
      %1546 = vmatprep.mubr.f32.mxu0 %v1424
      %1547 = vmatmul.mubr.f32.gmra.mrb[0].mxu0 %v1423
      %v1548 = vpop.f32.mrb[0].mxu0
      %v1549 = vadd.f32 0.0, %v1548
      %v1550 = vpop.f32.mrb[0].mxu0
      %1551 = vmatprep.mubr.f32.mxu0 %v1426
      %1552 = vmatmul.mubr.f32.gmra.mrb[0].mxu0 %v1425
      %v1553 = vpop.f32.mrb[0].mxu0
      %v1554 = vadd.f32 0.0, %v1553
      %v1555 = vpop.f32.mrb[0].mxu0
      %1556 = vmatprep.mubr.f32.mxu0 %v1428
      %1557 = vmatmul.mubr.f32.gmra.mrb[0].mxu0 %v1427
      %v1558 = vpop.f32.mrb[0].mxu0
      %v1559 = vadd.f32 0.0, %v1558
      %v1560 = vpop.f32.mrb[0].mxu0
      %1561 = vmatprep.mubr.f32.mxu0 %v1430
      %1562 = vmatmul.mubr.f32.gmra.mrb[0].mxu0 %v1429
      %v1563 = vpop.f32.mrb[0].mxu0
      %v1564 = vadd.f32 0.0, %v1563
      %v1565 = vpop.f32.mrb[0].mxu0
      %1566 = vmatprep.mubr.f32.mxu0 %v1432
      %1567 = vmatmul.mubr.f32.gmra.mrb[0].mxu0 %v1431
      %v1568 = vpop.f32.mrb[0].mxu0
      %v1569 = vadd.f32 0.0, %v1568
      %v1570 = vpop.f32.mrb[0].mxu0
      %1571 = vmatprep.mubr.f32.mxu0 %v1434
      %1572 = vmatmul.mubr.f32.gmra.mrb[0].mxu0 %v1433
      %v1573 = vpop.f32.mrb[0].mxu0
      %v1574 = vadd.f32 0.0, %v1573
      %v1575 = vpop.f32.mrb[0].mxu0
      %1576 = vmatprep.mubr.f32.mxu0 %v1436
      %1577 = vmatmul.mubr.f32.gmra.mrb[0].mxu0 %v1435
      %v1578 = vpop.f32.mrb[0].mxu0
      %v1579 = vadd.f32 0.0, %v1578
      %v1580 = vpop.f32.mrb[0].mxu0
      %1581 = vdwg.mxu0
      %1582 = vst [vmem:[%s264] sm:$0xff] %v1504
      %1583 = vst [vmem:[%s264 + $0x8] sm:$0xff] %v1509
      %1584 = vst [vmem:[%s264 + $0x10] sm:$0xff] %v1514
      %1585 = vst [vmem:[%s264 + $0x18] sm:$0xff] %v1519
      %1586 = vst [vmem:[%s264 + $0x20] sm:$0xff] %v1524
      %1587 = vst [vmem:[%s264 + $0x28] sm:$0xff] %v1529
      %1588 = vst [vmem:[%s264 + $0x30] sm:$0xff] %v1534
      %1589 = vst [vmem:[%s264 + $0x38] sm:$0xff] %v1539
      %1590 = vst [vmem:[%s264 + $0x40] sm:$0xff] %v1544
      %1591 = vst [vmem:[%s264 + $0x48] sm:$0xff] %v1549
      %1592 = vst [vmem:[%s264 + $0x50] sm:$0xff] %v1554
      %1593 = vst [vmem:[%s264 + $0x58] sm:$0xff] %v1559
      %1594 = vst [vmem:[%s264 + $0x60] sm:$0xff] %v1564
      %1595 = vst [vmem:[%s264 + $0x68] sm:$0xff] %v1569
      %1596 = vst [vmem:[%s264 + $0x70] sm:$0xff] %v1574
      %1597 = vst [vmem:[%s264 + $0x78] sm:$0xff] %v1579
      %s1598 = smul.u32 16, %s19
      %p1599 = scmp.lt.s32.totalorder %s18, 1
      %s1600 = scalar_select %p1599, %s18, 1
      %p1601 = scmp.lt.s32.totalorder %s1598, 15
      %s1602 = scalar_select %p1601, %s1598, 15
      %s1603 = smul.addr %s1600, 16
      %s1604 = sadd.s32 %s1602, %s1603
      %s1605 = smul.addr %s1604, 8
      %s1606 = scalar_lea.vmem %s3, %s1605
      // Predicated region
      $region33: #{deform_gnn_forward.15} parent=31 // pred_check
        %p1607 = pneg %p128
      $region34: #{deform_gnn_forward.15} parent=31 // pred_check_branch
        %1609 = sbr.rel (%p1607) target = $region36
      $region35: #{deform_gnn_forward.15} parent=31 // pred_region
        %s1610 = smul.u32 16, %s19
      $region36: #{deform_gnn_forward.15} parent=31 // pred_fallthru
        _
    $region32: #{deform_gnn_forward.15} parent=5 // pred_fallthru
      _
    %p1611 = scmp.le.s32.totalorder 2, %s9
    // Predicated region
    $region37: #{deform_gnn_forward.15} parent=5 // pred_check
      %p1612 = pneg %p1611
    $region38: #{deform_gnn_forward.15} parent=5 // pred_check_branch
      %1614 = sbr.rel (%p1612) target = $region40
    $region39: #{deform_gnn_forward.15} parent=5 // pred_region
      %s1615 = ssub.s32 %s9, 2
      // Predicated region
      $region41: #{deform_gnn_forward.15} parent=39 // pred_check
        %p1616 = pneg %p134
      $region42: #{deform_gnn_forward.15} parent=39 // pred_check_branch
        %1618 = sbr.rel (%p1616) target = $region44
      $region43: #{deform_gnn_forward.15} parent=39 // pred_region
        %s1619 = smul.u32 16, %s21
        %p1620 = scmp.lt.s32.totalorder %s20, 1
        %s1621 = scalar_select %p1620, %s20, 1
        %p1622 = scmp.lt.s32.totalorder %s1619, 15
        %s1623 = scalar_select %p1622, %s1619, 15
        %s1624 = smul.addr %s1621, 16
        %s1625 = sadd.s32 %s1623, %s1624
        %s1626 = smul.addr %s1625, 8
        %s1627 = scalar_lea.vmem %s3, %s1626
      $region44: #{deform_gnn_forward.15} parent=39 // pred_fallthru
        _
    $region40: #{deform_gnn_forward.15} parent=5 // pred_fallthru
      _
  $region6: #{deform_gnn_forward.15} parent=0 // loop_footer
    %s13 = sadd.s32 1, %s9
  $region7: #{deform_gnn_forward.15} parent=0 // loop_footer_branch
    %8 = sbr.rel target = $region3
  $region8: #{deform_gnn_forward.15} parent=0 // loop_exit
    _

// kernel: deform_gnn_forward.16
$region0: #{deform_gnn_forward.16}
  #allocation0 [shape = 'u32[]', space=smem, size = 0x4, offset = 0x4, fixed_abs, tag = 'smem constant byte address 0x4 - core index']
  #allocation1 [shape = 'u32[144,128]{1,0:T(1,128)}', space=vmem, size = 0x12000, scoped, tag = 'internal scratch']
  %s0 = inlined_call_operand.vmem [shape: f32[2,128,256], index: 0, kind: input, shape index: {}]
  %s1 = inlined_call_operand.vmem [shape: f32[2,128,128], index: 1, kind: input, shape index: {}]
  %s2 = inlined_call_operand.vmem [shape: f32[256,256], index: 2, kind: input, shape index: {}]
  %s3 = inlined_call_operand.vmem [shape: f32[256,256], index: 3, kind: input, shape index: {}]
  %s4 = inlined_call_operand.vmem [shape: f32[1,256], index: 4, kind: input, shape index: {}]
  %s5 = inlined_call_operand.vmem [shape: f32[2,128,256], index: 5, kind: output, shape index: {}]
  %s6 = sld [smem:[#allocation0]]
  $region53: #{deform_gnn_forward.16} parent=0
    _
  %s8 = ssub.s32 1, %s6
  %s9 = scalar_select 0, %s8, %s6
  loop: start=0, step=1, limit=4
  $region2: #{deform_gnn_forward.16} parent=0 // loop_pre_header
    _
  $region3: #{deform_gnn_forward.16} parent=0 // loop_header
    %s11 = sphi 0, %s15
    %p12 = scmp.ge.s32.totalorder %s11, 4
    %s18 = sphi 0, %s30
    %s19 = sphi 0, %s26
    %s20 = sphi 0, %s18
    %s21 = sphi 0, %s19
    %s22 = sphi 0, %s20
    %s23 = sphi 0, %s21
    %s33 = sphi 0, %s35
    %s36 = sphi 0, %s33
    %s37 = sphi 0, %s36
    %s53 = sphi 0, %s37
    %s61 = sphi 0, %s63
    %s64 = sphi 0, %s61
    %s65 = sphi 0, %s64
    %s81 = sphi 0, %s65
    %s85 = sphi 0, %s85
    %s87 = sphi 0, %s85
    %s88 = sphi 0, %s87
    %s102 = sphi 0, %s88
    %s106 = sphi 0, %s106
    %s108 = sphi 0, %s106
    %s109 = sphi 0, %s108
    %s123 = sphi 0, %s109
    %s127 = sphi 0, %s127
    %s129 = sphi 0, %s127
    %s130 = sphi 0, %s129
    %s144 = sphi 0, %s130
    %s152 = sphi 0, %s154
    %s155 = sphi 0, %s152
    %s156 = sphi 0, %s155
    %s172 = sphi 0, %s156
  $region4: #{deform_gnn_forward.16} parent=0 // loop_header_branch
    %14 = sbr.rel (%p12) target = $region8
  $region5: #{deform_gnn_forward.16} parent=0 // loop_body
    %s16 = ssub.s32 %s11, 1
    %s17 = ssub.s32 %s11, 2
    %s24 = sadd.s32 1, %s19
    %p25 = scmp.ge.s32.totalorder %s24, 1
    %s26 = scalar_select %p25, 0, %s24
    %s27 = sadd.s32 1, %s18
    %s28 = scalar_select %p25, %s27, %s18
    %p29 = scmp.ge.s32.totalorder %s28, 2
    %s30 = scalar_select %p29, 0, %s28
    %s31 = ssub.s32 %s18, %s30
    %p32 = scmp.eq.s32.totalorder %s31, 0
    %s34 = sadd.s32 %s33, 1
    %s35 = scalar_select %p32, %s33, %s34
    %p38 = pneg %p32
    %p39 = scmp.eq.s32.totalorder %s11, 1
    %p40 = por %p38, %p39
    %p41 = scmp.ne.s32.totalorder %s33, %s36
    %p42 = scmp.eq.s32.totalorder %s11, 0
    %p43 = por %p41, %p42
    %p44 = scmp.ne.s32.totalorder %s33, %s36
    %p45 = scmp.eq.s32.totalorder %s16, 1
    %p46 = por %p44, %p45
    %p47 = scmp.ne.s32.totalorder %s36, %s37
    %p48 = scmp.eq.s32.totalorder %s16, 0
    %p49 = por %p47, %p48
    %p50 = scmp.ne.s32.totalorder %s36, %s37
    %p51 = scmp.eq.s32.totalorder %s17, 1
    %p52 = por %p50, %p51
    %p54 = scmp.ne.s32.totalorder %s37, %s53
    %p55 = scmp.eq.s32.totalorder %s17, 0
    %p56 = por %p54, %p55
    %s57 = ssub.s32 %s18, %s30
    %s58 = ssub.s32 %s19, %s26
    %s59 = sor.u32 %s57, %s58
    %p60 = scmp.eq.s32.totalorder %s59, 0
    %s62 = sadd.s32 %s61, 1
    %s63 = scalar_select %p60, %s61, %s62
    %p66 = pneg %p60
    %p67 = scmp.eq.s32.totalorder %s11, 1
    %p68 = por %p66, %p67
    %p69 = scmp.ne.s32.totalorder %s61, %s64
    %p70 = scmp.eq.s32.totalorder %s11, 0
    %p71 = por %p69, %p70
    %p72 = scmp.ne.s32.totalorder %s61, %s64
    %p73 = scmp.eq.s32.totalorder %s16, 1
    %p74 = por %p72, %p73
    %p75 = scmp.ne.s32.totalorder %s64, %s65
    %p76 = scmp.eq.s32.totalorder %s16, 0
    %p77 = por %p75, %p76
    %p78 = scmp.ne.s32.totalorder %s64, %s65
    %p79 = scmp.eq.s32.totalorder %s17, 1
    %p80 = por %p78, %p79
    %p82 = scmp.ne.s32.totalorder %s65, %s81
    %p83 = scmp.eq.s32.totalorder %s17, 0
    %p84 = por %p82, %p83
    %s86 = sadd.s32 %s85, 1
    %p89 = scmp.eq.s32.totalorder %s11, 1
    %p90 = scmp.ne.s32.totalorder %s85, %s87
    %p91 = scmp.eq.s32.totalorder %s11, 0
    %p92 = por %p90, %p91
    %p93 = scmp.ne.s32.totalorder %s85, %s87
    %p94 = scmp.eq.s32.totalorder %s16, 1
    %p95 = por %p93, %p94
    %p96 = scmp.ne.s32.totalorder %s87, %s88
    %p97 = scmp.eq.s32.totalorder %s16, 0
    %p98 = por %p96, %p97
    %p99 = scmp.ne.s32.totalorder %s87, %s88
    %p100 = scmp.eq.s32.totalorder %s17, 1
    %p101 = por %p99, %p100
    %p103 = scmp.ne.s32.totalorder %s88, %s102
    %p104 = scmp.eq.s32.totalorder %s17, 0
    %p105 = por %p103, %p104
    %s107 = sadd.s32 %s106, 1
    %p110 = scmp.eq.s32.totalorder %s11, 1
    %p111 = scmp.ne.s32.totalorder %s106, %s108
    %p112 = scmp.eq.s32.totalorder %s11, 0
    %p113 = por %p111, %p112
    %p114 = scmp.ne.s32.totalorder %s106, %s108
    %p115 = scmp.eq.s32.totalorder %s16, 1
    %p116 = por %p114, %p115
    %p117 = scmp.ne.s32.totalorder %s108, %s109
    %p118 = scmp.eq.s32.totalorder %s16, 0
    %p119 = por %p117, %p118
    %p120 = scmp.ne.s32.totalorder %s108, %s109
    %p121 = scmp.eq.s32.totalorder %s17, 1
    %p122 = por %p120, %p121
    %p124 = scmp.ne.s32.totalorder %s109, %s123
    %p125 = scmp.eq.s32.totalorder %s17, 0
    %p126 = por %p124, %p125
    %s128 = sadd.s32 %s127, 1
    %p131 = scmp.eq.s32.totalorder %s11, 1
    %p132 = scmp.ne.s32.totalorder %s127, %s129
    %p133 = scmp.eq.s32.totalorder %s11, 0
    %p134 = por %p132, %p133
    %p135 = scmp.ne.s32.totalorder %s127, %s129
    %p136 = scmp.eq.s32.totalorder %s16, 1
    %p137 = por %p135, %p136
    %p138 = scmp.ne.s32.totalorder %s129, %s130
    %p139 = scmp.eq.s32.totalorder %s16, 0
    %p140 = por %p138, %p139
    %p141 = scmp.ne.s32.totalorder %s129, %s130
    %p142 = scmp.eq.s32.totalorder %s17, 1
    %p143 = por %p141, %p142
    %p145 = scmp.ne.s32.totalorder %s130, %s144
    %p146 = scmp.eq.s32.totalorder %s17, 0
    %p147 = por %p145, %p146
    %s148 = ssub.s32 %s18, %s30
    %s149 = ssub.s32 %s19, %s26
    %s150 = sor.u32 %s148, %s149
    %p151 = scmp.eq.s32.totalorder %s150, 0
    %s153 = sadd.s32 %s152, 1
    %s154 = scalar_select %p151, %s152, %s153
    %p157 = pneg %p151
    %p158 = scmp.eq.s32.totalorder %s11, 1
    %p159 = por %p157, %p158
    %p160 = scmp.ne.s32.totalorder %s152, %s155
    %p161 = scmp.eq.s32.totalorder %s11, 0
    %p162 = por %p160, %p161
    %p163 = scmp.ne.s32.totalorder %s152, %s155
    %p164 = scmp.eq.s32.totalorder %s16, 1
    %p165 = por %p163, %p164
    %p166 = scmp.ne.s32.totalorder %s155, %s156
    %p167 = scmp.eq.s32.totalorder %s16, 0
    %p168 = por %p166, %p167
    %p169 = scmp.ne.s32.totalorder %s155, %s156
    %p170 = scmp.eq.s32.totalorder %s17, 1
    %p171 = por %p169, %p170
    %p173 = scmp.ne.s32.totalorder %s156, %s172
    %p174 = scmp.eq.s32.totalorder %s17, 0
    %p175 = por %p173, %p174
    %p176 = scmp.le.s32.totalorder 1, %s11
    %p177 = scmp.lt.s32.totalorder %s11, 3
    %p178 = pnand %p176, %p177
    %p179 = pneg %p178
    // Predicated region
    $region9: #{deform_gnn_forward.16} parent=5 // pred_check
      _
    $region10: #{deform_gnn_forward.16} parent=5 // pred_check_branch
      %181 = sbr.rel (%p178) target = $region12
    $region11: #{deform_gnn_forward.16} parent=5 // pred_region
      %s182 = ssub.s32 %s11, 1
      // Predicated region
      $region13: #{deform_gnn_forward.16} parent=11 // pred_check
        %p183 = pneg %p98
      $region14: #{deform_gnn_forward.16} parent=11 // pred_check_branch
        %185 = sbr.rel (%p183) target = $region16
      $region15: #{deform_gnn_forward.16} parent=11 // pred_region
        _
      $region16: #{deform_gnn_forward.16} parent=11 // pred_fallthru
        _
      // Predicated region
      $region17: #{deform_gnn_forward.16} parent=11 // pred_check
        %p186 = pneg %p119
      $region18: #{deform_gnn_forward.16} parent=11 // pred_check_branch
        %188 = sbr.rel (%p186) target = $region20
      $region19: #{deform_gnn_forward.16} parent=11 // pred_region
        _
      $region20: #{deform_gnn_forward.16} parent=11 // pred_fallthru
        _
      // Predicated region
      $region21: #{deform_gnn_forward.16} parent=11 // pred_check
        %p189 = pneg %p140
      $region22: #{deform_gnn_forward.16} parent=11 // pred_check_branch
        %191 = sbr.rel (%p189) target = $region24
      $region23: #{deform_gnn_forward.16} parent=11 // pred_region
        _
      $region24: #{deform_gnn_forward.16} parent=11 // pred_fallthru
        _
    $region12: #{deform_gnn_forward.16} parent=5 // pred_fallthru
      _
    %p192 = scmp.lt.s32.totalorder %s11, 2
    // Predicated region
    $region25: #{deform_gnn_forward.16} parent=5 // pred_check
      %p193 = pneg %p192
    $region26: #{deform_gnn_forward.16} parent=5 // pred_check_branch
      %195 = sbr.rel (%p193) target = $region28
    $region27: #{deform_gnn_forward.16} parent=5 // pred_region
      // Predicated region
      $region29: #{deform_gnn_forward.16} parent=27 // pred_check
        %p196 = pneg %p43
      $region30: #{deform_gnn_forward.16} parent=27 // pred_check_branch
        %198 = sbr.rel (%p196) target = $region32
      $region31: #{deform_gnn_forward.16} parent=27 // pred_region
        %p199 = scmp.lt.s32.totalorder %s18, 1
        %s200 = scalar_select %p199, %s18, 1
        %s201 = smul.addr %s200, 32
        %s202 = smul.addr %s201, 8
        %s203 = scalar_lea.vmem %s0, %s202
      $region32: #{deform_gnn_forward.16} parent=27 // pred_fallthru
        _
      // Predicated region
      $region33: #{deform_gnn_forward.16} parent=27 // pred_check
        %p204 = pneg %p71
      $region34: #{deform_gnn_forward.16} parent=27 // pred_check_branch
        %206 = sbr.rel (%p204) target = $region36
      $region35: #{deform_gnn_forward.16} parent=27 // pred_region
        %s207 = smul.u32 16, %s19
        %p208 = scmp.lt.s32.totalorder %s18, 1
        %s209 = scalar_select %p208, %s18, 1
        %p210 = scmp.lt.s32.totalorder %s207, 15
        %s211 = scalar_select %p210, %s207, 15
        %s212 = smul.addr %s209, 16
        %s213 = sadd.s32 %s211, %s212
        %s214 = smul.addr %s213, 8
        %s215 = scalar_lea.vmem %s1, %s214
        %s216 = smul.u32 16, %s19
      $region36: #{deform_gnn_forward.16} parent=27 // pred_fallthru
        _
    $region28: #{deform_gnn_forward.16} parent=5 // pred_fallthru
      _
    %p217 = scmp.le.s32.totalorder 1, %s11
    %p218 = scmp.lt.s32.totalorder %s11, 3
    %p219 = pnand %p217, %p218
    %p220 = pneg %p219
    // Predicated region
    $region37: #{deform_gnn_forward.16} parent=5 // pred_check
      _
    $region38: #{deform_gnn_forward.16} parent=5 // pred_check_branch
      %222 = sbr.rel (%p219) target = $region40
    $region39: #{deform_gnn_forward.16} parent=5 // pred_region
      %s223 = ssub.s32 %s11, 1
      %p224 = scmp.lt.s32.totalorder %s20, 1
      %s225 = scalar_select %p224, %s20, 1
      %s226 = smul.addr %s225, 32
      %s227 = smul.addr %s226, 8
      %s228 = scalar_lea.vmem %s0, %s227
      %p229 = pneg %p49
      %p230 = pneg %p46
      %s231 = smul.u32 16, %s21
      %p232 = scmp.lt.s32.totalorder %s20, 1
      %s233 = scalar_select %p232, %s20, 1
      %p234 = scmp.lt.s32.totalorder %s231, 15
      %s235 = scalar_select %p234, %s231, 15
      %s236 = smul.addr %s233, 16
      %s237 = sadd.s32 %s235, %s236
      %s238 = smul.addr %s237, 8
      %s239 = scalar_lea.vmem %s1, %s238
      %p240 = pneg %p77
      %p241 = pneg %p74
      %p242 = pneg %p98
      %p243 = pneg %p95
      %p244 = pneg %p119
      %p245 = pneg %p116
      %p246 = pneg %p140
      %p247 = pneg %p137
      %p248 = pneg %p168
      %p249 = pneg %p165
      %s250 = smul.u32 16, %s21
      %p251 = scmp.lt.s32.totalorder %s20, 1
      %s252 = scalar_select %p251, %s20, 1
      %p253 = scmp.lt.s32.totalorder %s250, 15
      %s254 = scalar_select %p253, %s250, 15
      %s255 = smul.addr %s254, 2
      %s256 = smul.addr %s252, 32
      %s257 = sadd.s32 %s255, %s256
      %s258 = smul.addr %s257, 8
      %s259 = scalar_lea.vmem %s5, %s258
      %p260 = scmp.lt.s32.totalorder %s20, 1
      %s261 = scalar_select %p260, %s20, 1
      %s262 = smul.addr %s261, 32
      %s263 = smul.addr %s262, 8
      %s264 = scalar_lea.vmem %s0, %s263
      %s265 = smul.u32 16, %s21
      %p266 = scmp.lt.s32.totalorder %s20, 1
      %s267 = scalar_select %p266, %s20, 1
      %p268 = scmp.lt.s32.totalorder %s265, 15
      %s269 = scalar_select %p268, %s265, 15
      %s270 = smul.addr %s267, 16
      %s271 = sadd.s32 %s269, %s270
      %s272 = smul.addr %s271, 8
      %s273 = scalar_lea.vmem %s1, %s272
      %s274 = smul.u32 16, %s21
      %s275 = smul.u32 16, %s21
      %p276 = scmp.lt.s32.totalorder %s20, 1
      %s277 = scalar_select %p276, %s20, 1
      %p278 = scmp.lt.s32.totalorder %s275, 15
      %s279 = scalar_select %p278, %s275, 15
      %s280 = smul.addr %s279, 2
      %s281 = smul.addr %s277, 32
      %s282 = sadd.s32 %s280, %s281
      %s283 = smul.addr %s282, 8
      %s284 = scalar_lea.vmem %s5, %s283
      %s285 = smul.u32 16, %s21
      %v286 = vld [vmem:[%s264] sm:$0xff]
      %v287 = vld [vmem:[%s264 + $0x8] sm:$0xff]
      %v288 = vld [vmem:[%s264 + $0x10] sm:$0xff]
      %v289 = vld [vmem:[%s264 + $0x18] sm:$0xff]
      %v290 = vld [vmem:[%s264 + $0x20] sm:$0xff]
      %v291 = vld [vmem:[%s264 + $0x28] sm:$0xff]
      %v292 = vld [vmem:[%s264 + $0x30] sm:$0xff]
      %v293 = vld [vmem:[%s264 + $0x38] sm:$0xff]
      %v294 = vld [vmem:[%s264 + $0x40] sm:$0xff]
      %v295 = vld [vmem:[%s264 + $0x48] sm:$0xff]
      %v296 = vld [vmem:[%s264 + $0x50] sm:$0xff]
      %v297 = vld [vmem:[%s264 + $0x58] sm:$0xff]
      %v298 = vld [vmem:[%s264 + $0x60] sm:$0xff]
      %v299 = vld [vmem:[%s264 + $0x68] sm:$0xff]
      %v300 = vld [vmem:[%s264 + $0x70] sm:$0xff]
      %v301 = vld [vmem:[%s264 + $0x78] sm:$0xff]
      %v302 = vld [vmem:[%s264 + $0x80] sm:$0xff]
      %v303 = vld [vmem:[%s264 + $0x88] sm:$0xff]
      %v304 = vld [vmem:[%s264 + $0x90] sm:$0xff]
      %v305 = vld [vmem:[%s264 + $0x98] sm:$0xff]
      %v306 = vld [vmem:[%s264 + $0xa0] sm:$0xff]
      %v307 = vld [vmem:[%s264 + $0xa8] sm:$0xff]
      %v308 = vld [vmem:[%s264 + $0xb0] sm:$0xff]
      %v309 = vld [vmem:[%s264 + $0xb8] sm:$0xff]
      %v310 = vld [vmem:[%s264 + $0xc0] sm:$0xff]
      %v311 = vld [vmem:[%s264 + $0xc8] sm:$0xff]
      %v312 = vld [vmem:[%s264 + $0xd0] sm:$0xff]
      %v313 = vld [vmem:[%s264 + $0xd8] sm:$0xff]
      %v314 = vld [vmem:[%s264 + $0xe0] sm:$0xff]
      %v315 = vld [vmem:[%s264 + $0xe8] sm:$0xff]
      %v316 = vld [vmem:[%s264 + $0xf0] sm:$0xff]
      %v317 = vld [vmem:[%s264 + $0xf8] sm:$0xff]
      %v318 = vld [vmem:[%s273] sm:$0xff]
      %v319 = vld [vmem:[%s273 + $0x8] sm:$0xff]
      %v320 = vld [vmem:[%s273 + $0x10] sm:$0xff]
      %v321 = vld [vmem:[%s273 + $0x18] sm:$0xff]
      %v322 = vld [vmem:[%s273 + $0x20] sm:$0xff]
      %v323 = vld [vmem:[%s273 + $0x28] sm:$0xff]
      %v324 = vld [vmem:[%s273 + $0x30] sm:$0xff]
      %v325 = vld [vmem:[%s273 + $0x38] sm:$0xff]
      %v326 = vld [vmem:[%s273 + $0x40] sm:$0xff]
      %v327 = vld [vmem:[%s273 + $0x48] sm:$0xff]
      %v328 = vld [vmem:[%s273 + $0x50] sm:$0xff]
      %v329 = vld [vmem:[%s273 + $0x58] sm:$0xff]
      %v330 = vld [vmem:[%s273 + $0x60] sm:$0xff]
      %v331 = vld [vmem:[%s273 + $0x68] sm:$0xff]
      %v332 = vld [vmem:[%s273 + $0x70] sm:$0xff]
      %v333 = vld [vmem:[%s273 + $0x78] sm:$0xff]
      %334 = vmatprep.subr.mxu0 %v287
      %335 = vmatpush1.msra.mxu0 %v286
      %336 = vmatprep.subr.mxu0 %v289
      %337 = vmatpush1.msra.mxu0 %v288
      %338 = vmatprep.subr.mxu0 %v291
      %339 = vmatpush1.msra.mxu0 %v290
      %340 = vmatprep.subr.mxu0 %v293
      %341 = vmatpush1.msra.mxu0 %v292
      %342 = vmatprep.subr.mxu0 %v295
      %343 = vmatpush1.msra.mxu0 %v294
      %344 = vmatprep.subr.mxu0 %v297
      %345 = vmatpush1.msra.mxu0 %v296
      %346 = vmatprep.subr.mxu0 %v299
      %347 = vmatpush1.msra.mxu0 %v298
      %348 = vmatprep.subr.mxu0 %v301
      %349 = vmatpush1.msra.mxu0 %v300
      %350 = vmatprep.subr.mxu0 %v303
      %351 = vmatpush1.msra.mxu0 %v302
      %352 = vmatprep.subr.mxu0 %v305
      %353 = vmatpush1.msra.mxu0 %v304
      %354 = vmatprep.subr.mxu0 %v307
      %355 = vmatpush1.msra.mxu0 %v306
      %356 = vmatprep.subr.mxu0 %v309
      %357 = vmatpush1.msra.mxu0 %v308
      %358 = vmatprep.subr.mxu0 %v311
      %359 = vmatpush1.msra.mxu0 %v310
      %360 = vmatprep.subr.mxu0 %v313
      %361 = vmatpush1.msra.mxu0 %v312
      %362 = vmatprep.subr.mxu0 %v315
      %363 = vmatpush1.msra.mxu0 %v314
      %364 = vmatprep.subr.mxu0 %v317
      %365 = vmatpush1.msra.mxu0 %v316
      %366 = vmatprep.subr.mxu0 0.0
      %367 = vmatpush1.msra.mxu0 0.0
      %368 = vmatprep.subr.mxu0 0.0
      %369 = vmatpush1.msra.mxu0 0.0
      %370 = vmatprep.subr.mxu0 0.0
      %371 = vmatpush1.msra.mxu0 0.0
      %372 = vmatprep.subr.mxu0 0.0
      %373 = vmatpush1.msra.mxu0 0.0
      %374 = vmatprep.subr.mxu0 0.0
      %375 = vmatpush1.msra.mxu0 0.0
      %376 = vmatprep.subr.mxu0 0.0
      %377 = vmatpush1.msra.mxu0 0.0
      %378 = vmatprep.subr.mxu0 0.0
      %379 = vmatpush1.msra.mxu0 0.0
      %380 = vmatprep.subr.mxu0 0.0
      %381 = vmatpush1.msra.mxu0 0.0
      %382 = vmatprep.subr.mxu0 0.0
      %383 = vmatpush1.msra.mxu0 0.0
      %384 = vmatprep.subr.mxu0 0.0
      %385 = vmatpush1.msra.mxu0 0.0
      %386 = vmatprep.subr.mxu0 0.0
      %387 = vmatpush1.msra.mxu0 0.0
      %388 = vmatprep.subr.mxu0 0.0
      %389 = vmatpush1.msra.mxu0 0.0
      %390 = vmatprep.subr.mxu0 0.0
      %391 = vmatpush1.msra.mxu0 0.0
      %392 = vmatprep.subr.mxu0 0.0
      %393 = vmatpush1.msra.mxu0 0.0
      %394 = vmatprep.subr.mxu0 0.0
      %395 = vmatpush1.msra.mxu0 0.0
      %396 = vmatprep.subr.mxu0 0.0
      %397 = vmatpush1.msra.mxu0 0.0
      %398 = vmatprep.mubr.f32.mxu0 0.0
      %399 = vmatmul.mubr.f32.gmra.mrb[0].mxu0 %v318
      %v400 = vpop.f32.mrb[0].mxu0
      %v401 = vadd.f32 0.0, %v400
      %v402 = vpop.f32.mrb[0].mxu0
      %v403 = vadd.f32 0.0, %v402
      %404 = vmatprep.mubr.f32.mxu0 0.0
      %405 = vmatmul.mubr.f32.gmra.mrb[0].mxu0 %v319
      %v406 = vpop.f32.mrb[0].mxu0
      %v407 = vadd.f32 0.0, %v406
      %v408 = vpop.f32.mrb[0].mxu0
      %v409 = vadd.f32 0.0, %v408
      %410 = vmatprep.mubr.f32.mxu0 0.0
      %411 = vmatmul.mubr.f32.gmra.mrb[0].mxu0 %v320
      %v412 = vpop.f32.mrb[0].mxu0
      %v413 = vadd.f32 0.0, %v412
      %v414 = vpop.f32.mrb[0].mxu0
      %v415 = vadd.f32 0.0, %v414
      %416 = vmatprep.mubr.f32.mxu0 0.0
      %417 = vmatmul.mubr.f32.gmra.mrb[0].mxu0 %v321
      %v418 = vpop.f32.mrb[0].mxu0
      %v419 = vadd.f32 0.0, %v418
      %v420 = vpop.f32.mrb[0].mxu0
      %v421 = vadd.f32 0.0, %v420
      %422 = vmatprep.mubr.f32.mxu0 0.0
      %423 = vmatmul.mubr.f32.gmra.mrb[0].mxu0 %v322
      %v424 = vpop.f32.mrb[0].mxu0
      %v425 = vadd.f32 0.0, %v424
      %v426 = vpop.f32.mrb[0].mxu0
      %v427 = vadd.f32 0.0, %v426
      %428 = vmatprep.mubr.f32.mxu0 0.0
      %429 = vmatmul.mubr.f32.gmra.mrb[0].mxu0 %v323
      %v430 = vpop.f32.mrb[0].mxu0
      %v431 = vadd.f32 0.0, %v430
      %v432 = vpop.f32.mrb[0].mxu0
      %v433 = vadd.f32 0.0, %v432
      %434 = vmatprep.mubr.f32.mxu0 0.0
      %435 = vmatmul.mubr.f32.gmra.mrb[0].mxu0 %v324
      %v436 = vpop.f32.mrb[0].mxu0
      %v437 = vadd.f32 0.0, %v436
      %v438 = vpop.f32.mrb[0].mxu0
      %v439 = vadd.f32 0.0, %v438
      %440 = vmatprep.mubr.f32.mxu0 0.0
      %441 = vmatmul.mubr.f32.gmra.mrb[0].mxu0 %v325
      %v442 = vpop.f32.mrb[0].mxu0
      %v443 = vadd.f32 0.0, %v442
      %v444 = vpop.f32.mrb[0].mxu0
      %v445 = vadd.f32 0.0, %v444
      %446 = vmatprep.mubr.f32.mxu0 0.0
      %447 = vmatmul.mubr.f32.gmra.mrb[0].mxu0 %v326
      %v448 = vpop.f32.mrb[0].mxu0
      %v449 = vadd.f32 0.0, %v448
      %v450 = vpop.f32.mrb[0].mxu0
      %v451 = vadd.f32 0.0, %v450
      %452 = vmatprep.mubr.f32.mxu0 0.0
      %453 = vmatmul.mubr.f32.gmra.mrb[0].mxu0 %v327
      %v454 = vpop.f32.mrb[0].mxu0
      %v455 = vadd.f32 0.0, %v454
      %v456 = vpop.f32.mrb[0].mxu0
      %v457 = vadd.f32 0.0, %v456
      %458 = vmatprep.mubr.f32.mxu0 0.0
      %459 = vmatmul.mubr.f32.gmra.mrb[0].mxu0 %v328
      %v460 = vpop.f32.mrb[0].mxu0
      %v461 = vadd.f32 0.0, %v460
      %v462 = vpop.f32.mrb[0].mxu0
      %v463 = vadd.f32 0.0, %v462
      %464 = vmatprep.mubr.f32.mxu0 0.0
      %465 = vmatmul.mubr.f32.gmra.mrb[0].mxu0 %v329
      %v466 = vpop.f32.mrb[0].mxu0
      %v467 = vadd.f32 0.0, %v466
      %v468 = vpop.f32.mrb[0].mxu0
      %v469 = vadd.f32 0.0, %v468
      %470 = vmatprep.mubr.f32.mxu0 0.0
      %471 = vmatmul.mubr.f32.gmra.mrb[0].mxu0 %v330
      %v472 = vpop.f32.mrb[0].mxu0
      %v473 = vadd.f32 0.0, %v472
      %v474 = vpop.f32.mrb[0].mxu0
      %v475 = vadd.f32 0.0, %v474
      %476 = vmatprep.mubr.f32.mxu0 0.0
      %477 = vmatmul.mubr.f32.gmra.mrb[0].mxu0 %v331
      %v478 = vpop.f32.mrb[0].mxu0
      %v479 = vadd.f32 0.0, %v478
      %v480 = vpop.f32.mrb[0].mxu0
      %v481 = vadd.f32 0.0, %v480
      %482 = vmatprep.mubr.f32.mxu0 0.0
      %483 = vmatmul.mubr.f32.gmra.mrb[0].mxu0 %v332
      %v484 = vpop.f32.mrb[0].mxu0
      %v485 = vadd.f32 0.0, %v484
      %v486 = vpop.f32.mrb[0].mxu0
      %v487 = vadd.f32 0.0, %v486
      %488 = vmatprep.mubr.f32.mxu0 0.0
      %489 = vmatmul.mubr.f32.gmra.mrb[0].mxu0 %v333
      %v490 = vpop.f32.mrb[0].mxu0
      %v491 = vadd.f32 0.0, %v490
      %v492 = vpop.f32.mrb[0].mxu0
      %v493 = vadd.f32 0.0, %v492
      %494 = vdwg.mxu0
      %v495 = vld [vmem:[%s2] sm:$0xff]
      %v496 = vld [vmem:[%s2 + $0x8] sm:$0xff]
      %v497 = vld [vmem:[%s2 + $0x10] sm:$0xff]
      %v498 = vld [vmem:[%s2 + $0x18] sm:$0xff]
      %v499 = vld [vmem:[%s2 + $0x20] sm:$0xff]
      %v500 = vld [vmem:[%s2 + $0x28] sm:$0xff]
      %v501 = vld [vmem:[%s2 + $0x30] sm:$0xff]
      %v502 = vld [vmem:[%s2 + $0x38] sm:$0xff]
      %v503 = vld [vmem:[%s2 + $0x40] sm:$0xff]
      %v504 = vld [vmem:[%s2 + $0x48] sm:$0xff]
      %v505 = vld [vmem:[%s2 + $0x50] sm:$0xff]
      %v506 = vld [vmem:[%s2 + $0x58] sm:$0xff]
      %v507 = vld [vmem:[%s2 + $0x60] sm:$0xff]
      %v508 = vld [vmem:[%s2 + $0x68] sm:$0xff]
      %v509 = vld [vmem:[%s2 + $0x70] sm:$0xff]
      %v510 = vld [vmem:[%s2 + $0x78] sm:$0xff]
      %v511 = vld [vmem:[%s2 + $0x80] sm:$0xff]
      %v512 = vld [vmem:[%s2 + $0x88] sm:$0xff]
      %v513 = vld [vmem:[%s2 + $0x90] sm:$0xff]
      %v514 = vld [vmem:[%s2 + $0x98] sm:$0xff]
      %v515 = vld [vmem:[%s2 + $0xa0] sm:$0xff]
      %v516 = vld [vmem:[%s2 + $0xa8] sm:$0xff]
      %v517 = vld [vmem:[%s2 + $0xb0] sm:$0xff]
      %v518 = vld [vmem:[%s2 + $0xb8] sm:$0xff]
      %v519 = vld [vmem:[%s2 + $0xc0] sm:$0xff]
      %v520 = vld [vmem:[%s2 + $0xc8] sm:$0xff]
      %v521 = vld [vmem:[%s2 + $0xd0] sm:$0xff]
      %v522 = vld [vmem:[%s2 + $0xd8] sm:$0xff]
      %v523 = vld [vmem:[%s2 + $0xe0] sm:$0xff]
      %v524 = vld [vmem:[%s2 + $0xe8] sm:$0xff]
      %v525 = vld [vmem:[%s2 + $0xf0] sm:$0xff]
      %v526 = vld [vmem:[%s2 + $0xf8] sm:$0xff]
      %v527 = vld [vmem:[%s2 + $0x100] sm:$0xff]
      %v528 = vld [vmem:[%s2 + $0x108] sm:$0xff]
      %v529 = vld [vmem:[%s2 + $0x110] sm:$0xff]
      %v530 = vld [vmem:[%s2 + $0x118] sm:$0xff]
      %v531 = vld [vmem:[%s2 + $0x120] sm:$0xff]
      %v532 = vld [vmem:[%s2 + $0x128] sm:$0xff]
      %v533 = vld [vmem:[%s2 + $0x130] sm:$0xff]
      %v534 = vld [vmem:[%s2 + $0x138] sm:$0xff]
      %v535 = vld [vmem:[%s2 + $0x140] sm:$0xff]
      %v536 = vld [vmem:[%s2 + $0x148] sm:$0xff]
      %v537 = vld [vmem:[%s2 + $0x150] sm:$0xff]
      %v538 = vld [vmem:[%s2 + $0x158] sm:$0xff]
      %v539 = vld [vmem:[%s2 + $0x160] sm:$0xff]
      %v540 = vld [vmem:[%s2 + $0x168] sm:$0xff]
      %v541 = vld [vmem:[%s2 + $0x170] sm:$0xff]
      %v542 = vld [vmem:[%s2 + $0x178] sm:$0xff]
      %v543 = vld [vmem:[%s2 + $0x180] sm:$0xff]
      %v544 = vld [vmem:[%s2 + $0x188] sm:$0xff]
      %v545 = vld [vmem:[%s2 + $0x190] sm:$0xff]
      %v546 = vld [vmem:[%s2 + $0x198] sm:$0xff]
      %v547 = vld [vmem:[%s2 + $0x1a0] sm:$0xff]
      %v548 = vld [vmem:[%s2 + $0x1a8] sm:$0xff]
      %v549 = vld [vmem:[%s2 + $0x1b0] sm:$0xff]
      %v550 = vld [vmem:[%s2 + $0x1b8] sm:$0xff]
      %v551 = vld [vmem:[%s2 + $0x1c0] sm:$0xff]
      %v552 = vld [vmem:[%s2 + $0x1c8] sm:$0xff]
      %v553 = vld [vmem:[%s2 + $0x1d0] sm:$0xff]
      %v554 = vld [vmem:[%s2 + $0x1d8] sm:$0xff]
      %v555 = vld [vmem:[%s2 + $0x1e0] sm:$0xff]
      %v556 = vld [vmem:[%s2 + $0x1e8] sm:$0xff]
      %v557 = vld [vmem:[%s2 + $0x1f0] sm:$0xff]
      %v558 = vld [vmem:[%s2 + $0x1f8] sm:$0xff]
      %v559 = vld [vmem:[%s3] sm:$0xff]
      %v560 = vld [vmem:[%s3 + $0x8] sm:$0xff]
      %v561 = vld [vmem:[%s3 + $0x10] sm:$0xff]
      %v562 = vld [vmem:[%s3 + $0x18] sm:$0xff]
      %v563 = vld [vmem:[%s3 + $0x20] sm:$0xff]
      %v564 = vld [vmem:[%s3 + $0x28] sm:$0xff]
      %v565 = vld [vmem:[%s3 + $0x30] sm:$0xff]
      %v566 = vld [vmem:[%s3 + $0x38] sm:$0xff]
      %v567 = vld [vmem:[%s3 + $0x40] sm:$0xff]
      %v568 = vld [vmem:[%s3 + $0x48] sm:$0xff]
      %v569 = vld [vmem:[%s3 + $0x50] sm:$0xff]
      %v570 = vld [vmem:[%s3 + $0x58] sm:$0xff]
      %v571 = vld [vmem:[%s3 + $0x60] sm:$0xff]
      %v572 = vld [vmem:[%s3 + $0x68] sm:$0xff]
      %v573 = vld [vmem:[%s3 + $0x70] sm:$0xff]
      %v574 = vld [vmem:[%s3 + $0x78] sm:$0xff]
      %v575 = vld [vmem:[%s3 + $0x80] sm:$0xff]
      %v576 = vld [vmem:[%s3 + $0x88] sm:$0xff]
      %v577 = vld [vmem:[%s3 + $0x90] sm:$0xff]
      %v578 = vld [vmem:[%s3 + $0x98] sm:$0xff]
      %v579 = vld [vmem:[%s3 + $0xa0] sm:$0xff]
      %v580 = vld [vmem:[%s3 + $0xa8] sm:$0xff]
      %v581 = vld [vmem:[%s3 + $0xb0] sm:$0xff]
      %v582 = vld [vmem:[%s3 + $0xb8] sm:$0xff]
      %v583 = vld [vmem:[%s3 + $0xc0] sm:$0xff]
      %v584 = vld [vmem:[%s3 + $0xc8] sm:$0xff]
      %v585 = vld [vmem:[%s3 + $0xd0] sm:$0xff]
      %v586 = vld [vmem:[%s3 + $0xd8] sm:$0xff]
      %v587 = vld [vmem:[%s3 + $0xe0] sm:$0xff]
      %v588 = vld [vmem:[%s3 + $0xe8] sm:$0xff]
      %v589 = vld [vmem:[%s3 + $0xf0] sm:$0xff]
      %v590 = vld [vmem:[%s3 + $0xf8] sm:$0xff]
      %v591 = vld [vmem:[%s3 + $0x100] sm:$0xff]
      %v592 = vld [vmem:[%s3 + $0x108] sm:$0xff]
      %v593 = vld [vmem:[%s3 + $0x110] sm:$0xff]
      %v594 = vld [vmem:[%s3 + $0x118] sm:$0xff]
      %v595 = vld [vmem:[%s3 + $0x120] sm:$0xff]
      %v596 = vld [vmem:[%s3 + $0x128] sm:$0xff]
      %v597 = vld [vmem:[%s3 + $0x130] sm:$0xff]
      %v598 = vld [vmem:[%s3 + $0x138] sm:$0xff]
      %v599 = vld [vmem:[%s3 + $0x140] sm:$0xff]
      %v600 = vld [vmem:[%s3 + $0x148] sm:$0xff]
      %v601 = vld [vmem:[%s3 + $0x150] sm:$0xff]
      %v602 = vld [vmem:[%s3 + $0x158] sm:$0xff]
      %v603 = vld [vmem:[%s3 + $0x160] sm:$0xff]
      %v604 = vld [vmem:[%s3 + $0x168] sm:$0xff]
      %v605 = vld [vmem:[%s3 + $0x170] sm:$0xff]
      %v606 = vld [vmem:[%s3 + $0x178] sm:$0xff]
      %v607 = vld [vmem:[%s3 + $0x180] sm:$0xff]
      %v608 = vld [vmem:[%s3 + $0x188] sm:$0xff]
      %v609 = vld [vmem:[%s3 + $0x190] sm:$0xff]
      %v610 = vld [vmem:[%s3 + $0x198] sm:$0xff]
      %v611 = vld [vmem:[%s3 + $0x1a0] sm:$0xff]
      %v612 = vld [vmem:[%s3 + $0x1a8] sm:$0xff]
      %v613 = vld [vmem:[%s3 + $0x1b0] sm:$0xff]
      %v614 = vld [vmem:[%s3 + $0x1b8] sm:$0xff]
      %v615 = vld [vmem:[%s3 + $0x1c0] sm:$0xff]
      %v616 = vld [vmem:[%s3 + $0x1c8] sm:$0xff]
      %v617 = vld [vmem:[%s3 + $0x1d0] sm:$0xff]
      %v618 = vld [vmem:[%s3 + $0x1d8] sm:$0xff]
      %v619 = vld [vmem:[%s3 + $0x1e0] sm:$0xff]
      %v620 = vld [vmem:[%s3 + $0x1e8] sm:$0xff]
      %v621 = vld [vmem:[%s3 + $0x1f0] sm:$0xff]
      %v622 = vld [vmem:[%s3 + $0x1f8] sm:$0xff]
      %623 = vmatprep.subr.mxu0 %v560
      %624 = vmatpush1.msra.mxu0 %v559
      %625 = vmatprep.subr.mxu0 %v562
      %626 = vmatpush1.msra.mxu0 %v561
      %627 = vmatprep.subr.mxu0 %v564
      %628 = vmatpush1.msra.mxu0 %v563
      %629 = vmatprep.subr.mxu0 %v566
      %630 = vmatpush1.msra.mxu0 %v565
      %631 = vmatprep.subr.mxu0 %v568
      %632 = vmatpush1.msra.mxu0 %v567
      %633 = vmatprep.subr.mxu0 %v570
      %634 = vmatpush1.msra.mxu0 %v569
      %635 = vmatprep.subr.mxu0 %v572
      %636 = vmatpush1.msra.mxu0 %v571
      %637 = vmatprep.subr.mxu0 %v574
      %638 = vmatpush1.msra.mxu0 %v573
      %639 = vmatprep.subr.mxu0 %v576
      %640 = vmatpush1.msra.mxu0 %v575
      %641 = vmatprep.subr.mxu0 %v578
      %642 = vmatpush1.msra.mxu0 %v577
      %643 = vmatprep.subr.mxu0 %v580
      %644 = vmatpush1.msra.mxu0 %v579
      %645 = vmatprep.subr.mxu0 %v582
      %646 = vmatpush1.msra.mxu0 %v581
      %647 = vmatprep.subr.mxu0 %v584
      %648 = vmatpush1.msra.mxu0 %v583
      %649 = vmatprep.subr.mxu0 %v586
      %650 = vmatpush1.msra.mxu0 %v585
      %651 = vmatprep.subr.mxu0 %v588
      %652 = vmatpush1.msra.mxu0 %v587
      %653 = vmatprep.subr.mxu0 %v590
      %654 = vmatpush1.msra.mxu0 %v589
      %655 = vmatprep.subr.mxu0 %v592
      %656 = vmatpush1.msra.mxu0 %v591
      %657 = vmatprep.subr.mxu0 %v594
      %658 = vmatpush1.msra.mxu0 %v593
      %659 = vmatprep.subr.mxu0 %v596
      %660 = vmatpush1.msra.mxu0 %v595
      %661 = vmatprep.subr.mxu0 %v598
      %662 = vmatpush1.msra.mxu0 %v597
      %663 = vmatprep.subr.mxu0 %v600
      %664 = vmatpush1.msra.mxu0 %v599
      %665 = vmatprep.subr.mxu0 %v602
      %666 = vmatpush1.msra.mxu0 %v601
      %667 = vmatprep.subr.mxu0 %v604
      %668 = vmatpush1.msra.mxu0 %v603
      %669 = vmatprep.subr.mxu0 %v606
      %670 = vmatpush1.msra.mxu0 %v605
      %671 = vmatprep.subr.mxu0 %v608
      %672 = vmatpush1.msra.mxu0 %v607
      %673 = vmatprep.subr.mxu0 %v610
      %674 = vmatpush1.msra.mxu0 %v609
      %675 = vmatprep.subr.mxu0 %v612
      %676 = vmatpush1.msra.mxu0 %v611
      %677 = vmatprep.subr.mxu0 %v614
      %678 = vmatpush1.msra.mxu0 %v613
      %679 = vmatprep.subr.mxu0 %v616
      %680 = vmatpush1.msra.mxu0 %v615
      %681 = vmatprep.subr.mxu0 %v618
      %682 = vmatpush1.msra.mxu0 %v617
      %683 = vmatprep.subr.mxu0 %v620
      %684 = vmatpush1.msra.mxu0 %v619
      %685 = vmatprep.subr.mxu0 %v622
      %686 = vmatpush1.msra.mxu0 %v621
      %687 = vmatprep.mubr.f32.mxu0 %v403
      %688 = vmatmul.mubr.f32.gmra.mrb[0].mxu0 %v401
      %v689 = vpop.f32.mrb[0].mxu0
      %v690 = vadd.f32 0.0, %v689
      %v691 = vpop.f32.mrb[0].mxu0
      %v692 = vadd.f32 0.0, %v691
      %693 = vmatprep.mubr.f32.mxu0 %v409
      %694 = vmatmul.mubr.f32.gmra.mrb[0].mxu0 %v407
      %v695 = vpop.f32.mrb[0].mxu0
      %v696 = vadd.f32 0.0, %v695
      %v697 = vpop.f32.mrb[0].mxu0
      %v698 = vadd.f32 0.0, %v697
      %699 = vmatprep.mubr.f32.mxu0 %v415
      %700 = vmatmul.mubr.f32.gmra.mrb[0].mxu0 %v413
      %v701 = vpop.f32.mrb[0].mxu0
      %v702 = vadd.f32 0.0, %v701
      %v703 = vpop.f32.mrb[0].mxu0
      %v704 = vadd.f32 0.0, %v703
      %705 = vmatprep.mubr.f32.mxu0 %v421
      %706 = vmatmul.mubr.f32.gmra.mrb[0].mxu0 %v419
      %v707 = vpop.f32.mrb[0].mxu0
      %v708 = vadd.f32 0.0, %v707
      %v709 = vpop.f32.mrb[0].mxu0
      %v710 = vadd.f32 0.0, %v709
      %711 = vmatprep.mubr.f32.mxu0 %v427
      %712 = vmatmul.mubr.f32.gmra.mrb[0].mxu0 %v425
      %v713 = vpop.f32.mrb[0].mxu0
      %v714 = vadd.f32 0.0, %v713
      %v715 = vpop.f32.mrb[0].mxu0
      %v716 = vadd.f32 0.0, %v715
      %717 = vmatprep.mubr.f32.mxu0 %v433
      %718 = vmatmul.mubr.f32.gmra.mrb[0].mxu0 %v431
      %v719 = vpop.f32.mrb[0].mxu0
      %v720 = vadd.f32 0.0, %v719
      %v721 = vpop.f32.mrb[0].mxu0
      %v722 = vadd.f32 0.0, %v721
      %723 = vmatprep.mubr.f32.mxu0 %v439
      %724 = vmatmul.mubr.f32.gmra.mrb[0].mxu0 %v437
      %v725 = vpop.f32.mrb[0].mxu0
      %v726 = vadd.f32 0.0, %v725
      %v727 = vpop.f32.mrb[0].mxu0
      %v728 = vadd.f32 0.0, %v727
      %729 = vmatprep.mubr.f32.mxu0 %v445
      %730 = vmatmul.mubr.f32.gmra.mrb[0].mxu0 %v443
      %v731 = vpop.f32.mrb[0].mxu0
      %v732 = vadd.f32 0.0, %v731
      %v733 = vpop.f32.mrb[0].mxu0
      %v734 = vadd.f32 0.0, %v733
      %735 = vmatprep.mubr.f32.mxu0 %v451
      %736 = vmatmul.mubr.f32.gmra.mrb[0].mxu0 %v449
      %v737 = vpop.f32.mrb[0].mxu0
      %v738 = vadd.f32 0.0, %v737
      %v739 = vpop.f32.mrb[0].mxu0
      %v740 = vadd.f32 0.0, %v739
      %741 = vmatprep.mubr.f32.mxu0 %v457
      %742 = vmatmul.mubr.f32.gmra.mrb[0].mxu0 %v455
      %v743 = vpop.f32.mrb[0].mxu0
      %v744 = vadd.f32 0.0, %v743
      %v745 = vpop.f32.mrb[0].mxu0
      %v746 = vadd.f32 0.0, %v745
      %747 = vmatprep.mubr.f32.mxu0 %v463
      %748 = vmatmul.mubr.f32.gmra.mrb[0].mxu0 %v461
      %v749 = vpop.f32.mrb[0].mxu0
      %v750 = vadd.f32 0.0, %v749
      %v751 = vpop.f32.mrb[0].mxu0
      %v752 = vadd.f32 0.0, %v751
      %753 = vmatprep.mubr.f32.mxu0 %v469
      %754 = vmatmul.mubr.f32.gmra.mrb[0].mxu0 %v467
      %v755 = vpop.f32.mrb[0].mxu0
      %v756 = vadd.f32 0.0, %v755
      %v757 = vpop.f32.mrb[0].mxu0
      %v758 = vadd.f32 0.0, %v757
      %759 = vmatprep.mubr.f32.mxu0 %v475
      %760 = vmatmul.mubr.f32.gmra.mrb[0].mxu0 %v473
      %v761 = vpop.f32.mrb[0].mxu0
      %v762 = vadd.f32 0.0, %v761
      %v763 = vpop.f32.mrb[0].mxu0
      %v764 = vadd.f32 0.0, %v763
      %765 = vmatprep.mubr.f32.mxu0 %v481
      %766 = vmatmul.mubr.f32.gmra.mrb[0].mxu0 %v479
      %v767 = vpop.f32.mrb[0].mxu0
      %v768 = vadd.f32 0.0, %v767
      %v769 = vpop.f32.mrb[0].mxu0
      %v770 = vadd.f32 0.0, %v769
      %771 = vmatprep.mubr.f32.mxu0 %v487
      %772 = vmatmul.mubr.f32.gmra.mrb[0].mxu0 %v485
      %v773 = vpop.f32.mrb[0].mxu0
      %v774 = vadd.f32 0.0, %v773
      %v775 = vpop.f32.mrb[0].mxu0
      %v776 = vadd.f32 0.0, %v775
      %777 = vmatprep.mubr.f32.mxu0 %v493
      %778 = vmatmul.mubr.f32.gmra.mrb[0].mxu0 %v491
      %v779 = vpop.f32.mrb[0].mxu0
      %v780 = vadd.f32 0.0, %v779
      %v781 = vpop.f32.mrb[0].mxu0
      %v782 = vadd.f32 0.0, %v781
      %783 = vdwg.mxu0
      %784 = vmatprep.subr.mxu0 %v496
      %785 = vmatpush1.msra.mxu0 %v495
      %786 = vmatprep.subr.mxu0 %v498
      %787 = vmatpush1.msra.mxu0 %v497
      %788 = vmatprep.subr.mxu0 %v500
      %789 = vmatpush1.msra.mxu0 %v499
      %790 = vmatprep.subr.mxu0 %v502
      %791 = vmatpush1.msra.mxu0 %v501
      %792 = vmatprep.subr.mxu0 %v504
      %793 = vmatpush1.msra.mxu0 %v503
      %794 = vmatprep.subr.mxu0 %v506
      %795 = vmatpush1.msra.mxu0 %v505
      %796 = vmatprep.subr.mxu0 %v508
      %797 = vmatpush1.msra.mxu0 %v507
      %798 = vmatprep.subr.mxu0 %v510
      %799 = vmatpush1.msra.mxu0 %v509
      %800 = vmatprep.subr.mxu0 %v512
      %801 = vmatpush1.msra.mxu0 %v511
      %802 = vmatprep.subr.mxu0 %v514
      %803 = vmatpush1.msra.mxu0 %v513
      %804 = vmatprep.subr.mxu0 %v516
      %805 = vmatpush1.msra.mxu0 %v515
      %806 = vmatprep.subr.mxu0 %v518
      %807 = vmatpush1.msra.mxu0 %v517
      %808 = vmatprep.subr.mxu0 %v520
      %809 = vmatpush1.msra.mxu0 %v519
      %810 = vmatprep.subr.mxu0 %v522
      %811 = vmatpush1.msra.mxu0 %v521
      %812 = vmatprep.subr.mxu0 %v524
      %813 = vmatpush1.msra.mxu0 %v523
      %814 = vmatprep.subr.mxu0 %v526
      %815 = vmatpush1.msra.mxu0 %v525
      %816 = vmatprep.subr.mxu0 %v528
      %817 = vmatpush1.msra.mxu0 %v527
      %818 = vmatprep.subr.mxu0 %v530
      %819 = vmatpush1.msra.mxu0 %v529
      %820 = vmatprep.subr.mxu0 %v532
      %821 = vmatpush1.msra.mxu0 %v531
      %822 = vmatprep.subr.mxu0 %v534
      %823 = vmatpush1.msra.mxu0 %v533
      %824 = vmatprep.subr.mxu0 %v536
      %825 = vmatpush1.msra.mxu0 %v535
      %826 = vmatprep.subr.mxu0 %v538
      %827 = vmatpush1.msra.mxu0 %v537
      %828 = vmatprep.subr.mxu0 %v540
      %829 = vmatpush1.msra.mxu0 %v539
      %830 = vmatprep.subr.mxu0 %v542
      %831 = vmatpush1.msra.mxu0 %v541
      %832 = vmatprep.subr.mxu0 %v544
      %833 = vmatpush1.msra.mxu0 %v543
      %834 = vmatprep.subr.mxu0 %v546
      %835 = vmatpush1.msra.mxu0 %v545
      %836 = vmatprep.subr.mxu0 %v548
      %837 = vmatpush1.msra.mxu0 %v547
      %838 = vmatprep.subr.mxu0 %v550
      %839 = vmatpush1.msra.mxu0 %v549
      %840 = vmatprep.subr.mxu0 %v552
      %841 = vmatpush1.msra.mxu0 %v551
      %842 = vmatprep.subr.mxu0 %v554
      %843 = vmatpush1.msra.mxu0 %v553
      %844 = vmatprep.subr.mxu0 %v556
      %845 = vmatpush1.msra.mxu0 %v555
      %846 = vmatprep.subr.mxu0 %v558
      %847 = vmatpush1.msra.mxu0 %v557
      %848 = vmatprep.mubr.f32.mxu0 %v287
      %849 = vmatmul.mubr.f32.gmra.mrb[0].mxu0 %v286
      %v850 = vpop.f32.mrb[0].mxu0
      %v851 = vadd.f32 %v690, %v850
      %v852 = vpop.f32.mrb[0].mxu0
      %v853 = vadd.f32 %v692, %v852
      %854 = vmatprep.mubr.f32.mxu0 %v289
      %855 = vmatmul.mubr.f32.gmra.mrb[0].mxu0 %v288
      %v856 = vpop.f32.mrb[0].mxu0
      %v857 = vadd.f32 %v696, %v856
      %v858 = vpop.f32.mrb[0].mxu0
      %v859 = vadd.f32 %v698, %v858
      %860 = vmatprep.mubr.f32.mxu0 %v291
      %861 = vmatmul.mubr.f32.gmra.mrb[0].mxu0 %v290
      %v862 = vpop.f32.mrb[0].mxu0
      %v863 = vadd.f32 %v702, %v862
      %v864 = vpop.f32.mrb[0].mxu0
      %v865 = vadd.f32 %v704, %v864
      %866 = vmatprep.mubr.f32.mxu0 %v293
      %867 = vmatmul.mubr.f32.gmra.mrb[0].mxu0 %v292
      %v868 = vpop.f32.mrb[0].mxu0
      %v869 = vadd.f32 %v708, %v868
      %v870 = vpop.f32.mrb[0].mxu0
      %v871 = vadd.f32 %v710, %v870
      %872 = vmatprep.mubr.f32.mxu0 %v295
      %873 = vmatmul.mubr.f32.gmra.mrb[0].mxu0 %v294
      %v874 = vpop.f32.mrb[0].mxu0
      %v875 = vadd.f32 %v714, %v874
      %v876 = vpop.f32.mrb[0].mxu0
      %v877 = vadd.f32 %v716, %v876
      %878 = vmatprep.mubr.f32.mxu0 %v297
      %879 = vmatmul.mubr.f32.gmra.mrb[0].mxu0 %v296
      %v880 = vpop.f32.mrb[0].mxu0
      %v881 = vadd.f32 %v720, %v880
      %v882 = vpop.f32.mrb[0].mxu0
      %v883 = vadd.f32 %v722, %v882
      %884 = vmatprep.mubr.f32.mxu0 %v299
      %885 = vmatmul.mubr.f32.gmra.mrb[0].mxu0 %v298
      %v886 = vpop.f32.mrb[0].mxu0
      %v887 = vadd.f32 %v726, %v886
      %v888 = vpop.f32.mrb[0].mxu0
      %v889 = vadd.f32 %v728, %v888
      %890 = vmatprep.mubr.f32.mxu0 %v301
      %891 = vmatmul.mubr.f32.gmra.mrb[0].mxu0 %v300
      %v892 = vpop.f32.mrb[0].mxu0
      %v893 = vadd.f32 %v732, %v892
      %v894 = vpop.f32.mrb[0].mxu0
      %v895 = vadd.f32 %v734, %v894
      %896 = vmatprep.mubr.f32.mxu0 %v303
      %897 = vmatmul.mubr.f32.gmra.mrb[0].mxu0 %v302
      %v898 = vpop.f32.mrb[0].mxu0
      %v899 = vadd.f32 %v738, %v898
      %v900 = vpop.f32.mrb[0].mxu0
      %v901 = vadd.f32 %v740, %v900
      %902 = vmatprep.mubr.f32.mxu0 %v305
      %903 = vmatmul.mubr.f32.gmra.mrb[0].mxu0 %v304
      %v904 = vpop.f32.mrb[0].mxu0
      %v905 = vadd.f32 %v744, %v904
      %v906 = vpop.f32.mrb[0].mxu0
      %v907 = vadd.f32 %v746, %v906
      %908 = vmatprep.mubr.f32.mxu0 %v307
      %909 = vmatmul.mubr.f32.gmra.mrb[0].mxu0 %v306
      %v910 = vpop.f32.mrb[0].mxu0
      %v911 = vadd.f32 %v750, %v910
      %v912 = vpop.f32.mrb[0].mxu0
      %v913 = vadd.f32 %v752, %v912
      %914 = vmatprep.mubr.f32.mxu0 %v309
      %915 = vmatmul.mubr.f32.gmra.mrb[0].mxu0 %v308
      %v916 = vpop.f32.mrb[0].mxu0
      %v917 = vadd.f32 %v756, %v916
      %v918 = vpop.f32.mrb[0].mxu0
      %v919 = vadd.f32 %v758, %v918
      %920 = vmatprep.mubr.f32.mxu0 %v311
      %921 = vmatmul.mubr.f32.gmra.mrb[0].mxu0 %v310
      %v922 = vpop.f32.mrb[0].mxu0
      %v923 = vadd.f32 %v762, %v922
      %v924 = vpop.f32.mrb[0].mxu0
      %v925 = vadd.f32 %v764, %v924
      %926 = vmatprep.mubr.f32.mxu0 %v313
      %927 = vmatmul.mubr.f32.gmra.mrb[0].mxu0 %v312
      %v928 = vpop.f32.mrb[0].mxu0
      %v929 = vadd.f32 %v768, %v928
      %v930 = vpop.f32.mrb[0].mxu0
      %v931 = vadd.f32 %v770, %v930
      %932 = vmatprep.mubr.f32.mxu0 %v315
      %933 = vmatmul.mubr.f32.gmra.mrb[0].mxu0 %v314
      %v934 = vpop.f32.mrb[0].mxu0
      %v935 = vadd.f32 %v774, %v934
      %v936 = vpop.f32.mrb[0].mxu0
      %v937 = vadd.f32 %v776, %v936
      %938 = vmatprep.mubr.f32.mxu0 %v317
      %939 = vmatmul.mubr.f32.gmra.mrb[0].mxu0 %v316
      %v940 = vpop.f32.mrb[0].mxu0
      %v941 = vadd.f32 %v780, %v940
      %v942 = vpop.f32.mrb[0].mxu0
      %v943 = vadd.f32 %v782, %v942
      %944 = vdwg.mxu0
      %v945 = vld [vmem:[%s4] sm:$0x3]
      %v947 = vlaneseq
      %v948 = vshrl.u32 %v947, 7
      %v949 = vsub.s32 0, %v948
      %v950 = vrot.slane %v945, %v949
      %v951 = vlaneseq
      %v952 = vshrl.u32 %v951, 7
      %v953 = vsub.s32 1, %v952
      %v954 = vrot.slane %v945, %v953
      %v957 = vadd.f32 %v851, %v950
      %v958 = vadd.f32 %v853, %v954
      %v959 = vadd.f32 %v857, %v950
      %v960 = vadd.f32 %v859, %v954
      %v961 = vadd.f32 %v863, %v950
      %v962 = vadd.f32 %v865, %v954
      %v963 = vadd.f32 %v869, %v950
      %v964 = vadd.f32 %v871, %v954
      %v965 = vadd.f32 %v875, %v950
      %v966 = vadd.f32 %v877, %v954
      %v967 = vadd.f32 %v881, %v950
      %v968 = vadd.f32 %v883, %v954
      %v969 = vadd.f32 %v887, %v950
      %v970 = vadd.f32 %v889, %v954
      %v971 = vadd.f32 %v893, %v950
      %v972 = vadd.f32 %v895, %v954
      %v973 = vadd.f32 %v899, %v950
      %v974 = vadd.f32 %v901, %v954
      %v975 = vadd.f32 %v905, %v950
      %v976 = vadd.f32 %v907, %v954
      %v977 = vadd.f32 %v911, %v950
      %v978 = vadd.f32 %v913, %v954
      %v979 = vadd.f32 %v917, %v950
      %v980 = vadd.f32 %v919, %v954
      %v981 = vadd.f32 %v923, %v950
      %v982 = vadd.f32 %v925, %v954
      %v983 = vadd.f32 %v929, %v950
      %v984 = vadd.f32 %v931, %v954
      %v985 = vadd.f32 %v935, %v950
      %v986 = vadd.f32 %v937, %v954
      %v987 = vadd.f32 %v941, %v950
      %v988 = vadd.f32 %v943, %v954
      %v989 = vmax.f32 %v957, 0.0
      %v990 = vmax.f32 %v958, 0.0
      %v991 = vmax.f32 %v959, 0.0
      %v992 = vmax.f32 %v960, 0.0
      %v993 = vmax.f32 %v961, 0.0
      %v994 = vmax.f32 %v962, 0.0
      %v995 = vmax.f32 %v963, 0.0
      %v996 = vmax.f32 %v964, 0.0
      %v997 = vmax.f32 %v965, 0.0
      %v998 = vmax.f32 %v966, 0.0
      %v999 = vmax.f32 %v967, 0.0
      %v1000 = vmax.f32 %v968, 0.0
      %v1001 = vmax.f32 %v969, 0.0
      %v1002 = vmax.f32 %v970, 0.0
      %v1003 = vmax.f32 %v971, 0.0
      %v1004 = vmax.f32 %v972, 0.0
      %v1005 = vmax.f32 %v973, 0.0
      %v1006 = vmax.f32 %v974, 0.0
      %v1007 = vmax.f32 %v975, 0.0
      %v1008 = vmax.f32 %v976, 0.0
      %v1009 = vmax.f32 %v977, 0.0
      %v1010 = vmax.f32 %v978, 0.0
      %v1011 = vmax.f32 %v979, 0.0
      %v1012 = vmax.f32 %v980, 0.0
      %v1013 = vmax.f32 %v981, 0.0
      %v1014 = vmax.f32 %v982, 0.0
      %v1015 = vmax.f32 %v983, 0.0
      %v1016 = vmax.f32 %v984, 0.0
      %v1017 = vmax.f32 %v985, 0.0
      %v1018 = vmax.f32 %v986, 0.0
      %v1019 = vmax.f32 %v987, 0.0
      %v1020 = vmax.f32 %v988, 0.0
      %1021 = vst [vmem:[%s284] sm:$0xff] %v989
      %1022 = vst [vmem:[%s284 + $0x8] sm:$0xff] %v990
      %1023 = vst [vmem:[%s284 + $0x10] sm:$0xff] %v991
      %1024 = vst [vmem:[%s284 + $0x18] sm:$0xff] %v992
      %1025 = vst [vmem:[%s284 + $0x20] sm:$0xff] %v993
      %1026 = vst [vmem:[%s284 + $0x28] sm:$0xff] %v994
      %1027 = vst [vmem:[%s284 + $0x30] sm:$0xff] %v995
      %1028 = vst [vmem:[%s284 + $0x38] sm:$0xff] %v996
      %1029 = vst [vmem:[%s284 + $0x40] sm:$0xff] %v997
      %1030 = vst [vmem:[%s284 + $0x48] sm:$0xff] %v998
      %1031 = vst [vmem:[%s284 + $0x50] sm:$0xff] %v999
      %1032 = vst [vmem:[%s284 + $0x58] sm:$0xff] %v1000
      %1033 = vst [vmem:[%s284 + $0x60] sm:$0xff] %v1001
      %1034 = vst [vmem:[%s284 + $0x68] sm:$0xff] %v1002
      %1035 = vst [vmem:[%s284 + $0x70] sm:$0xff] %v1003
      %1036 = vst [vmem:[%s284 + $0x78] sm:$0xff] %v1004
      %1037 = vst [vmem:[%s284 + $0x80] sm:$0xff] %v1005
      %1038 = vst [vmem:[%s284 + $0x88] sm:$0xff] %v1006
      %1039 = vst [vmem:[%s284 + $0x90] sm:$0xff] %v1007
      %1040 = vst [vmem:[%s284 + $0x98] sm:$0xff] %v1008
      %1041 = vst [vmem:[%s284 + $0xa0] sm:$0xff] %v1009
      %1042 = vst [vmem:[%s284 + $0xa8] sm:$0xff] %v1010
      %1043 = vst [vmem:[%s284 + $0xb0] sm:$0xff] %v1011
      %1044 = vst [vmem:[%s284 + $0xb8] sm:$0xff] %v1012
      %1045 = vst [vmem:[%s284 + $0xc0] sm:$0xff] %v1013
      %1046 = vst [vmem:[%s284 + $0xc8] sm:$0xff] %v1014
      %1047 = vst [vmem:[%s284 + $0xd0] sm:$0xff] %v1015
      %1048 = vst [vmem:[%s284 + $0xd8] sm:$0xff] %v1016
      %1049 = vst [vmem:[%s284 + $0xe0] sm:$0xff] %v1017
      %1050 = vst [vmem:[%s284 + $0xe8] sm:$0xff] %v1018
      %1051 = vst [vmem:[%s284 + $0xf0] sm:$0xff] %v1019
      %1052 = vst [vmem:[%s284 + $0xf8] sm:$0xff] %v1020
      %s1053 = smul.u32 16, %s21
      %p1054 = scmp.lt.s32.totalorder %s20, 1
      %s1055 = scalar_select %p1054, %s20, 1
      %p1056 = scmp.lt.s32.totalorder %s1053, 15
      %s1057 = scalar_select %p1056, %s1053, 15
      %s1058 = smul.addr %s1057, 2
      %s1059 = smul.addr %s1055, 32
      %s1060 = sadd.s32 %s1058, %s1059
      %s1061 = smul.addr %s1060, 8
      %s1062 = scalar_lea.vmem %s5, %s1061
      // Predicated region
      $region41: #{deform_gnn_forward.16} parent=39 // pred_check
        %p1063 = pneg %p165
      $region42: #{deform_gnn_forward.16} parent=39 // pred_check_branch
        %1065 = sbr.rel (%p1063) target = $region44
      $region43: #{deform_gnn_forward.16} parent=39 // pred_region
        %s1066 = smul.u32 16, %s21
      $region44: #{deform_gnn_forward.16} parent=39 // pred_fallthru
        _
    $region40: #{deform_gnn_forward.16} parent=5 // pred_fallthru
      _
    %p1067 = scmp.le.s32.totalorder 2, %s11
    // Predicated region
    $region45: #{deform_gnn_forward.16} parent=5 // pred_check
      %p1068 = pneg %p1067
    $region46: #{deform_gnn_forward.16} parent=5 // pred_check_branch
      %1070 = sbr.rel (%p1068) target = $region48
    $region47: #{deform_gnn_forward.16} parent=5 // pred_region
      %s1071 = ssub.s32 %s11, 2
      // Predicated region
      $region49: #{deform_gnn_forward.16} parent=47 // pred_check
        %p1072 = pneg %p171
      $region50: #{deform_gnn_forward.16} parent=47 // pred_check_branch
        %1074 = sbr.rel (%p1072) target = $region52
      $region51: #{deform_gnn_forward.16} parent=47 // pred_region
        %s1075 = smul.u32 16, %s23
        %p1076 = scmp.lt.s32.totalorder %s22, 1
        %s1077 = scalar_select %p1076, %s22, 1
        %p1078 = scmp.lt.s32.totalorder %s1075, 15
        %s1079 = scalar_select %p1078, %s1075, 15
        %s1080 = smul.addr %s1079, 2
        %s1081 = smul.addr %s1077, 32
        %s1082 = sadd.s32 %s1080, %s1081
        %s1083 = smul.addr %s1082, 8
        %s1084 = scalar_lea.vmem %s5, %s1083
      $region52: #{deform_gnn_forward.16} parent=47 // pred_fallthru
        _
    $region48: #{deform_gnn_forward.16} parent=5 // pred_fallthru
      _
  $region6: #{deform_gnn_forward.16} parent=0 // loop_footer
    %s15 = sadd.s32 1, %s11
  $region7: #{deform_gnn_forward.16} parent=0 // loop_footer_branch
    %10 = sbr.rel target = $region3
  $region8: #{deform_gnn_forward.16} parent=0 // loop_exit
    _

// kernel: deform_gnn_forward.18
$region0: #{deform_gnn_forward.18}
  #allocation0 [shape = 'u32[]', space=smem, size = 0x4, offset = 0x4, fixed_abs, tag = 'smem constant byte address 0x4 - core index']
  #allocation1 [shape = 'u32[144,128]{1,0:T(1,128)}', space=vmem, size = 0x12000, scoped, tag = 'internal scratch']
  %s0 = inlined_call_operand.vmem [shape: f32[2,128,256], index: 0, kind: input, shape index: {}]
  %s1 = inlined_call_operand.vmem [shape: f32[2,128,128], index: 1, kind: input, shape index: {}]
  %s2 = inlined_call_operand.vmem [shape: f32[256,256], index: 2, kind: input, shape index: {}]
  %s3 = inlined_call_operand.vmem [shape: f32[256,256], index: 3, kind: input, shape index: {}]
  %s4 = inlined_call_operand.vmem [shape: f32[1,256], index: 4, kind: input, shape index: {}]
  %s5 = inlined_call_operand.vmem [shape: f32[2,128,256], index: 5, kind: input, shape index: {}]
  %s6 = inlined_call_operand.vmem [shape: f32[2,128,256], index: 6, kind: output, shape index: {}]
  %s7 = sld [smem:[#allocation0]]
  $region57: #{deform_gnn_forward.18} parent=0
    _
  %s9 = ssub.s32 1, %s7
  %s10 = scalar_select 0, %s9, %s7
  loop: start=0, step=1, limit=4
  $region2: #{deform_gnn_forward.18} parent=0 // loop_pre_header
    _
  $region3: #{deform_gnn_forward.18} parent=0 // loop_header
    %s12 = sphi 0, %s16
    %p13 = scmp.ge.s32.totalorder %s12, 4
    %s19 = sphi 0, %s31
    %s20 = sphi 0, %s27
    %s21 = sphi 0, %s19
    %s22 = sphi 0, %s20
    %s23 = sphi 0, %s21
    %s24 = sphi 0, %s22
    %s34 = sphi 0, %s36
    %s37 = sphi 0, %s34
    %s38 = sphi 0, %s37
    %s54 = sphi 0, %s38
    %s62 = sphi 0, %s64
    %s65 = sphi 0, %s62
    %s66 = sphi 0, %s65
    %s82 = sphi 0, %s66
    %s86 = sphi 0, %s86
    %s88 = sphi 0, %s86
    %s89 = sphi 0, %s88
    %s103 = sphi 0, %s89
    %s107 = sphi 0, %s107
    %s109 = sphi 0, %s107
    %s110 = sphi 0, %s109
    %s124 = sphi 0, %s110
    %s128 = sphi 0, %s128
    %s130 = sphi 0, %s128
    %s131 = sphi 0, %s130
    %s145 = sphi 0, %s131
    %s153 = sphi 0, %s155
    %s156 = sphi 0, %s153
    %s157 = sphi 0, %s156
    %s173 = sphi 0, %s157
    %s181 = sphi 0, %s183
    %s184 = sphi 0, %s181
    %s185 = sphi 0, %s184
    %s201 = sphi 0, %s185
  $region4: #{deform_gnn_forward.18} parent=0 // loop_header_branch
    %15 = sbr.rel (%p13) target = $region8
  $region5: #{deform_gnn_forward.18} parent=0 // loop_body
    %s17 = ssub.s32 %s12, 1
    %s18 = ssub.s32 %s12, 2
    %s25 = sadd.s32 1, %s20
    %p26 = scmp.ge.s32.totalorder %s25, 1
    %s27 = scalar_select %p26, 0, %s25
    %s28 = sadd.s32 1, %s19
    %s29 = scalar_select %p26, %s28, %s19
    %p30 = scmp.ge.s32.totalorder %s29, 2
    %s31 = scalar_select %p30, 0, %s29
    %s32 = ssub.s32 %s19, %s31
    %p33 = scmp.eq.s32.totalorder %s32, 0
    %s35 = sadd.s32 %s34, 1
    %s36 = scalar_select %p33, %s34, %s35
    %p39 = pneg %p33
    %p40 = scmp.eq.s32.totalorder %s12, 1
    %p41 = por %p39, %p40
    %p42 = scmp.ne.s32.totalorder %s34, %s37
    %p43 = scmp.eq.s32.totalorder %s12, 0
    %p44 = por %p42, %p43
    %p45 = scmp.ne.s32.totalorder %s34, %s37
    %p46 = scmp.eq.s32.totalorder %s17, 1
    %p47 = por %p45, %p46
    %p48 = scmp.ne.s32.totalorder %s37, %s38
    %p49 = scmp.eq.s32.totalorder %s17, 0
    %p50 = por %p48, %p49
    %p51 = scmp.ne.s32.totalorder %s37, %s38
    %p52 = scmp.eq.s32.totalorder %s18, 1
    %p53 = por %p51, %p52
    %p55 = scmp.ne.s32.totalorder %s38, %s54
    %p56 = scmp.eq.s32.totalorder %s18, 0
    %p57 = por %p55, %p56
    %s58 = ssub.s32 %s19, %s31
    %s59 = ssub.s32 %s20, %s27
    %s60 = sor.u32 %s58, %s59
    %p61 = scmp.eq.s32.totalorder %s60, 0
    %s63 = sadd.s32 %s62, 1
    %s64 = scalar_select %p61, %s62, %s63
    %p67 = pneg %p61
    %p68 = scmp.eq.s32.totalorder %s12, 1
    %p69 = por %p67, %p68
    %p70 = scmp.ne.s32.totalorder %s62, %s65
    %p71 = scmp.eq.s32.totalorder %s12, 0
    %p72 = por %p70, %p71
    %p73 = scmp.ne.s32.totalorder %s62, %s65
    %p74 = scmp.eq.s32.totalorder %s17, 1
    %p75 = por %p73, %p74
    %p76 = scmp.ne.s32.totalorder %s65, %s66
    %p77 = scmp.eq.s32.totalorder %s17, 0
    %p78 = por %p76, %p77
    %p79 = scmp.ne.s32.totalorder %s65, %s66
    %p80 = scmp.eq.s32.totalorder %s18, 1
    %p81 = por %p79, %p80
    %p83 = scmp.ne.s32.totalorder %s66, %s82
    %p84 = scmp.eq.s32.totalorder %s18, 0
    %p85 = por %p83, %p84
    %s87 = sadd.s32 %s86, 1
    %p90 = scmp.eq.s32.totalorder %s12, 1
    %p91 = scmp.ne.s32.totalorder %s86, %s88
    %p92 = scmp.eq.s32.totalorder %s12, 0
    %p93 = por %p91, %p92
    %p94 = scmp.ne.s32.totalorder %s86, %s88
    %p95 = scmp.eq.s32.totalorder %s17, 1
    %p96 = por %p94, %p95
    %p97 = scmp.ne.s32.totalorder %s88, %s89
    %p98 = scmp.eq.s32.totalorder %s17, 0
    %p99 = por %p97, %p98
    %p100 = scmp.ne.s32.totalorder %s88, %s89
    %p101 = scmp.eq.s32.totalorder %s18, 1
    %p102 = por %p100, %p101
    %p104 = scmp.ne.s32.totalorder %s89, %s103
    %p105 = scmp.eq.s32.totalorder %s18, 0
    %p106 = por %p104, %p105
    %s108 = sadd.s32 %s107, 1
    %p111 = scmp.eq.s32.totalorder %s12, 1
    %p112 = scmp.ne.s32.totalorder %s107, %s109
    %p113 = scmp.eq.s32.totalorder %s12, 0
    %p114 = por %p112, %p113
    %p115 = scmp.ne.s32.totalorder %s107, %s109
    %p116 = scmp.eq.s32.totalorder %s17, 1
    %p117 = por %p115, %p116
    %p118 = scmp.ne.s32.totalorder %s109, %s110
    %p119 = scmp.eq.s32.totalorder %s17, 0
    %p120 = por %p118, %p119
    %p121 = scmp.ne.s32.totalorder %s109, %s110
    %p122 = scmp.eq.s32.totalorder %s18, 1
    %p123 = por %p121, %p122
    %p125 = scmp.ne.s32.totalorder %s110, %s124
    %p126 = scmp.eq.s32.totalorder %s18, 0
    %p127 = por %p125, %p126
    %s129 = sadd.s32 %s128, 1
    %p132 = scmp.eq.s32.totalorder %s12, 1
    %p133 = scmp.ne.s32.totalorder %s128, %s130
    %p134 = scmp.eq.s32.totalorder %s12, 0
    %p135 = por %p133, %p134
    %p136 = scmp.ne.s32.totalorder %s128, %s130
    %p137 = scmp.eq.s32.totalorder %s17, 1
    %p138 = por %p136, %p137
    %p139 = scmp.ne.s32.totalorder %s130, %s131
    %p140 = scmp.eq.s32.totalorder %s17, 0
    %p141 = por %p139, %p140
    %p142 = scmp.ne.s32.totalorder %s130, %s131
    %p143 = scmp.eq.s32.totalorder %s18, 1
    %p144 = por %p142, %p143
    %p146 = scmp.ne.s32.totalorder %s131, %s145
    %p147 = scmp.eq.s32.totalorder %s18, 0
    %p148 = por %p146, %p147
    %s149 = ssub.s32 %s19, %s31
    %s150 = ssub.s32 %s20, %s27
    %s151 = sor.u32 %s149, %s150
    %p152 = scmp.eq.s32.totalorder %s151, 0
    %s154 = sadd.s32 %s153, 1
    %s155 = scalar_select %p152, %s153, %s154
    %p158 = pneg %p152
    %p159 = scmp.eq.s32.totalorder %s12, 1
    %p160 = por %p158, %p159
    %p161 = scmp.ne.s32.totalorder %s153, %s156
    %p162 = scmp.eq.s32.totalorder %s12, 0
    %p163 = por %p161, %p162
    %p164 = scmp.ne.s32.totalorder %s153, %s156
    %p165 = scmp.eq.s32.totalorder %s17, 1
    %p166 = por %p164, %p165
    %p167 = scmp.ne.s32.totalorder %s156, %s157
    %p168 = scmp.eq.s32.totalorder %s17, 0
    %p169 = por %p167, %p168
    %p170 = scmp.ne.s32.totalorder %s156, %s157
    %p171 = scmp.eq.s32.totalorder %s18, 1
    %p172 = por %p170, %p171
    %p174 = scmp.ne.s32.totalorder %s157, %s173
    %p175 = scmp.eq.s32.totalorder %s18, 0
    %p176 = por %p174, %p175
    %s177 = ssub.s32 %s19, %s31
    %s178 = ssub.s32 %s20, %s27
    %s179 = sor.u32 %s177, %s178
    %p180 = scmp.eq.s32.totalorder %s179, 0
    %s182 = sadd.s32 %s181, 1
    %s183 = scalar_select %p180, %s181, %s182
    %p186 = pneg %p180
    %p187 = scmp.eq.s32.totalorder %s12, 1
    %p188 = por %p186, %p187
    %p189 = scmp.ne.s32.totalorder %s181, %s184
    %p190 = scmp.eq.s32.totalorder %s12, 0
    %p191 = por %p189, %p190
    %p192 = scmp.ne.s32.totalorder %s181, %s184
    %p193 = scmp.eq.s32.totalorder %s17, 1
    %p194 = por %p192, %p193
    %p195 = scmp.ne.s32.totalorder %s184, %s185
    %p196 = scmp.eq.s32.totalorder %s17, 0
    %p197 = por %p195, %p196
    %p198 = scmp.ne.s32.totalorder %s184, %s185
    %p199 = scmp.eq.s32.totalorder %s18, 1
    %p200 = por %p198, %p199
    %p202 = scmp.ne.s32.totalorder %s185, %s201
    %p203 = scmp.eq.s32.totalorder %s18, 0
    %p204 = por %p202, %p203
    %p205 = scmp.le.s32.totalorder 1, %s12
    %p206 = scmp.lt.s32.totalorder %s12, 3
    %p207 = pnand %p205, %p206
    %p208 = pneg %p207
    // Predicated region
    $region9: #{deform_gnn_forward.18} parent=5 // pred_check
      _
    $region10: #{deform_gnn_forward.18} parent=5 // pred_check_branch
      %210 = sbr.rel (%p207) target = $region12
    $region11: #{deform_gnn_forward.18} parent=5 // pred_region
      %s211 = ssub.s32 %s12, 1
      // Predicated region
      $region13: #{deform_gnn_forward.18} parent=11 // pred_check
        %p212 = pneg %p99
      $region14: #{deform_gnn_forward.18} parent=11 // pred_check_branch
        %214 = sbr.rel (%p212) target = $region16
      $region15: #{deform_gnn_forward.18} parent=11 // pred_region
        _
      $region16: #{deform_gnn_forward.18} parent=11 // pred_fallthru
        _
      // Predicated region
      $region17: #{deform_gnn_forward.18} parent=11 // pred_check
        %p215 = pneg %p120
      $region18: #{deform_gnn_forward.18} parent=11 // pred_check_branch
        %217 = sbr.rel (%p215) target = $region20
      $region19: #{deform_gnn_forward.18} parent=11 // pred_region
        _
      $region20: #{deform_gnn_forward.18} parent=11 // pred_fallthru
        _
      // Predicated region
      $region21: #{deform_gnn_forward.18} parent=11 // pred_check
        %p218 = pneg %p141
      $region22: #{deform_gnn_forward.18} parent=11 // pred_check_branch
        %220 = sbr.rel (%p218) target = $region24
      $region23: #{deform_gnn_forward.18} parent=11 // pred_region
        _
      $region24: #{deform_gnn_forward.18} parent=11 // pred_fallthru
        _
    $region12: #{deform_gnn_forward.18} parent=5 // pred_fallthru
      _
    %p221 = scmp.lt.s32.totalorder %s12, 2
    // Predicated region
    $region25: #{deform_gnn_forward.18} parent=5 // pred_check
      %p222 = pneg %p221
    $region26: #{deform_gnn_forward.18} parent=5 // pred_check_branch
      %224 = sbr.rel (%p222) target = $region28
    $region27: #{deform_gnn_forward.18} parent=5 // pred_region
      // Predicated region
      $region29: #{deform_gnn_forward.18} parent=27 // pred_check
        %p225 = pneg %p44
      $region30: #{deform_gnn_forward.18} parent=27 // pred_check_branch
        %227 = sbr.rel (%p225) target = $region32
      $region31: #{deform_gnn_forward.18} parent=27 // pred_region
        %p228 = scmp.lt.s32.totalorder %s19, 1
        %s229 = scalar_select %p228, %s19, 1
        %s230 = smul.addr %s229, 32
        %s231 = smul.addr %s230, 8
        %s232 = scalar_lea.vmem %s0, %s231
      $region32: #{deform_gnn_forward.18} parent=27 // pred_fallthru
        _
      // Predicated region
      $region33: #{deform_gnn_forward.18} parent=27 // pred_check
        %p233 = pneg %p72
      $region34: #{deform_gnn_forward.18} parent=27 // pred_check_branch
        %235 = sbr.rel (%p233) target = $region36
      $region35: #{deform_gnn_forward.18} parent=27 // pred_region
        %s236 = smul.u32 16, %s20
        %p237 = scmp.lt.s32.totalorder %s19, 1
        %s238 = scalar_select %p237, %s19, 1
        %p239 = scmp.lt.s32.totalorder %s236, 15
        %s240 = scalar_select %p239, %s236, 15
        %s241 = smul.addr %s238, 16
        %s242 = sadd.s32 %s240, %s241
        %s243 = smul.addr %s242, 8
        %s244 = scalar_lea.vmem %s1, %s243
        %s245 = smul.u32 16, %s20
      $region36: #{deform_gnn_forward.18} parent=27 // pred_fallthru
        _
      // Predicated region
      $region37: #{deform_gnn_forward.18} parent=27 // pred_check
        %p246 = pneg %p163
      $region38: #{deform_gnn_forward.18} parent=27 // pred_check_branch
        %248 = sbr.rel (%p246) target = $region40
      $region39: #{deform_gnn_forward.18} parent=27 // pred_region
        %s249 = smul.u32 16, %s20
        %p250 = scmp.lt.s32.totalorder %s19, 1
        %s251 = scalar_select %p250, %s19, 1
        %p252 = scmp.lt.s32.totalorder %s249, 15
        %s253 = scalar_select %p252, %s249, 15
        %s254 = smul.addr %s253, 2
        %s255 = smul.addr %s251, 32
        %s256 = sadd.s32 %s254, %s255
        %s257 = smul.addr %s256, 8
        %s258 = scalar_lea.vmem %s5, %s257
        %s259 = smul.u32 16, %s20
      $region40: #{deform_gnn_forward.18} parent=27 // pred_fallthru
        _
    $region28: #{deform_gnn_forward.18} parent=5 // pred_fallthru
      _
    %p260 = scmp.le.s32.totalorder 1, %s12
    %p261 = scmp.lt.s32.totalorder %s12, 3
    %p262 = pnand %p260, %p261
    %p263 = pneg %p262
    // Predicated region
    $region41: #{deform_gnn_forward.18} parent=5 // pred_check
      _
    $region42: #{deform_gnn_forward.18} parent=5 // pred_check_branch
      %265 = sbr.rel (%p262) target = $region44
    $region43: #{deform_gnn_forward.18} parent=5 // pred_region
      %s266 = ssub.s32 %s12, 1
      %p267 = scmp.lt.s32.totalorder %s21, 1
      %s268 = scalar_select %p267, %s21, 1
      %s269 = smul.addr %s268, 32
      %s270 = smul.addr %s269, 8
      %s271 = scalar_lea.vmem %s0, %s270
      %p272 = pneg %p50
      %p273 = pneg %p47
      %s274 = smul.u32 16, %s22
      %p275 = scmp.lt.s32.totalorder %s21, 1
      %s276 = scalar_select %p275, %s21, 1
      %p277 = scmp.lt.s32.totalorder %s274, 15
      %s278 = scalar_select %p277, %s274, 15
      %s279 = smul.addr %s276, 16
      %s280 = sadd.s32 %s278, %s279
      %s281 = smul.addr %s280, 8
      %s282 = scalar_lea.vmem %s1, %s281
      %p283 = pneg %p78
      %p284 = pneg %p75
      %p285 = pneg %p99
      %p286 = pneg %p96
      %p287 = pneg %p120
      %p288 = pneg %p117
      %p289 = pneg %p141
      %p290 = pneg %p138
      %s291 = smul.u32 16, %s22
      %p292 = scmp.lt.s32.totalorder %s21, 1
      %s293 = scalar_select %p292, %s21, 1
      %p294 = scmp.lt.s32.totalorder %s291, 15
      %s295 = scalar_select %p294, %s291, 15
      %s296 = smul.addr %s295, 2
      %s297 = smul.addr %s293, 32
      %s298 = sadd.s32 %s296, %s297
      %s299 = smul.addr %s298, 8
      %s300 = scalar_lea.vmem %s5, %s299
      %p301 = pneg %p169
      %p302 = pneg %p166
      %p303 = pneg %p197
      %p304 = pneg %p194
      %s305 = smul.u32 16, %s22
      %p306 = scmp.lt.s32.totalorder %s21, 1
      %s307 = scalar_select %p306, %s21, 1
      %p308 = scmp.lt.s32.totalorder %s305, 15
      %s309 = scalar_select %p308, %s305, 15
      %s310 = smul.addr %s309, 2
      %s311 = smul.addr %s307, 32
      %s312 = sadd.s32 %s310, %s311
      %s313 = smul.addr %s312, 8
      %s314 = scalar_lea.vmem %s6, %s313
      %p315 = scmp.lt.s32.totalorder %s21, 1
      %s316 = scalar_select %p315, %s21, 1
      %s317 = smul.addr %s316, 32
      %s318 = smul.addr %s317, 8
      %s319 = scalar_lea.vmem %s0, %s318
      %s320 = smul.u32 16, %s22
      %p321 = scmp.lt.s32.totalorder %s21, 1
      %s322 = scalar_select %p321, %s21, 1
      %p323 = scmp.lt.s32.totalorder %s320, 15
      %s324 = scalar_select %p323, %s320, 15
      %s325 = smul.addr %s322, 16
      %s326 = sadd.s32 %s324, %s325
      %s327 = smul.addr %s326, 8
      %s328 = scalar_lea.vmem %s1, %s327
      %s329 = smul.u32 16, %s22
      %s330 = smul.u32 16, %s22
      %p331 = scmp.lt.s32.totalorder %s21, 1
      %s332 = scalar_select %p331, %s21, 1
      %p333 = scmp.lt.s32.totalorder %s330, 15
      %s334 = scalar_select %p333, %s330, 15
      %s335 = smul.addr %s334, 2
      %s336 = smul.addr %s332, 32
      %s337 = sadd.s32 %s335, %s336
      %s338 = smul.addr %s337, 8
      %s339 = scalar_lea.vmem %s5, %s338
      %s340 = smul.u32 16, %s22
      %s341 = smul.u32 16, %s22
      %p342 = scmp.lt.s32.totalorder %s21, 1
      %s343 = scalar_select %p342, %s21, 1
      %p344 = scmp.lt.s32.totalorder %s341, 15
      %s345 = scalar_select %p344, %s341, 15
      %s346 = smul.addr %s345, 2
      %s347 = smul.addr %s343, 32
      %s348 = sadd.s32 %s346, %s347
      %s349 = smul.addr %s348, 8
      %s350 = scalar_lea.vmem %s6, %s349
      %s351 = smul.u32 16, %s22
      %v352 = vld [vmem:[%s319] sm:$0xff]
      %v353 = vld [vmem:[%s319 + $0x8] sm:$0xff]
      %v354 = vld [vmem:[%s319 + $0x10] sm:$0xff]
      %v355 = vld [vmem:[%s319 + $0x18] sm:$0xff]
      %v356 = vld [vmem:[%s319 + $0x20] sm:$0xff]
      %v357 = vld [vmem:[%s319 + $0x28] sm:$0xff]
      %v358 = vld [vmem:[%s319 + $0x30] sm:$0xff]
      %v359 = vld [vmem:[%s319 + $0x38] sm:$0xff]
      %v360 = vld [vmem:[%s319 + $0x40] sm:$0xff]
      %v361 = vld [vmem:[%s319 + $0x48] sm:$0xff]
      %v362 = vld [vmem:[%s319 + $0x50] sm:$0xff]
      %v363 = vld [vmem:[%s319 + $0x58] sm:$0xff]
      %v364 = vld [vmem:[%s319 + $0x60] sm:$0xff]
      %v365 = vld [vmem:[%s319 + $0x68] sm:$0xff]
      %v366 = vld [vmem:[%s319 + $0x70] sm:$0xff]
      %v367 = vld [vmem:[%s319 + $0x78] sm:$0xff]
      %v368 = vld [vmem:[%s319 + $0x80] sm:$0xff]
      %v369 = vld [vmem:[%s319 + $0x88] sm:$0xff]
      %v370 = vld [vmem:[%s319 + $0x90] sm:$0xff]
      %v371 = vld [vmem:[%s319 + $0x98] sm:$0xff]
      %v372 = vld [vmem:[%s319 + $0xa0] sm:$0xff]
      %v373 = vld [vmem:[%s319 + $0xa8] sm:$0xff]
      %v374 = vld [vmem:[%s319 + $0xb0] sm:$0xff]
      %v375 = vld [vmem:[%s319 + $0xb8] sm:$0xff]
      %v376 = vld [vmem:[%s319 + $0xc0] sm:$0xff]
      %v377 = vld [vmem:[%s319 + $0xc8] sm:$0xff]
      %v378 = vld [vmem:[%s319 + $0xd0] sm:$0xff]
      %v379 = vld [vmem:[%s319 + $0xd8] sm:$0xff]
      %v380 = vld [vmem:[%s319 + $0xe0] sm:$0xff]
      %v381 = vld [vmem:[%s319 + $0xe8] sm:$0xff]
      %v382 = vld [vmem:[%s319 + $0xf0] sm:$0xff]
      %v383 = vld [vmem:[%s319 + $0xf8] sm:$0xff]
      %v384 = vld [vmem:[%s328] sm:$0xff]
      %v385 = vld [vmem:[%s328 + $0x8] sm:$0xff]
      %v386 = vld [vmem:[%s328 + $0x10] sm:$0xff]
      %v387 = vld [vmem:[%s328 + $0x18] sm:$0xff]
      %v388 = vld [vmem:[%s328 + $0x20] sm:$0xff]
      %v389 = vld [vmem:[%s328 + $0x28] sm:$0xff]
      %v390 = vld [vmem:[%s328 + $0x30] sm:$0xff]
      %v391 = vld [vmem:[%s328 + $0x38] sm:$0xff]
      %v392 = vld [vmem:[%s328 + $0x40] sm:$0xff]
      %v393 = vld [vmem:[%s328 + $0x48] sm:$0xff]
      %v394 = vld [vmem:[%s328 + $0x50] sm:$0xff]
      %v395 = vld [vmem:[%s328 + $0x58] sm:$0xff]
      %v396 = vld [vmem:[%s328 + $0x60] sm:$0xff]
      %v397 = vld [vmem:[%s328 + $0x68] sm:$0xff]
      %v398 = vld [vmem:[%s328 + $0x70] sm:$0xff]
      %v399 = vld [vmem:[%s328 + $0x78] sm:$0xff]
      %400 = vmatprep.subr.mxu0 %v353
      %401 = vmatpush1.msra.mxu0 %v352
      %402 = vmatprep.subr.mxu0 %v355
      %403 = vmatpush1.msra.mxu0 %v354
      %404 = vmatprep.subr.mxu0 %v357
      %405 = vmatpush1.msra.mxu0 %v356
      %406 = vmatprep.subr.mxu0 %v359
      %407 = vmatpush1.msra.mxu0 %v358
      %408 = vmatprep.subr.mxu0 %v361
      %409 = vmatpush1.msra.mxu0 %v360
      %410 = vmatprep.subr.mxu0 %v363
      %411 = vmatpush1.msra.mxu0 %v362
      %412 = vmatprep.subr.mxu0 %v365
      %413 = vmatpush1.msra.mxu0 %v364
      %414 = vmatprep.subr.mxu0 %v367
      %415 = vmatpush1.msra.mxu0 %v366
      %416 = vmatprep.subr.mxu0 %v369
      %417 = vmatpush1.msra.mxu0 %v368
      %418 = vmatprep.subr.mxu0 %v371
      %419 = vmatpush1.msra.mxu0 %v370
      %420 = vmatprep.subr.mxu0 %v373
      %421 = vmatpush1.msra.mxu0 %v372
      %422 = vmatprep.subr.mxu0 %v375
      %423 = vmatpush1.msra.mxu0 %v374
      %424 = vmatprep.subr.mxu0 %v377
      %425 = vmatpush1.msra.mxu0 %v376
      %426 = vmatprep.subr.mxu0 %v379
      %427 = vmatpush1.msra.mxu0 %v378
      %428 = vmatprep.subr.mxu0 %v381
      %429 = vmatpush1.msra.mxu0 %v380
      %430 = vmatprep.subr.mxu0 %v383
      %431 = vmatpush1.msra.mxu0 %v382
      %432 = vmatprep.subr.mxu0 0.0
      %433 = vmatpush1.msra.mxu0 0.0
      %434 = vmatprep.subr.mxu0 0.0
      %435 = vmatpush1.msra.mxu0 0.0
      %436 = vmatprep.subr.mxu0 0.0
      %437 = vmatpush1.msra.mxu0 0.0
      %438 = vmatprep.subr.mxu0 0.0
      %439 = vmatpush1.msra.mxu0 0.0
      %440 = vmatprep.subr.mxu0 0.0
      %441 = vmatpush1.msra.mxu0 0.0
      %442 = vmatprep.subr.mxu0 0.0
      %443 = vmatpush1.msra.mxu0 0.0
      %444 = vmatprep.subr.mxu0 0.0
      %445 = vmatpush1.msra.mxu0 0.0
      %446 = vmatprep.subr.mxu0 0.0
      %447 = vmatpush1.msra.mxu0 0.0
      %448 = vmatprep.subr.mxu0 0.0
      %449 = vmatpush1.msra.mxu0 0.0
      %450 = vmatprep.subr.mxu0 0.0
      %451 = vmatpush1.msra.mxu0 0.0
      %452 = vmatprep.subr.mxu0 0.0
      %453 = vmatpush1.msra.mxu0 0.0
      %454 = vmatprep.subr.mxu0 0.0
      %455 = vmatpush1.msra.mxu0 0.0
      %456 = vmatprep.subr.mxu0 0.0
      %457 = vmatpush1.msra.mxu0 0.0
      %458 = vmatprep.subr.mxu0 0.0
      %459 = vmatpush1.msra.mxu0 0.0
      %460 = vmatprep.subr.mxu0 0.0
      %461 = vmatpush1.msra.mxu0 0.0
      %462 = vmatprep.subr.mxu0 0.0
      %463 = vmatpush1.msra.mxu0 0.0
      %464 = vmatprep.mubr.f32.mxu0 0.0
      %465 = vmatmul.mubr.f32.gmra.mrb[0].mxu0 %v384
      %v466 = vpop.f32.mrb[0].mxu0
      %v467 = vadd.f32 0.0, %v466
      %v468 = vpop.f32.mrb[0].mxu0
      %v469 = vadd.f32 0.0, %v468
      %470 = vmatprep.mubr.f32.mxu0 0.0
      %471 = vmatmul.mubr.f32.gmra.mrb[0].mxu0 %v385
      %v472 = vpop.f32.mrb[0].mxu0
      %v473 = vadd.f32 0.0, %v472
      %v474 = vpop.f32.mrb[0].mxu0
      %v475 = vadd.f32 0.0, %v474
      %476 = vmatprep.mubr.f32.mxu0 0.0
      %477 = vmatmul.mubr.f32.gmra.mrb[0].mxu0 %v386
      %v478 = vpop.f32.mrb[0].mxu0
      %v479 = vadd.f32 0.0, %v478
      %v480 = vpop.f32.mrb[0].mxu0
      %v481 = vadd.f32 0.0, %v480
      %482 = vmatprep.mubr.f32.mxu0 0.0
      %483 = vmatmul.mubr.f32.gmra.mrb[0].mxu0 %v387
      %v484 = vpop.f32.mrb[0].mxu0
      %v485 = vadd.f32 0.0, %v484
      %v486 = vpop.f32.mrb[0].mxu0
      %v487 = vadd.f32 0.0, %v486
      %488 = vmatprep.mubr.f32.mxu0 0.0
      %489 = vmatmul.mubr.f32.gmra.mrb[0].mxu0 %v388
      %v490 = vpop.f32.mrb[0].mxu0
      %v491 = vadd.f32 0.0, %v490
      %v492 = vpop.f32.mrb[0].mxu0
      %v493 = vadd.f32 0.0, %v492
      %494 = vmatprep.mubr.f32.mxu0 0.0
      %495 = vmatmul.mubr.f32.gmra.mrb[0].mxu0 %v389
      %v496 = vpop.f32.mrb[0].mxu0
      %v497 = vadd.f32 0.0, %v496
      %v498 = vpop.f32.mrb[0].mxu0
      %v499 = vadd.f32 0.0, %v498
      %500 = vmatprep.mubr.f32.mxu0 0.0
      %501 = vmatmul.mubr.f32.gmra.mrb[0].mxu0 %v390
      %v502 = vpop.f32.mrb[0].mxu0
      %v503 = vadd.f32 0.0, %v502
      %v504 = vpop.f32.mrb[0].mxu0
      %v505 = vadd.f32 0.0, %v504
      %506 = vmatprep.mubr.f32.mxu0 0.0
      %507 = vmatmul.mubr.f32.gmra.mrb[0].mxu0 %v391
      %v508 = vpop.f32.mrb[0].mxu0
      %v509 = vadd.f32 0.0, %v508
      %v510 = vpop.f32.mrb[0].mxu0
      %v511 = vadd.f32 0.0, %v510
      %512 = vmatprep.mubr.f32.mxu0 0.0
      %513 = vmatmul.mubr.f32.gmra.mrb[0].mxu0 %v392
      %v514 = vpop.f32.mrb[0].mxu0
      %v515 = vadd.f32 0.0, %v514
      %v516 = vpop.f32.mrb[0].mxu0
      %v517 = vadd.f32 0.0, %v516
      %518 = vmatprep.mubr.f32.mxu0 0.0
      %519 = vmatmul.mubr.f32.gmra.mrb[0].mxu0 %v393
      %v520 = vpop.f32.mrb[0].mxu0
      %v521 = vadd.f32 0.0, %v520
      %v522 = vpop.f32.mrb[0].mxu0
      %v523 = vadd.f32 0.0, %v522
      %524 = vmatprep.mubr.f32.mxu0 0.0
      %525 = vmatmul.mubr.f32.gmra.mrb[0].mxu0 %v394
      %v526 = vpop.f32.mrb[0].mxu0
      %v527 = vadd.f32 0.0, %v526
      %v528 = vpop.f32.mrb[0].mxu0
      %v529 = vadd.f32 0.0, %v528
      %530 = vmatprep.mubr.f32.mxu0 0.0
      %531 = vmatmul.mubr.f32.gmra.mrb[0].mxu0 %v395
      %v532 = vpop.f32.mrb[0].mxu0
      %v533 = vadd.f32 0.0, %v532
      %v534 = vpop.f32.mrb[0].mxu0
      %v535 = vadd.f32 0.0, %v534
      %536 = vmatprep.mubr.f32.mxu0 0.0
      %537 = vmatmul.mubr.f32.gmra.mrb[0].mxu0 %v396
      %v538 = vpop.f32.mrb[0].mxu0
      %v539 = vadd.f32 0.0, %v538
      %v540 = vpop.f32.mrb[0].mxu0
      %v541 = vadd.f32 0.0, %v540
      %542 = vmatprep.mubr.f32.mxu0 0.0
      %543 = vmatmul.mubr.f32.gmra.mrb[0].mxu0 %v397
      %v544 = vpop.f32.mrb[0].mxu0
      %v545 = vadd.f32 0.0, %v544
      %v546 = vpop.f32.mrb[0].mxu0
      %v547 = vadd.f32 0.0, %v546
      %548 = vmatprep.mubr.f32.mxu0 0.0
      %549 = vmatmul.mubr.f32.gmra.mrb[0].mxu0 %v398
      %v550 = vpop.f32.mrb[0].mxu0
      %v551 = vadd.f32 0.0, %v550
      %v552 = vpop.f32.mrb[0].mxu0
      %v553 = vadd.f32 0.0, %v552
      %554 = vmatprep.mubr.f32.mxu0 0.0
      %555 = vmatmul.mubr.f32.gmra.mrb[0].mxu0 %v399
      %v556 = vpop.f32.mrb[0].mxu0
      %v557 = vadd.f32 0.0, %v556
      %v558 = vpop.f32.mrb[0].mxu0
      %v559 = vadd.f32 0.0, %v558
      %560 = vdwg.mxu0
      %v561 = vld [vmem:[%s2] sm:$0xff]
      %v562 = vld [vmem:[%s2 + $0x8] sm:$0xff]
      %v563 = vld [vmem:[%s2 + $0x10] sm:$0xff]
      %v564 = vld [vmem:[%s2 + $0x18] sm:$0xff]
      %v565 = vld [vmem:[%s2 + $0x20] sm:$0xff]
      %v566 = vld [vmem:[%s2 + $0x28] sm:$0xff]
      %v567 = vld [vmem:[%s2 + $0x30] sm:$0xff]
      %v568 = vld [vmem:[%s2 + $0x38] sm:$0xff]
      %v569 = vld [vmem:[%s2 + $0x40] sm:$0xff]
      %v570 = vld [vmem:[%s2 + $0x48] sm:$0xff]
      %v571 = vld [vmem:[%s2 + $0x50] sm:$0xff]
      %v572 = vld [vmem:[%s2 + $0x58] sm:$0xff]
      %v573 = vld [vmem:[%s2 + $0x60] sm:$0xff]
      %v574 = vld [vmem:[%s2 + $0x68] sm:$0xff]
      %v575 = vld [vmem:[%s2 + $0x70] sm:$0xff]
      %v576 = vld [vmem:[%s2 + $0x78] sm:$0xff]
      %v577 = vld [vmem:[%s2 + $0x80] sm:$0xff]
      %v578 = vld [vmem:[%s2 + $0x88] sm:$0xff]
      %v579 = vld [vmem:[%s2 + $0x90] sm:$0xff]
      %v580 = vld [vmem:[%s2 + $0x98] sm:$0xff]
      %v581 = vld [vmem:[%s2 + $0xa0] sm:$0xff]
      %v582 = vld [vmem:[%s2 + $0xa8] sm:$0xff]
      %v583 = vld [vmem:[%s2 + $0xb0] sm:$0xff]
      %v584 = vld [vmem:[%s2 + $0xb8] sm:$0xff]
      %v585 = vld [vmem:[%s2 + $0xc0] sm:$0xff]
      %v586 = vld [vmem:[%s2 + $0xc8] sm:$0xff]
      %v587 = vld [vmem:[%s2 + $0xd0] sm:$0xff]
      %v588 = vld [vmem:[%s2 + $0xd8] sm:$0xff]
      %v589 = vld [vmem:[%s2 + $0xe0] sm:$0xff]
      %v590 = vld [vmem:[%s2 + $0xe8] sm:$0xff]
      %v591 = vld [vmem:[%s2 + $0xf0] sm:$0xff]
      %v592 = vld [vmem:[%s2 + $0xf8] sm:$0xff]
      %v593 = vld [vmem:[%s2 + $0x100] sm:$0xff]
      %v594 = vld [vmem:[%s2 + $0x108] sm:$0xff]
      %v595 = vld [vmem:[%s2 + $0x110] sm:$0xff]
      %v596 = vld [vmem:[%s2 + $0x118] sm:$0xff]
      %v597 = vld [vmem:[%s2 + $0x120] sm:$0xff]
      %v598 = vld [vmem:[%s2 + $0x128] sm:$0xff]
      %v599 = vld [vmem:[%s2 + $0x130] sm:$0xff]
      %v600 = vld [vmem:[%s2 + $0x138] sm:$0xff]
      %v601 = vld [vmem:[%s2 + $0x140] sm:$0xff]
      %v602 = vld [vmem:[%s2 + $0x148] sm:$0xff]
      %v603 = vld [vmem:[%s2 + $0x150] sm:$0xff]
      %v604 = vld [vmem:[%s2 + $0x158] sm:$0xff]
      %v605 = vld [vmem:[%s2 + $0x160] sm:$0xff]
      %v606 = vld [vmem:[%s2 + $0x168] sm:$0xff]
      %v607 = vld [vmem:[%s2 + $0x170] sm:$0xff]
      %v608 = vld [vmem:[%s2 + $0x178] sm:$0xff]
      %v609 = vld [vmem:[%s2 + $0x180] sm:$0xff]
      %v610 = vld [vmem:[%s2 + $0x188] sm:$0xff]
      %v611 = vld [vmem:[%s2 + $0x190] sm:$0xff]
      %v612 = vld [vmem:[%s2 + $0x198] sm:$0xff]
      %v613 = vld [vmem:[%s2 + $0x1a0] sm:$0xff]
      %v614 = vld [vmem:[%s2 + $0x1a8] sm:$0xff]
      %v615 = vld [vmem:[%s2 + $0x1b0] sm:$0xff]
      %v616 = vld [vmem:[%s2 + $0x1b8] sm:$0xff]
      %v617 = vld [vmem:[%s2 + $0x1c0] sm:$0xff]
      %v618 = vld [vmem:[%s2 + $0x1c8] sm:$0xff]
      %v619 = vld [vmem:[%s2 + $0x1d0] sm:$0xff]
      %v620 = vld [vmem:[%s2 + $0x1d8] sm:$0xff]
      %v621 = vld [vmem:[%s2 + $0x1e0] sm:$0xff]
      %v622 = vld [vmem:[%s2 + $0x1e8] sm:$0xff]
      %v623 = vld [vmem:[%s2 + $0x1f0] sm:$0xff]
      %v624 = vld [vmem:[%s2 + $0x1f8] sm:$0xff]
      %v625 = vld [vmem:[%s3] sm:$0xff]
      %v626 = vld [vmem:[%s3 + $0x8] sm:$0xff]
      %v627 = vld [vmem:[%s3 + $0x10] sm:$0xff]
      %v628 = vld [vmem:[%s3 + $0x18] sm:$0xff]
      %v629 = vld [vmem:[%s3 + $0x20] sm:$0xff]
      %v630 = vld [vmem:[%s3 + $0x28] sm:$0xff]
      %v631 = vld [vmem:[%s3 + $0x30] sm:$0xff]
      %v632 = vld [vmem:[%s3 + $0x38] sm:$0xff]
      %v633 = vld [vmem:[%s3 + $0x40] sm:$0xff]
      %v634 = vld [vmem:[%s3 + $0x48] sm:$0xff]
      %v635 = vld [vmem:[%s3 + $0x50] sm:$0xff]
      %v636 = vld [vmem:[%s3 + $0x58] sm:$0xff]
      %v637 = vld [vmem:[%s3 + $0x60] sm:$0xff]
      %v638 = vld [vmem:[%s3 + $0x68] sm:$0xff]
      %v639 = vld [vmem:[%s3 + $0x70] sm:$0xff]
      %v640 = vld [vmem:[%s3 + $0x78] sm:$0xff]
      %v641 = vld [vmem:[%s3 + $0x80] sm:$0xff]
      %v642 = vld [vmem:[%s3 + $0x88] sm:$0xff]
      %v643 = vld [vmem:[%s3 + $0x90] sm:$0xff]
      %v644 = vld [vmem:[%s3 + $0x98] sm:$0xff]
      %v645 = vld [vmem:[%s3 + $0xa0] sm:$0xff]
      %v646 = vld [vmem:[%s3 + $0xa8] sm:$0xff]
      %v647 = vld [vmem:[%s3 + $0xb0] sm:$0xff]
      %v648 = vld [vmem:[%s3 + $0xb8] sm:$0xff]
      %v649 = vld [vmem:[%s3 + $0xc0] sm:$0xff]
      %v650 = vld [vmem:[%s3 + $0xc8] sm:$0xff]
      %v651 = vld [vmem:[%s3 + $0xd0] sm:$0xff]
      %v652 = vld [vmem:[%s3 + $0xd8] sm:$0xff]
      %v653 = vld [vmem:[%s3 + $0xe0] sm:$0xff]
      %v654 = vld [vmem:[%s3 + $0xe8] sm:$0xff]
      %v655 = vld [vmem:[%s3 + $0xf0] sm:$0xff]
      %v656 = vld [vmem:[%s3 + $0xf8] sm:$0xff]
      %v657 = vld [vmem:[%s3 + $0x100] sm:$0xff]
      %v658 = vld [vmem:[%s3 + $0x108] sm:$0xff]
      %v659 = vld [vmem:[%s3 + $0x110] sm:$0xff]
      %v660 = vld [vmem:[%s3 + $0x118] sm:$0xff]
      %v661 = vld [vmem:[%s3 + $0x120] sm:$0xff]
      %v662 = vld [vmem:[%s3 + $0x128] sm:$0xff]
      %v663 = vld [vmem:[%s3 + $0x130] sm:$0xff]
      %v664 = vld [vmem:[%s3 + $0x138] sm:$0xff]
      %v665 = vld [vmem:[%s3 + $0x140] sm:$0xff]
      %v666 = vld [vmem:[%s3 + $0x148] sm:$0xff]
      %v667 = vld [vmem:[%s3 + $0x150] sm:$0xff]
      %v668 = vld [vmem:[%s3 + $0x158] sm:$0xff]
      %v669 = vld [vmem:[%s3 + $0x160] sm:$0xff]
      %v670 = vld [vmem:[%s3 + $0x168] sm:$0xff]
      %v671 = vld [vmem:[%s3 + $0x170] sm:$0xff]
      %v672 = vld [vmem:[%s3 + $0x178] sm:$0xff]
      %v673 = vld [vmem:[%s3 + $0x180] sm:$0xff]
      %v674 = vld [vmem:[%s3 + $0x188] sm:$0xff]
      %v675 = vld [vmem:[%s3 + $0x190] sm:$0xff]
      %v676 = vld [vmem:[%s3 + $0x198] sm:$0xff]
      %v677 = vld [vmem:[%s3 + $0x1a0] sm:$0xff]
      %v678 = vld [vmem:[%s3 + $0x1a8] sm:$0xff]
      %v679 = vld [vmem:[%s3 + $0x1b0] sm:$0xff]
      %v680 = vld [vmem:[%s3 + $0x1b8] sm:$0xff]
      %v681 = vld [vmem:[%s3 + $0x1c0] sm:$0xff]
      %v682 = vld [vmem:[%s3 + $0x1c8] sm:$0xff]
      %v683 = vld [vmem:[%s3 + $0x1d0] sm:$0xff]
      %v684 = vld [vmem:[%s3 + $0x1d8] sm:$0xff]
      %v685 = vld [vmem:[%s3 + $0x1e0] sm:$0xff]
      %v686 = vld [vmem:[%s3 + $0x1e8] sm:$0xff]
      %v687 = vld [vmem:[%s3 + $0x1f0] sm:$0xff]
      %v688 = vld [vmem:[%s3 + $0x1f8] sm:$0xff]
      %689 = vmatprep.subr.mxu0 %v626
      %690 = vmatpush1.msra.mxu0 %v625
      %691 = vmatprep.subr.mxu0 %v628
      %692 = vmatpush1.msra.mxu0 %v627
      %693 = vmatprep.subr.mxu0 %v630
      %694 = vmatpush1.msra.mxu0 %v629
      %695 = vmatprep.subr.mxu0 %v632
      %696 = vmatpush1.msra.mxu0 %v631
      %697 = vmatprep.subr.mxu0 %v634
      %698 = vmatpush1.msra.mxu0 %v633
      %699 = vmatprep.subr.mxu0 %v636
      %700 = vmatpush1.msra.mxu0 %v635
      %701 = vmatprep.subr.mxu0 %v638
      %702 = vmatpush1.msra.mxu0 %v637
      %703 = vmatprep.subr.mxu0 %v640
      %704 = vmatpush1.msra.mxu0 %v639
      %705 = vmatprep.subr.mxu0 %v642
      %706 = vmatpush1.msra.mxu0 %v641
      %707 = vmatprep.subr.mxu0 %v644
      %708 = vmatpush1.msra.mxu0 %v643
      %709 = vmatprep.subr.mxu0 %v646
      %710 = vmatpush1.msra.mxu0 %v645
      %711 = vmatprep.subr.mxu0 %v648
      %712 = vmatpush1.msra.mxu0 %v647
      %713 = vmatprep.subr.mxu0 %v650
      %714 = vmatpush1.msra.mxu0 %v649
      %715 = vmatprep.subr.mxu0 %v652
      %716 = vmatpush1.msra.mxu0 %v651
      %717 = vmatprep.subr.mxu0 %v654
      %718 = vmatpush1.msra.mxu0 %v653
      %719 = vmatprep.subr.mxu0 %v656
      %720 = vmatpush1.msra.mxu0 %v655
      %721 = vmatprep.subr.mxu0 %v658
      %722 = vmatpush1.msra.mxu0 %v657
      %723 = vmatprep.subr.mxu0 %v660
      %724 = vmatpush1.msra.mxu0 %v659
      %725 = vmatprep.subr.mxu0 %v662
      %726 = vmatpush1.msra.mxu0 %v661
      %727 = vmatprep.subr.mxu0 %v664
      %728 = vmatpush1.msra.mxu0 %v663
      %729 = vmatprep.subr.mxu0 %v666
      %730 = vmatpush1.msra.mxu0 %v665
      %731 = vmatprep.subr.mxu0 %v668
      %732 = vmatpush1.msra.mxu0 %v667
      %733 = vmatprep.subr.mxu0 %v670
      %734 = vmatpush1.msra.mxu0 %v669
      %735 = vmatprep.subr.mxu0 %v672
      %736 = vmatpush1.msra.mxu0 %v671
      %737 = vmatprep.subr.mxu0 %v674
      %738 = vmatpush1.msra.mxu0 %v673
      %739 = vmatprep.subr.mxu0 %v676
      %740 = vmatpush1.msra.mxu0 %v675
      %741 = vmatprep.subr.mxu0 %v678
      %742 = vmatpush1.msra.mxu0 %v677
      %743 = vmatprep.subr.mxu0 %v680
      %744 = vmatpush1.msra.mxu0 %v679
      %745 = vmatprep.subr.mxu0 %v682
      %746 = vmatpush1.msra.mxu0 %v681
      %747 = vmatprep.subr.mxu0 %v684
      %748 = vmatpush1.msra.mxu0 %v683
      %749 = vmatprep.subr.mxu0 %v686
      %750 = vmatpush1.msra.mxu0 %v685
      %751 = vmatprep.subr.mxu0 %v688
      %752 = vmatpush1.msra.mxu0 %v687
      %753 = vmatprep.mubr.f32.mxu0 %v469
      %754 = vmatmul.mubr.f32.gmra.mrb[0].mxu0 %v467
      %v755 = vpop.f32.mrb[0].mxu0
      %v756 = vadd.f32 0.0, %v755
      %v757 = vpop.f32.mrb[0].mxu0
      %v758 = vadd.f32 0.0, %v757
      %759 = vmatprep.mubr.f32.mxu0 %v475
      %760 = vmatmul.mubr.f32.gmra.mrb[0].mxu0 %v473
      %v761 = vpop.f32.mrb[0].mxu0
      %v762 = vadd.f32 0.0, %v761
      %v763 = vpop.f32.mrb[0].mxu0
      %v764 = vadd.f32 0.0, %v763
      %765 = vmatprep.mubr.f32.mxu0 %v481
      %766 = vmatmul.mubr.f32.gmra.mrb[0].mxu0 %v479
      %v767 = vpop.f32.mrb[0].mxu0
      %v768 = vadd.f32 0.0, %v767
      %v769 = vpop.f32.mrb[0].mxu0
      %v770 = vadd.f32 0.0, %v769
      %771 = vmatprep.mubr.f32.mxu0 %v487
      %772 = vmatmul.mubr.f32.gmra.mrb[0].mxu0 %v485
      %v773 = vpop.f32.mrb[0].mxu0
      %v774 = vadd.f32 0.0, %v773
      %v775 = vpop.f32.mrb[0].mxu0
      %v776 = vadd.f32 0.0, %v775
      %777 = vmatprep.mubr.f32.mxu0 %v493
      %778 = vmatmul.mubr.f32.gmra.mrb[0].mxu0 %v491
      %v779 = vpop.f32.mrb[0].mxu0
      %v780 = vadd.f32 0.0, %v779
      %v781 = vpop.f32.mrb[0].mxu0
      %v782 = vadd.f32 0.0, %v781
      %783 = vmatprep.mubr.f32.mxu0 %v499
      %784 = vmatmul.mubr.f32.gmra.mrb[0].mxu0 %v497
      %v785 = vpop.f32.mrb[0].mxu0
      %v786 = vadd.f32 0.0, %v785
      %v787 = vpop.f32.mrb[0].mxu0
      %v788 = vadd.f32 0.0, %v787
      %789 = vmatprep.mubr.f32.mxu0 %v505
      %790 = vmatmul.mubr.f32.gmra.mrb[0].mxu0 %v503
      %v791 = vpop.f32.mrb[0].mxu0
      %v792 = vadd.f32 0.0, %v791
      %v793 = vpop.f32.mrb[0].mxu0
      %v794 = vadd.f32 0.0, %v793
      %795 = vmatprep.mubr.f32.mxu0 %v511
      %796 = vmatmul.mubr.f32.gmra.mrb[0].mxu0 %v509
      %v797 = vpop.f32.mrb[0].mxu0
      %v798 = vadd.f32 0.0, %v797
      %v799 = vpop.f32.mrb[0].mxu0
      %v800 = vadd.f32 0.0, %v799
      %801 = vmatprep.mubr.f32.mxu0 %v517
      %802 = vmatmul.mubr.f32.gmra.mrb[0].mxu0 %v515
      %v803 = vpop.f32.mrb[0].mxu0
      %v804 = vadd.f32 0.0, %v803
      %v805 = vpop.f32.mrb[0].mxu0
      %v806 = vadd.f32 0.0, %v805
      %807 = vmatprep.mubr.f32.mxu0 %v523
      %808 = vmatmul.mubr.f32.gmra.mrb[0].mxu0 %v521
      %v809 = vpop.f32.mrb[0].mxu0
      %v810 = vadd.f32 0.0, %v809
      %v811 = vpop.f32.mrb[0].mxu0
      %v812 = vadd.f32 0.0, %v811
      %813 = vmatprep.mubr.f32.mxu0 %v529
      %814 = vmatmul.mubr.f32.gmra.mrb[0].mxu0 %v527
      %v815 = vpop.f32.mrb[0].mxu0
      %v816 = vadd.f32 0.0, %v815
      %v817 = vpop.f32.mrb[0].mxu0
      %v818 = vadd.f32 0.0, %v817
      %819 = vmatprep.mubr.f32.mxu0 %v535
      %820 = vmatmul.mubr.f32.gmra.mrb[0].mxu0 %v533
      %v821 = vpop.f32.mrb[0].mxu0
      %v822 = vadd.f32 0.0, %v821
      %v823 = vpop.f32.mrb[0].mxu0
      %v824 = vadd.f32 0.0, %v823
      %825 = vmatprep.mubr.f32.mxu0 %v541
      %826 = vmatmul.mubr.f32.gmra.mrb[0].mxu0 %v539
      %v827 = vpop.f32.mrb[0].mxu0
      %v828 = vadd.f32 0.0, %v827
      %v829 = vpop.f32.mrb[0].mxu0
      %v830 = vadd.f32 0.0, %v829
      %831 = vmatprep.mubr.f32.mxu0 %v547
      %832 = vmatmul.mubr.f32.gmra.mrb[0].mxu0 %v545
      %v833 = vpop.f32.mrb[0].mxu0
      %v834 = vadd.f32 0.0, %v833
      %v835 = vpop.f32.mrb[0].mxu0
      %v836 = vadd.f32 0.0, %v835
      %837 = vmatprep.mubr.f32.mxu0 %v553
      %838 = vmatmul.mubr.f32.gmra.mrb[0].mxu0 %v551
      %v839 = vpop.f32.mrb[0].mxu0
      %v840 = vadd.f32 0.0, %v839
      %v841 = vpop.f32.mrb[0].mxu0
      %v842 = vadd.f32 0.0, %v841
      %843 = vmatprep.mubr.f32.mxu0 %v559
      %844 = vmatmul.mubr.f32.gmra.mrb[0].mxu0 %v557
      %v845 = vpop.f32.mrb[0].mxu0
      %v846 = vadd.f32 0.0, %v845
      %v847 = vpop.f32.mrb[0].mxu0
      %v848 = vadd.f32 0.0, %v847
      %849 = vdwg.mxu0
      %850 = vmatprep.subr.mxu0 %v562
      %851 = vmatpush1.msra.mxu0 %v561
      %852 = vmatprep.subr.mxu0 %v564
      %853 = vmatpush1.msra.mxu0 %v563
      %854 = vmatprep.subr.mxu0 %v566
      %855 = vmatpush1.msra.mxu0 %v565
      %856 = vmatprep.subr.mxu0 %v568
      %857 = vmatpush1.msra.mxu0 %v567
      %858 = vmatprep.subr.mxu0 %v570
      %859 = vmatpush1.msra.mxu0 %v569
      %860 = vmatprep.subr.mxu0 %v572
      %861 = vmatpush1.msra.mxu0 %v571
      %862 = vmatprep.subr.mxu0 %v574
      %863 = vmatpush1.msra.mxu0 %v573
      %864 = vmatprep.subr.mxu0 %v576
      %865 = vmatpush1.msra.mxu0 %v575
      %866 = vmatprep.subr.mxu0 %v578
      %867 = vmatpush1.msra.mxu0 %v577
      %868 = vmatprep.subr.mxu0 %v580
      %869 = vmatpush1.msra.mxu0 %v579
      %870 = vmatprep.subr.mxu0 %v582
      %871 = vmatpush1.msra.mxu0 %v581
      %872 = vmatprep.subr.mxu0 %v584
      %873 = vmatpush1.msra.mxu0 %v583
      %874 = vmatprep.subr.mxu0 %v586
      %875 = vmatpush1.msra.mxu0 %v585
      %876 = vmatprep.subr.mxu0 %v588
      %877 = vmatpush1.msra.mxu0 %v587
      %878 = vmatprep.subr.mxu0 %v590
      %879 = vmatpush1.msra.mxu0 %v589
      %880 = vmatprep.subr.mxu0 %v592
      %881 = vmatpush1.msra.mxu0 %v591
      %882 = vmatprep.subr.mxu0 %v594
      %883 = vmatpush1.msra.mxu0 %v593
      %884 = vmatprep.subr.mxu0 %v596
      %885 = vmatpush1.msra.mxu0 %v595
      %886 = vmatprep.subr.mxu0 %v598
      %887 = vmatpush1.msra.mxu0 %v597
      %888 = vmatprep.subr.mxu0 %v600
      %889 = vmatpush1.msra.mxu0 %v599
      %890 = vmatprep.subr.mxu0 %v602
      %891 = vmatpush1.msra.mxu0 %v601
      %892 = vmatprep.subr.mxu0 %v604
      %893 = vmatpush1.msra.mxu0 %v603
      %894 = vmatprep.subr.mxu0 %v606
      %895 = vmatpush1.msra.mxu0 %v605
      %896 = vmatprep.subr.mxu0 %v608
      %897 = vmatpush1.msra.mxu0 %v607
      %898 = vmatprep.subr.mxu0 %v610
      %899 = vmatpush1.msra.mxu0 %v609
      %900 = vmatprep.subr.mxu0 %v612
      %901 = vmatpush1.msra.mxu0 %v611
      %902 = vmatprep.subr.mxu0 %v614
      %903 = vmatpush1.msra.mxu0 %v613
      %904 = vmatprep.subr.mxu0 %v616
      %905 = vmatpush1.msra.mxu0 %v615
      %906 = vmatprep.subr.mxu0 %v618
      %907 = vmatpush1.msra.mxu0 %v617
      %908 = vmatprep.subr.mxu0 %v620
      %909 = vmatpush1.msra.mxu0 %v619
      %910 = vmatprep.subr.mxu0 %v622
      %911 = vmatpush1.msra.mxu0 %v621
      %912 = vmatprep.subr.mxu0 %v624
      %913 = vmatpush1.msra.mxu0 %v623
      %914 = vmatprep.mubr.f32.mxu0 %v353
      %915 = vmatmul.mubr.f32.gmra.mrb[0].mxu0 %v352
      %v916 = vpop.f32.mrb[0].mxu0
      %v917 = vadd.f32 %v756, %v916
      %v918 = vpop.f32.mrb[0].mxu0
      %v919 = vadd.f32 %v758, %v918
      %920 = vmatprep.mubr.f32.mxu0 %v355
      %921 = vmatmul.mubr.f32.gmra.mrb[0].mxu0 %v354
      %v922 = vpop.f32.mrb[0].mxu0
      %v923 = vadd.f32 %v762, %v922
      %v924 = vpop.f32.mrb[0].mxu0
      %v925 = vadd.f32 %v764, %v924
      %926 = vmatprep.mubr.f32.mxu0 %v357
      %927 = vmatmul.mubr.f32.gmra.mrb[0].mxu0 %v356
      %v928 = vpop.f32.mrb[0].mxu0
      %v929 = vadd.f32 %v768, %v928
      %v930 = vpop.f32.mrb[0].mxu0
      %v931 = vadd.f32 %v770, %v930
      %932 = vmatprep.mubr.f32.mxu0 %v359
      %933 = vmatmul.mubr.f32.gmra.mrb[0].mxu0 %v358
      %v934 = vpop.f32.mrb[0].mxu0
      %v935 = vadd.f32 %v774, %v934
      %v936 = vpop.f32.mrb[0].mxu0
      %v937 = vadd.f32 %v776, %v936
      %938 = vmatprep.mubr.f32.mxu0 %v361
      %939 = vmatmul.mubr.f32.gmra.mrb[0].mxu0 %v360
      %v940 = vpop.f32.mrb[0].mxu0
      %v941 = vadd.f32 %v780, %v940
      %v942 = vpop.f32.mrb[0].mxu0
      %v943 = vadd.f32 %v782, %v942
      %944 = vmatprep.mubr.f32.mxu0 %v363
      %945 = vmatmul.mubr.f32.gmra.mrb[0].mxu0 %v362
      %v946 = vpop.f32.mrb[0].mxu0
      %v947 = vadd.f32 %v786, %v946
      %v948 = vpop.f32.mrb[0].mxu0
      %v949 = vadd.f32 %v788, %v948
      %950 = vmatprep.mubr.f32.mxu0 %v365
      %951 = vmatmul.mubr.f32.gmra.mrb[0].mxu0 %v364
      %v952 = vpop.f32.mrb[0].mxu0
      %v953 = vadd.f32 %v792, %v952
      %v954 = vpop.f32.mrb[0].mxu0
      %v955 = vadd.f32 %v794, %v954
      %956 = vmatprep.mubr.f32.mxu0 %v367
      %957 = vmatmul.mubr.f32.gmra.mrb[0].mxu0 %v366
      %v958 = vpop.f32.mrb[0].mxu0
      %v959 = vadd.f32 %v798, %v958
      %v960 = vpop.f32.mrb[0].mxu0
      %v961 = vadd.f32 %v800, %v960
      %962 = vmatprep.mubr.f32.mxu0 %v369
      %963 = vmatmul.mubr.f32.gmra.mrb[0].mxu0 %v368
      %v964 = vpop.f32.mrb[0].mxu0
      %v965 = vadd.f32 %v804, %v964
      %v966 = vpop.f32.mrb[0].mxu0
      %v967 = vadd.f32 %v806, %v966
      %968 = vmatprep.mubr.f32.mxu0 %v371
      %969 = vmatmul.mubr.f32.gmra.mrb[0].mxu0 %v370
      %v970 = vpop.f32.mrb[0].mxu0
      %v971 = vadd.f32 %v810, %v970
      %v972 = vpop.f32.mrb[0].mxu0
      %v973 = vadd.f32 %v812, %v972
      %974 = vmatprep.mubr.f32.mxu0 %v373
      %975 = vmatmul.mubr.f32.gmra.mrb[0].mxu0 %v372
      %v976 = vpop.f32.mrb[0].mxu0
      %v977 = vadd.f32 %v816, %v976
      %v978 = vpop.f32.mrb[0].mxu0
      %v979 = vadd.f32 %v818, %v978
      %980 = vmatprep.mubr.f32.mxu0 %v375
      %981 = vmatmul.mubr.f32.gmra.mrb[0].mxu0 %v374
      %v982 = vpop.f32.mrb[0].mxu0
      %v983 = vadd.f32 %v822, %v982
      %v984 = vpop.f32.mrb[0].mxu0
      %v985 = vadd.f32 %v824, %v984
      %986 = vmatprep.mubr.f32.mxu0 %v377
      %987 = vmatmul.mubr.f32.gmra.mrb[0].mxu0 %v376
      %v988 = vpop.f32.mrb[0].mxu0
      %v989 = vadd.f32 %v828, %v988
      %v990 = vpop.f32.mrb[0].mxu0
      %v991 = vadd.f32 %v830, %v990
      %992 = vmatprep.mubr.f32.mxu0 %v379
      %993 = vmatmul.mubr.f32.gmra.mrb[0].mxu0 %v378
      %v994 = vpop.f32.mrb[0].mxu0
      %v995 = vadd.f32 %v834, %v994
      %v996 = vpop.f32.mrb[0].mxu0
      %v997 = vadd.f32 %v836, %v996
      %998 = vmatprep.mubr.f32.mxu0 %v381
      %999 = vmatmul.mubr.f32.gmra.mrb[0].mxu0 %v380
      %v1000 = vpop.f32.mrb[0].mxu0
      %v1001 = vadd.f32 %v840, %v1000
      %v1002 = vpop.f32.mrb[0].mxu0
      %v1003 = vadd.f32 %v842, %v1002
      %1004 = vmatprep.mubr.f32.mxu0 %v383
      %1005 = vmatmul.mubr.f32.gmra.mrb[0].mxu0 %v382
      %v1006 = vpop.f32.mrb[0].mxu0
      %v1007 = vadd.f32 %v846, %v1006
      %v1008 = vpop.f32.mrb[0].mxu0
      %v1009 = vadd.f32 %v848, %v1008
      %1010 = vdwg.mxu0
      %v1011 = vld [vmem:[%s4] sm:$0x3]
      %v1013 = vlaneseq
      %v1014 = vshrl.u32 %v1013, 7
      %v1015 = vsub.s32 0, %v1014
      %v1016 = vrot.slane %v1011, %v1015
      %v1017 = vlaneseq
      %v1018 = vshrl.u32 %v1017, 7
      %v1019 = vsub.s32 1, %v1018
      %v1020 = vrot.slane %v1011, %v1019
      %v1023 = vadd.f32 %v917, %v1016
      %v1024 = vadd.f32 %v919, %v1020
      %v1025 = vadd.f32 %v923, %v1016
      %v1026 = vadd.f32 %v925, %v1020
      %v1027 = vadd.f32 %v929, %v1016
      %v1028 = vadd.f32 %v931, %v1020
      %v1029 = vadd.f32 %v935, %v1016
      %v1030 = vadd.f32 %v937, %v1020
      %v1031 = vadd.f32 %v941, %v1016
      %v1032 = vadd.f32 %v943, %v1020
      %v1033 = vadd.f32 %v947, %v1016
      %v1034 = vadd.f32 %v949, %v1020
      %v1035 = vadd.f32 %v953, %v1016
      %v1036 = vadd.f32 %v955, %v1020
      %v1037 = vadd.f32 %v959, %v1016
      %v1038 = vadd.f32 %v961, %v1020
      %v1039 = vadd.f32 %v965, %v1016
      %v1040 = vadd.f32 %v967, %v1020
      %v1041 = vadd.f32 %v971, %v1016
      %v1042 = vadd.f32 %v973, %v1020
      %v1043 = vadd.f32 %v977, %v1016
      %v1044 = vadd.f32 %v979, %v1020
      %v1045 = vadd.f32 %v983, %v1016
      %v1046 = vadd.f32 %v985, %v1020
      %v1047 = vadd.f32 %v989, %v1016
      %v1048 = vadd.f32 %v991, %v1020
      %v1049 = vadd.f32 %v995, %v1016
      %v1050 = vadd.f32 %v997, %v1020
      %v1051 = vadd.f32 %v1001, %v1016
      %v1052 = vadd.f32 %v1003, %v1020
      %v1053 = vadd.f32 %v1007, %v1016
      %v1054 = vadd.f32 %v1009, %v1020
      %v1055 = vld [vmem:[%s339] sm:$0xff]
      %v1056 = vld [vmem:[%s339 + $0x8] sm:$0xff]
      %v1057 = vld [vmem:[%s339 + $0x10] sm:$0xff]
      %v1058 = vld [vmem:[%s339 + $0x18] sm:$0xff]
      %v1059 = vld [vmem:[%s339 + $0x20] sm:$0xff]
      %v1060 = vld [vmem:[%s339 + $0x28] sm:$0xff]
      %v1061 = vld [vmem:[%s339 + $0x30] sm:$0xff]
      %v1062 = vld [vmem:[%s339 + $0x38] sm:$0xff]
      %v1063 = vld [vmem:[%s339 + $0x40] sm:$0xff]
      %v1064 = vld [vmem:[%s339 + $0x48] sm:$0xff]
      %v1065 = vld [vmem:[%s339 + $0x50] sm:$0xff]
      %v1066 = vld [vmem:[%s339 + $0x58] sm:$0xff]
      %v1067 = vld [vmem:[%s339 + $0x60] sm:$0xff]
      %v1068 = vld [vmem:[%s339 + $0x68] sm:$0xff]
      %v1069 = vld [vmem:[%s339 + $0x70] sm:$0xff]
      %v1070 = vld [vmem:[%s339 + $0x78] sm:$0xff]
      %v1071 = vld [vmem:[%s339 + $0x80] sm:$0xff]
      %v1072 = vld [vmem:[%s339 + $0x88] sm:$0xff]
      %v1073 = vld [vmem:[%s339 + $0x90] sm:$0xff]
      %v1074 = vld [vmem:[%s339 + $0x98] sm:$0xff]
      %v1075 = vld [vmem:[%s339 + $0xa0] sm:$0xff]
      %v1076 = vld [vmem:[%s339 + $0xa8] sm:$0xff]
      %v1077 = vld [vmem:[%s339 + $0xb0] sm:$0xff]
      %v1078 = vld [vmem:[%s339 + $0xb8] sm:$0xff]
      %v1079 = vld [vmem:[%s339 + $0xc0] sm:$0xff]
      %v1080 = vld [vmem:[%s339 + $0xc8] sm:$0xff]
      %v1081 = vld [vmem:[%s339 + $0xd0] sm:$0xff]
      %v1082 = vld [vmem:[%s339 + $0xd8] sm:$0xff]
      %v1083 = vld [vmem:[%s339 + $0xe0] sm:$0xff]
      %v1084 = vld [vmem:[%s339 + $0xe8] sm:$0xff]
      %v1085 = vld [vmem:[%s339 + $0xf0] sm:$0xff]
      %v1086 = vld [vmem:[%s339 + $0xf8] sm:$0xff]
      %v1087 = vadd.f32 %v1023, %v1055
      %v1088 = vadd.f32 %v1024, %v1056
      %v1089 = vadd.f32 %v1025, %v1057
      %v1090 = vadd.f32 %v1026, %v1058
      %v1091 = vadd.f32 %v1027, %v1059
      %v1092 = vadd.f32 %v1028, %v1060
      %v1093 = vadd.f32 %v1029, %v1061
      %v1094 = vadd.f32 %v1030, %v1062
      %v1095 = vadd.f32 %v1031, %v1063
      %v1096 = vadd.f32 %v1032, %v1064
      %v1097 = vadd.f32 %v1033, %v1065
      %v1098 = vadd.f32 %v1034, %v1066
      %v1099 = vadd.f32 %v1035, %v1067
      %v1100 = vadd.f32 %v1036, %v1068
      %v1101 = vadd.f32 %v1037, %v1069
      %v1102 = vadd.f32 %v1038, %v1070
      %v1103 = vadd.f32 %v1039, %v1071
      %v1104 = vadd.f32 %v1040, %v1072
      %v1105 = vadd.f32 %v1041, %v1073
      %v1106 = vadd.f32 %v1042, %v1074
      %v1107 = vadd.f32 %v1043, %v1075
      %v1108 = vadd.f32 %v1044, %v1076
      %v1109 = vadd.f32 %v1045, %v1077
      %v1110 = vadd.f32 %v1046, %v1078
      %v1111 = vadd.f32 %v1047, %v1079
      %v1112 = vadd.f32 %v1048, %v1080
      %v1113 = vadd.f32 %v1049, %v1081
      %v1114 = vadd.f32 %v1050, %v1082
      %v1115 = vadd.f32 %v1051, %v1083
      %v1116 = vadd.f32 %v1052, %v1084
      %v1117 = vadd.f32 %v1053, %v1085
      %v1118 = vadd.f32 %v1054, %v1086
      %v1119 = vmax.f32 %v1087, 0.0
      %v1120 = vmax.f32 %v1088, 0.0
      %v1121 = vmax.f32 %v1089, 0.0
      %v1122 = vmax.f32 %v1090, 0.0
      %v1123 = vmax.f32 %v1091, 0.0
      %v1124 = vmax.f32 %v1092, 0.0
      %v1125 = vmax.f32 %v1093, 0.0
      %v1126 = vmax.f32 %v1094, 0.0
      %v1127 = vmax.f32 %v1095, 0.0
      %v1128 = vmax.f32 %v1096, 0.0
      %v1129 = vmax.f32 %v1097, 0.0
      %v1130 = vmax.f32 %v1098, 0.0
      %v1131 = vmax.f32 %v1099, 0.0
      %v1132 = vmax.f32 %v1100, 0.0
      %v1133 = vmax.f32 %v1101, 0.0
      %v1134 = vmax.f32 %v1102, 0.0
      %v1135 = vmax.f32 %v1103, 0.0
      %v1136 = vmax.f32 %v1104, 0.0
      %v1137 = vmax.f32 %v1105, 0.0
      %v1138 = vmax.f32 %v1106, 0.0
      %v1139 = vmax.f32 %v1107, 0.0
      %v1140 = vmax.f32 %v1108, 0.0
      %v1141 = vmax.f32 %v1109, 0.0
      %v1142 = vmax.f32 %v1110, 0.0
      %v1143 = vmax.f32 %v1111, 0.0
      %v1144 = vmax.f32 %v1112, 0.0
      %v1145 = vmax.f32 %v1113, 0.0
      %v1146 = vmax.f32 %v1114, 0.0
      %v1147 = vmax.f32 %v1115, 0.0
      %v1148 = vmax.f32 %v1116, 0.0
      %v1149 = vmax.f32 %v1117, 0.0
      %v1150 = vmax.f32 %v1118, 0.0
      %1151 = vst [vmem:[%s350] sm:$0xff] %v1119
      %1152 = vst [vmem:[%s350 + $0x8] sm:$0xff] %v1120
      %1153 = vst [vmem:[%s350 + $0x10] sm:$0xff] %v1121
      %1154 = vst [vmem:[%s350 + $0x18] sm:$0xff] %v1122
      %1155 = vst [vmem:[%s350 + $0x20] sm:$0xff] %v1123
      %1156 = vst [vmem:[%s350 + $0x28] sm:$0xff] %v1124
      %1157 = vst [vmem:[%s350 + $0x30] sm:$0xff] %v1125
      %1158 = vst [vmem:[%s350 + $0x38] sm:$0xff] %v1126
      %1159 = vst [vmem:[%s350 + $0x40] sm:$0xff] %v1127
      %1160 = vst [vmem:[%s350 + $0x48] sm:$0xff] %v1128
      %1161 = vst [vmem:[%s350 + $0x50] sm:$0xff] %v1129
      %1162 = vst [vmem:[%s350 + $0x58] sm:$0xff] %v1130
      %1163 = vst [vmem:[%s350 + $0x60] sm:$0xff] %v1131
      %1164 = vst [vmem:[%s350 + $0x68] sm:$0xff] %v1132
      %1165 = vst [vmem:[%s350 + $0x70] sm:$0xff] %v1133
      %1166 = vst [vmem:[%s350 + $0x78] sm:$0xff] %v1134
      %1167 = vst [vmem:[%s350 + $0x80] sm:$0xff] %v1135
      %1168 = vst [vmem:[%s350 + $0x88] sm:$0xff] %v1136
      %1169 = vst [vmem:[%s350 + $0x90] sm:$0xff] %v1137
      %1170 = vst [vmem:[%s350 + $0x98] sm:$0xff] %v1138
      %1171 = vst [vmem:[%s350 + $0xa0] sm:$0xff] %v1139
      %1172 = vst [vmem:[%s350 + $0xa8] sm:$0xff] %v1140
      %1173 = vst [vmem:[%s350 + $0xb0] sm:$0xff] %v1141
      %1174 = vst [vmem:[%s350 + $0xb8] sm:$0xff] %v1142
      %1175 = vst [vmem:[%s350 + $0xc0] sm:$0xff] %v1143
      %1176 = vst [vmem:[%s350 + $0xc8] sm:$0xff] %v1144
      %1177 = vst [vmem:[%s350 + $0xd0] sm:$0xff] %v1145
      %1178 = vst [vmem:[%s350 + $0xd8] sm:$0xff] %v1146
      %1179 = vst [vmem:[%s350 + $0xe0] sm:$0xff] %v1147
      %1180 = vst [vmem:[%s350 + $0xe8] sm:$0xff] %v1148
      %1181 = vst [vmem:[%s350 + $0xf0] sm:$0xff] %v1149
      %1182 = vst [vmem:[%s350 + $0xf8] sm:$0xff] %v1150
      %s1183 = smul.u32 16, %s22
      %p1184 = scmp.lt.s32.totalorder %s21, 1
      %s1185 = scalar_select %p1184, %s21, 1
      %p1186 = scmp.lt.s32.totalorder %s1183, 15
      %s1187 = scalar_select %p1186, %s1183, 15
      %s1188 = smul.addr %s1187, 2
      %s1189 = smul.addr %s1185, 32
      %s1190 = sadd.s32 %s1188, %s1189
      %s1191 = smul.addr %s1190, 8
      %s1192 = scalar_lea.vmem %s6, %s1191
      // Predicated region
      $region45: #{deform_gnn_forward.18} parent=43 // pred_check
        %p1193 = pneg %p194
      $region46: #{deform_gnn_forward.18} parent=43 // pred_check_branch
        %1195 = sbr.rel (%p1193) target = $region48
      $region47: #{deform_gnn_forward.18} parent=43 // pred_region
        %s1196 = smul.u32 16, %s22
      $region48: #{deform_gnn_forward.18} parent=43 // pred_fallthru
        _
    $region44: #{deform_gnn_forward.18} parent=5 // pred_fallthru
      _
    %p1197 = scmp.le.s32.totalorder 2, %s12
    // Predicated region
    $region49: #{deform_gnn_forward.18} parent=5 // pred_check
      %p1198 = pneg %p1197
    $region50: #{deform_gnn_forward.18} parent=5 // pred_check_branch
      %1200 = sbr.rel (%p1198) target = $region52
    $region51: #{deform_gnn_forward.18} parent=5 // pred_region
      %s1201 = ssub.s32 %s12, 2
      // Predicated region
      $region53: #{deform_gnn_forward.18} parent=51 // pred_check
        %p1202 = pneg %p200
      $region54: #{deform_gnn_forward.18} parent=51 // pred_check_branch
        %1204 = sbr.rel (%p1202) target = $region56
      $region55: #{deform_gnn_forward.18} parent=51 // pred_region
        %s1205 = smul.u32 16, %s24
        %p1206 = scmp.lt.s32.totalorder %s23, 1
        %s1207 = scalar_select %p1206, %s23, 1
        %p1208 = scmp.lt.s32.totalorder %s1205, 15
        %s1209 = scalar_select %p1208, %s1205, 15
        %s1210 = smul.addr %s1209, 2
        %s1211 = smul.addr %s1207, 32
        %s1212 = sadd.s32 %s1210, %s1211
        %s1213 = smul.addr %s1212, 8
        %s1214 = scalar_lea.vmem %s6, %s1213
      $region56: #{deform_gnn_forward.18} parent=51 // pred_fallthru
        _
    $region52: #{deform_gnn_forward.18} parent=5 // pred_fallthru
      _
  $region6: #{deform_gnn_forward.18} parent=0 // loop_footer
    %s16 = sadd.s32 1, %s12
  $region7: #{deform_gnn_forward.18} parent=0 // loop_footer_branch
    %11 = sbr.rel target = $region3
  $region8: #{deform_gnn_forward.18} parent=0 // loop_exit
    _

</llo_original>
